<compile_context>
chip_gen: v7x
topology: tpu7x:2x2x1
jax: 0.10.0
libtpu: 0.0.40
codegen_flags: <defaults>
</compile_context>

<pallas_src>
import functools

import jax
import jax.numpy as jnp
from jax.experimental import pallas as pl
from jax.experimental.pallas import tpu as pltpu

# ----- constants (stand-ins for the repo's `const` module) -------------------
NUM_RNN_LAYERS = 2
CHORD_ROOT_DIM = 13
CHORD_ROOT_EMBED_DIM = 8
CHORD_PC_DIM = 12
CHORD_PC_EMBED_DIM = 8
CHORD_EMBED_DIM = 16
BARPOS_DIM = 16
BARPOS_EMBED_DIM = 8
BN_EPS = 1e-5
NEG_BIG = -1e30  # pad-logit bias; exp underflows to 0, softmax unaffected

VMEM_SPEC = pl.BlockSpec(memory_space=pltpu.MemorySpace.VMEM)


def _rup(x, m):
    return ((x + m - 1) // m) * m


# ============================ weight-slab layout ==============================

def _make_layout(vocab, embed_dim, cond_vocab, cond_embed_dim, hidden_dim, output_dim):
    """Row layout of the single packed bf16 weight slab + misc static sizes."""
    pc_mid = (CHORD_PC_DIM + CHORD_PC_EMBED_DIM) // 2
    mid = (hidden_dim + output_dim) // 2
    mid_p = _rup(mid, 64)
    out_p = _rup(output_dim, 128)
    emb3_rows = vocab + cond_vocab + BARPOS_DIM
    emb3_cols = embed_dim + cond_embed_dim + BARPOS_EMBED_DIM
    enc_in = emb3_cols + 2 * CHORD_EMBED_DIM

    # (name, real_rows, cols, read_padded_rows_for_onehot)
    entries = [
        ("w_emb3", emb3_rows, emb3_cols, True),    # block-diag [emb|cond|barpos]
        ("w_root", CHORD_ROOT_DIM, CHORD_ROOT_EMBED_DIM, True),
        ("pc_w1", CHORD_PC_DIM, pc_mid, False),
        ("pc_w2", pc_mid, CHORD_PC_EMBED_DIM, False),
        ("ce_w1", CHORD_ROOT_EMBED_DIM + CHORD_PC_EMBED_DIM, CHORD_EMBED_DIM, False),
        ("ce_w2", CHORD_EMBED_DIM, CHORD_EMBED_DIM, False),
        ("enc_w", enc_in, hidden_dim, False),
        ("wih1", hidden_dim, 4 * hidden_dim, False),
        ("whh1", hidden_dim, 4 * hidden_dim, False),
        ("w2cat", 2 * hidden_dim, 4 * hidden_dim, False),   # [wih2; whh2]
        ("dec_w1", hidden_dim, mid_p, False),
        ("dec_w2", mid_p, out_p, False),
    ]
    L, r = {}, 0
    for name, rows, cols, pad_read in entries:
        rp = _rup(rows, 8)
        L[name] = (r, rp if pad_read else rows, cols)   # (row_start, read_rows, cols)
        r += rp
    L["total_rows"] = r
    L["lane_width"] = _rup(max(c for _, _, c, _ in entries), 128)
    L["bias_width"] = _rup(max(4 * hidden_dim, out_p), 128)
    L["off_cond"] = vocab
    L["off_bp"] = vocab + cond_vocab
    L["hidden"] = hidden_dim
    L["output_dim"] = output_dim
    L["mid_dim"] = mid
    return L


# ============================== fused Pallas kernel ===========================

def _fused_forward_kernel(idx_ref, pcs_ref, w_ref, b_ref, bn_ref, out_ref, *, S, BP, L):
    f32, bf16 = jnp.float32, jnp.bfloat16
    H = L["hidden"]
    n = S * BP          # padded row count (time-major, row = t*BP + b)
    n2 = 2 * n

    def w_at(name):
        r0, rows, cols = L[name]
        return w_ref[r0:r0 + rows, 0:cols]

    def b_at(row, cols):
        return b_ref[row:row + 1, 0:cols]

    bn = bn_ref[...]        # (2n, 8) per-row BN scale/shift columns
    idx = idx_ref[...]      # (2n, 4) int32

    # -- embedding lookups as one-hot / multi-hot matmuls (tables in the slab) --
    root_k = L["w_root"][1]
    oh_root = (idx[:, 0:1] ==
               jax.lax.broadcasted_iota(jnp.int32, (n2, root_k), 1)).astype(bf16)
    root_e2 = jnp.dot(oh_root, w_at("w_root"), preferred_element_type=f32)  # (2n, 8)

    emb3_k = L["w_emb3"][1]
    iota3 = jax.lax.broadcasted_iota(jnp.int32, (n, emb3_k), 1)
    mh = ((idx[0:n, 1:2] == iota3).astype(bf16)
          + (idx[0:n, 2:3] == iota3).astype(bf16)
          + (idx[0:n, 3:4] == iota3).astype(bf16))
    xcb = jnp.dot(mh, w_at("w_emb3"), preferred_element_type=f32)  # (n, 32) = [x|cond|bp]

    # -- chord branch on stacked rows [current; next] (shared weights, one pass) --
    pcs2 = pcs_ref[...].astype(bf16)
    pc_h = jnp.maximum(
        jnp.dot(pcs2, w_at("pc_w1"), preferred_element_type=f32)
        + b_at(0, L["pc_w1"][2]), 0.0)
    pc_e = (jnp.dot(pc_h.astype(bf16), w_at("pc_w2"), preferred_element_type=f32)
            + b_at(1, L["pc_w2"][2]))
    ce_in = jnp.concatenate([root_e2, pc_e], axis=-1).astype(bf16)
    ch = (jnp.dot(ce_in, w_at("ce_w1"), preferred_element_type=f32)
          + b_at(2, L["ce_w1"][2]))
    ch = jnp.maximum(ch * bn[:, 0:1] + bn[:, 1:2], 0.0)            # eval BN + ReLU
    ch = (jnp.dot(ch.astype(bf16), w_at("ce_w2"), preferred_element_type=f32)
          + b_at(3, L["ce_w2"][2]))                                 # (2n, 16)

    # -- encoder: single lane concat + one K=64 dot --
    enc_in = jnp.concatenate([xcb, ch[0:n, :], ch[n:n2, :]], axis=-1).astype(bf16)
    enc = (jnp.dot(enc_in, w_at("enc_w"), preferred_element_type=f32) + b_at(4, H))
    enc = jnp.maximum(enc * bn[0:n, 2:3] + bn[0:n, 3:4], 0.0)       # (n, H)

    # -- 2-layer LSTM, fused, static unrolled time loop --
    wih1 = w_at("wih1")
    whh1 = w_at("whh1")
    w2c = w_at("w2cat")                  # [wih2; whh2] -> one fused recurrent dot
    lb1 = b_at(5, 4 * H)
    lb2 = b_at(6, 4 * H)
    # layer-1 input path hoisted off the serial recurrence
    xg1 = jnp.dot(enc.astype(bf16), wih1, preferred_element_type=f32) + lb1  # (n, 4H)

    zeros = jnp.zeros((BP, H), f32)
    h1, c1, h2, c2 = zeros, zeros, zeros, zeros
    h2_steps = []
    for t in range(S):                   # static unroll (S is trace-time constant)
        r0 = t * BP
        # layer 1 (PyTorch gate order i, f, g, o)
        g1 = xg1[r0:r0 + BP, :] + jnp.dot(h1.astype(bf16), whh1,
                                          preferred_element_type=f32)
        s1 = jax.nn.sigmoid(g1)
        c1 = s1[:, H:2 * H] * c1 + s1[:, 0:H] * jnp.tanh(g1[:, 2 * H:3 * H])
        h1 = s1[:, 3 * H:4 * H] * jnp.tanh(c1)
        # TODO(synk): inter-layer LSTM dropout is identity (eval mode); training-mode
        # stochastic dropout intentionally not reproduced.
        # layer 2: input + recurrent matmuls fused into one (BP,2H)@(2H,4H) dot
        hh = jnp.concatenate([h1, h2], axis=-1).astype(bf16)
        g2 = jnp.dot(hh, w2c, preferred_element_type=f32) + lb2
        s2 = jax.nn.sigmoid(g2)
        c2 = s2[:, H:2 * H] * c2 + s2[:, 0:H] * jnp.tanh(g2[:, 2 * H:3 * H])
        h2 = s2[:, 3 * H:4 * H] * jnp.tanh(c2)
        h2_steps.append(h2)
    lstm_out = jnp.concatenate(h2_steps, axis=0)                    # (n, H), in vregs

    # -- decoder + lane-dense padded log-softmax --
    dh = (jnp.dot(lstm_out.astype(bf16), w_at("dec_w1"), preferred_element_type=f32)
          + b_at(7, L["dec_w1"][2]))
    dh = jnp.maximum(dh * bn[0:n, 4:5] + bn[0:n, 5:6], 0.0)
    logits = (jnp.dot(dh.astype(bf16), w_at("dec_w2"), preferred_element_type=f32)
              + b_at(8, L["dec_w2"][2]))                            # (n, OUT_PAD)
    m = jnp.max(logits, axis=-1, keepdims=True)
    z = logits - m
    out_ref[...] = z - jnp.log(jnp.sum(jnp.exp(z), axis=-1, keepdims=True))


# ============================ parameters / packing ============================

def _rand(key, shape, scale=0.1):
    return scale * jax.random.normal(key, shape, dtype=jnp.float32)


def init_params(key, vocab_size, embed_dim, cond_vocab_size, cond_embed_dim,
                output_dim, hidden_dim, seq_len):
    ks = iter(jax.random.split(key, 32))
    pc_mid = (CHORD_PC_DIM + CHORD_PC_EMBED_DIM) // 2
    mid = (hidden_dim + output_dim) // 2
    chord_in = CHORD_ROOT_EMBED_DIM + CHORD_PC_EMBED_DIM
    enc_in = embed_dim + cond_embed_dim + BARPOS_EMBED_DIM + 2 * CHORD_EMBED_DIM
    p = {
        "chord_root_embed": _rand(next(ks), (CHORD_ROOT_DIM, CHORD_ROOT_EMBED_DIM), 1.0),
        "embedding": _rand(next(ks), (vocab_size, embed_dim), 1.0),
        "cond_embedding": _rand(next(ks), (cond_vocab_size, cond_embed_dim), 1.0),
        "barpos_embedding": _rand(next(ks), (BARPOS_DIM, BARPOS_EMBED_DIM), 1.0),
        "pc_w1": _rand(next(ks), (CHORD_PC_DIM, pc_mid)),
        "pc_b1": _rand(next(ks), (pc_mid,)),
        "pc_w2": _rand(next(ks), (pc_mid, CHORD_PC_EMBED_DIM)),
        "pc_b2": _rand(next(ks), (CHORD_PC_EMBED_DIM,)),
        "ce_w1": _rand(next(ks), (chord_in, CHORD_EMBED_DIM)),
        "ce_b1": _rand(next(ks), (CHORD_EMBED_DIM,)),
        "ce_w2": _rand(next(ks), (CHORD_EMBED_DIM, CHORD_EMBED_DIM)),
        "ce_b2": _rand(next(ks), (CHORD_EMBED_DIM,)),
        "enc_w": _rand(next(ks), (enc_in, hidden_dim)),
        "enc_b": _rand(next(ks), (hidden_dim,)),
        "dec_w1": _rand(next(ks), (hidden_dim, mid)),
        "dec_b1": _rand(next(ks), (mid,)),
        "dec_w2": _rand(next(ks), (mid, output_dim)),
        "dec_b2": _rand(next(ks), (output_dim,)),
    }
    # BatchNorm1d(seq_len) parameters at PyTorch default init (eval mode).
    for name in ("ce_bn", "enc_bn", "dec_bn"):
        p[name] = {"gamma": jnp.ones((seq_len,), jnp.float32),
                   "beta": jnp.zeros((seq_len,), jnp.float32),
                   "rm": jnp.zeros((seq_len,), jnp.float32),
                   "rv": jnp.ones((seq_len,), jnp.float32)}
    # LSTM: weights pre-transposed to (in, 4H); "b" = b_ih + b_hh.
    lstm = []
    for _ in range(NUM_RNN_LAYERS):
        lstm.append({"wih_t": _rand(next(ks), (hidden_dim, 4 * hidden_dim)),
                     "whh_t": _rand(next(ks), (hidden_dim, 4 * hidden_dim)),
                     "b": _rand(next(ks), (4 * hidden_dim,))})
    p["lstm"] = lstm
    return p


def pack_params(params, *, batch, seq_len, vocab_size, embed_dim,
                cond_vocab_size, cond_embed_dim, hidden_dim, output_dim):
    """One-time (outside-jit) packing of all parameters into 3 kernel slabs."""
    L = _make_layout(vocab_size, embed_dim, cond_vocab_size, cond_embed_dim,
                     hidden_dim, output_dim)

    # ---- weight slab (bf16) ----
    w = jnp.zeros((L["total_rows"], L["lane_width"]), jnp.float32)

    def put(w, name, mat):
        r0 = L[name][0]
        return w.at[r0:r0 + mat.shape[0], 0:mat.shape[1]].set(mat)

    emb3 = jnp.zeros((vocab_size + cond_vocab_size + BARPOS_DIM,
                      embed_dim + cond_embed_dim + BARPOS_EMBED_DIM), jnp.float32)
    emb3 = emb3.at[0:vocab_size, 0:embed_dim].set(params["embedding"])
    emb3 = emb3.at[vocab_size:vocab_size + cond_vocab_size,
                   embed_dim:embed_dim + cond_embed_dim].set(params["cond_embedding"])
    emb3 = emb3.at[vocab_size + cond_vocab_size:,
                   embed_dim + cond_embed_dim:].set(params["barpos_embedding"])

    w = put(w, "w_emb3", emb3)
    w = put(w, "w_root", params["chord_root_embed"])
    w = put(w, "pc_w1", params["pc_w1"])
    w = put(w, "pc_w2", params["pc_w2"])
    w = put(w, "ce_w1", params["ce_w1"])
    w = put(w, "ce_w2", params["ce_w2"])
    w = put(w, "enc_w", params["enc_w"])
    w = put(w, "wih1", params["lstm"][0]["wih_t"])
    w = put(w, "whh1", params["lstm"][0]["whh_t"])
    w = put(w, "w2cat", jnp.concatenate([params["lstm"][1]["wih_t"],
                                         params["lstm"][1]["whh_t"]], axis=0))
    w = put(w, "dec_w1", params["dec_w1"])
    w = put(w, "dec_w2", params["dec_w2"])
    w_slab = w.astype(jnp.bfloat16)

    # ---- bias slab (f32), one bias per row ----
    b = jnp.zeros((16, L["bias_width"]), jnp.float32)

    def putb(b, row, vec):
        return b.at[row, 0:vec.shape[0]].set(vec)

    b = putb(b, 0, params["pc_b1"])
    b = putb(b, 1, params["pc_b2"])
    b = putb(b, 2, params["ce_b1"])
    b = putb(b, 3, params["ce_b2"])
    b = putb(b, 4, params["enc_b"])
    b = putb(b, 5, params["lstm"][0]["b"])
    b = putb(b, 6, params["lstm"][1]["b"])
    b = putb(b, 7, params["dec_b1"])
    out_p = L["dec_w2"][2]
    b = putb(b, 8, jnp.concatenate(
        [params["dec_b2"], jnp.full((out_p - output_dim,), NEG_BIG, jnp.float32)]))
    b_slab = b

    # ---- per-row eval-BN scale/shift slab (f32), time-major padded rows ----
    BP = _rup(batch, 8)
    n_pad = seq_len * BP

    def bn_rows(bn):
        s = bn["gamma"] / jnp.sqrt(bn["rv"] + BN_EPS)
        sh = bn["beta"] - bn["rm"] * s
        return jnp.repeat(s, BP), jnp.repeat(sh, BP)

    ce_s, ce_sh = bn_rows(params["ce_bn"])
    e_s, e_sh = bn_rows(params["enc_bn"])
    d_s, d_sh = bn_rows(params["dec_bn"])
    bn = jnp.zeros((2 * n_pad, 8), jnp.float32)
    bn = bn.at[:, 0].set(jnp.concatenate([ce_s, ce_s]))
    bn = bn.at[:, 1].set(jnp.concatenate([ce_sh, ce_sh]))
    bn = bn.at[0:n_pad, 2].set(e_s)
    bn = bn.at[0:n_pad, 3].set(e_sh)
    bn = bn.at[0:n_pad, 4].set(d_s)
    bn = bn.at[0:n_pad, 5].set(d_sh)
    return w_slab, b_slab, bn, L


# ================================= forward ====================================

def forward(w_slab, b_slab, bn_slab, data, *, L):
    x, conds, barpos, chord_roots, chord_pcs, nxt_chord_roots, nxt_chord_pcs = data
    B, S = x.shape
    BP = _rup(B, 8)
    n_pad = S * BP
    out_pad = L["dec_w2"][2]
    output_dim = L["output_dim"]

    def tm_idx(a):          # (B,S) int -> (n_pad,) time-major, batch padded
        return jnp.pad(a.T.astype(jnp.int32), ((0, 0), (0, BP - B))).reshape(-1)

    def tm_feat(a):         # (B,S,F) -> (n_pad, F) time-major, batch padded
        return jnp.pad(a.transpose(1, 0, 2).astype(jnp.float32),
                       ((0, 0), (0, BP - B), (0, 0))).reshape(n_pad, -1)

    zeros_i = jnp.zeros((n_pad,), jnp.int32)
    idx_slab = jnp.stack([
        jnp.concatenate([tm_idx(chord_roots), tm_idx(nxt_chord_roots)]),
        jnp.concatenate([tm_idx(x), zeros_i]),
        jnp.concatenate([tm_idx(conds) + L["off_cond"], zeros_i]),
        jnp.concatenate([tm_idx(barpos) + L["off_bp"], zeros_i]),
    ], axis=-1)                                                       # (2*n_pad, 4)
    pcs2 = jnp.concatenate([tm_feat(chord_pcs), tm_feat(nxt_chord_pcs)], axis=0)

    kern = functools.partial(_fused_forward_kernel, S=S, BP=BP, L=L)
    out = pl.pallas_call(
        kern,
        out_shape=jax.ShapeDtypeStruct((n_pad, out_pad), jnp.float32),
        in_specs=[VMEM_SPEC] * 5,
        out_specs=VMEM_SPEC,
    )(idx_slab, pcs2, w_slab, b_slab, bn_slab)

    # (n_pad, OUT_PAD) time-major -> (B, S, output_dim)
    return out.reshape(S, BP, out_pad)[:, :B, :output_dim].transpose(1, 0, 2)


# ============================ pure-JAX reference ==============================

def reference_forward(params, data):
    x, conds, barpos, chord_roots, chord_pcs, nxt_chord_roots, nxt_chord_pcs = data
    B = x.shape[0]
    H = params["enc_w"].shape[1]

    def bn_eval(h, bn):     # eval-mode BatchNorm1d(seq_len) on (B,S,F)
        s = bn["gamma"] / jnp.sqrt(bn["rv"] + BN_EPS)
        sh = bn["beta"] - bn["rm"] * s
        return h * s[None, :, None] + sh[None, :, None]

    def chord_branch(roots, pcs):
        r_e = params["chord_root_embed"][roots]
        h = jnp.maximum(pcs @ params["pc_w1"] + params["pc_b1"], 0.0)
        p_e = h @ params["pc_w2"] + params["pc_b2"]
        ce = jnp.concatenate([r_e, p_e], -1) @ params["ce_w1"] + params["ce_b1"]
        ce = jnp.maximum(bn_eval(ce, params["ce_bn"]), 0.0)
        return ce @ params["ce_w2"] + params["ce_b2"]

    chord_e = chord_branch(chord_roots, chord_pcs.astype(jnp.float32))
    nxt_e = chord_branch(nxt_chord_roots, nxt_chord_pcs.astype(jnp.float32))
    x_e = params["embedding"][x]
    c_e = params["cond_embedding"][conds]
    bp_e = params["barpos_embedding"][barpos]
    enc = (jnp.concatenate([x_e, c_e, bp_e, chord_e, nxt_e], -1)
           @ params["enc_w"] + params["enc_b"])
    enc = jnp.maximum(bn_eval(enc, params["enc_bn"]), 0.0)

    def lstm_layer(inp, layer):
        wih, whh, b = layer["wih_t"], layer["whh_t"], layer["b"]

        def step(carry, x_t):
            h, c = carry
            g = x_t @ wih + h @ whh + b
            i, f, gg, o = jnp.split(g, 4, axis=-1)
            c = jax.nn.sigmoid(f) * c + jax.nn.sigmoid(i) * jnp.tanh(gg)
            h = jax.nn.sigmoid(o) * jnp.tanh(c)
            return (h, c), h

        init = (jnp.zeros((B, H), jnp.float32), jnp.zeros((B, H), jnp.float32))
        _, hs = jax.lax.scan(step, init, inp.transpose(1, 0, 2))
        return hs.transpose(1, 0, 2)

    out1 = lstm_layer(enc, params["lstm"][0])
    out2 = lstm_layer(out1, params["lstm"][1])

    dh = out2 @ params["dec_w1"] + params["dec_b1"]
    dh = jnp.maximum(bn_eval(dh, params["dec_bn"]), 0.0)
    logits = dh @ params["dec_w2"] + params["dec_b2"]
    return jax.nn.log_softmax(logits, axis=-1)


# ================================== main =====================================

if __name__ == "__main__":
    vocab_size, embed_dim = 40, 16
    cond_vocab_size, cond_embed_dim = 10, 8
    output_dim, hidden_dim = 40, 32
    batch_size, seq_len = 2, 8

    key = jax.random.PRNGKey(0)
    k_par, k_x, k_c, k_bp, k_cr, k_pc, k_ncr, k_npc = jax.random.split(key, 8)

    params = init_params(k_par, vocab_size, embed_dim, cond_vocab_size,
                         cond_embed_dim, output_dim, hidden_dim, seq_len)
    # One-time parameter packing (outside jit) into the kernel's three slabs.
    w_slab, b_slab, bn_slab, L = pack_params(
        params, batch=batch_size, seq_len=seq_len,
        vocab_size=vocab_size, embed_dim=embed_dim,
        cond_vocab_size=cond_vocab_size, cond_embed_dim=cond_embed_dim,
        hidden_dim=hidden_dim, output_dim=output_dim)

    x = jax.random.randint(k_x, (batch_size, seq_len), 0, vocab_size)
    conds = jax.random.randint(k_c, (batch_size, seq_len), 0, cond_vocab_size)
    barpos = jax.random.randint(k_bp, (batch_size, seq_len), 0, BARPOS_DIM)
    chord_roots = jax.random.randint(k_cr, (batch_size, seq_len), 0, CHORD_ROOT_DIM)
    chord_pcs = (jax.random.uniform(k_pc, (batch_size, seq_len, CHORD_PC_DIM)) > 0.5
                 ).astype(jnp.float32)
    nxt_chord_roots = jax.random.randint(k_ncr, (batch_size, seq_len), 0, CHORD_ROOT_DIM)
    nxt_chord_pcs = (jax.random.uniform(k_npc, (batch_size, seq_len, CHORD_PC_DIM)) > 0.5
                     ).astype(jnp.float32)
    data = (x, conds, barpos, chord_roots, chord_pcs, nxt_chord_roots, nxt_chord_pcs)

    fwd = jax.jit(functools.partial(forward, L=L))
    out = jax.block_until_ready(fwd(w_slab, b_slab, bn_slab, data))

    assert out.shape == (batch_size, seq_len, output_dim)
    # sanity: log-softmax rows exponentiate-sum to ~1
    row_sums = jnp.exp(out).sum(-1)
    assert bool(jnp.allclose(row_sums, 1.0, atol=1e-3)), "log-softmax not normalized"
    # correctness vs f32 pure-JAX reference (bf16 matmuls -> loose tolerance)
    ref = reference_forward(params, data)
    max_err = float(jnp.max(jnp.abs(out - ref)))
    assert max_err < 5e-2, f"kernel vs reference max abs err {max_err}"
    print("KERNEL_OK")
</pallas_src>

<mosaic_0001>
module attributes {stable_mosaic.version = 11 : i64} {
  func.func @_fused_forward_kernel(%arg0: memref<128x4xi32, #tpu.memory_space<vmem>>, %arg1: memref<128x12xf32, #tpu.memory_space<vmem>>, %arg2: memref<440x128xbf16, #tpu.memory_space<vmem>>, %arg3: memref<16x128xf32, #tpu.memory_space<vmem>>, %arg4: memref<128x8xf32, #tpu.memory_space<vmem>>, %arg5: memref<64x128xf32, #tpu.memory_space<vmem>>) attributes {dimension_semantics = [], scalar_prefetch = 0 : i64, scratch_operands = 0 : i64, tpu.core_type = #tpu.core_type<tc>} {
    %c0 = arith.constant 0 : index
    %c0_0 = arith.constant 0 : index
    %0 = vector.load %arg4[%c0, %c0_0] : memref<128x8xf32, #tpu.memory_space<vmem>>, vector<128x8xf32>
    %c0_1 = arith.constant 0 : index
    %c0_2 = arith.constant 0 : index
    %1 = vector.load %arg0[%c0_1, %c0_2] : memref<128x4xi32, #tpu.memory_space<vmem>>, vector<128x4xi32>
    %2 = vector.extract_strided_slice %1 {offsets = [0, 0], sizes = [128, 1], strides = [1, 1]} : vector<128x4xi32> to vector<128x1xi32>
    %3 = tpu.iota {dimensions = array<i32: 1>} : vector<128x16xi32>
    %4 = vector.broadcast %2 : vector<128x1xi32> to vector<128x16xi32>
    %5 = arith.cmpi eq, %4, %3 : vector<128x16xi32>
    %6 = arith.extui %5 : vector<128x16xi1> to vector<128x16xi32>
    %7 = arith.sitofp %6 : vector<128x16xi32> to vector<128x16xf32>
    %8 = arith.truncf %7 : vector<128x16xf32> to vector<128x16xbf16>
    %c72 = arith.constant 72 : index
    %c0_3 = arith.constant 0 : index
    %9 = vector.load %arg2[%c72, %c0_3] : memref<440x128xbf16, #tpu.memory_space<vmem>>, vector<16x8xbf16>
    %cst = arith.constant dense<0.000000e+00> : vector<128x8xf32>
    %10 = tpu.matmul %8, %9, %cst {dimension_numbers = #tpu.dot_dimension_numbers<[1], [0], [0], [1], [0, 0, 1, 1], [], []>} : vector<128x16xbf16>, vector<16x8xbf16>, vector<128x8xf32> -> vector<128x8xf32>
    %11 = tpu.iota {dimensions = array<i32: 1>} : vector<64x72xi32>
    %12 = vector.extract_strided_slice %1 {offsets = [0, 1], sizes = [64, 1], strides = [1, 1]} : vector<128x4xi32> to vector<64x1xi32>
    %13 = vector.broadcast %12 : vector<64x1xi32> to vector<64x72xi32>
    %14 = arith.cmpi eq, %13, %11 : vector<64x72xi32>
    %15 = arith.extui %14 : vector<64x72xi1> to vector<64x72xi32>
    %16 = arith.sitofp %15 : vector<64x72xi32> to vector<64x72xf32>
    %17 = arith.truncf %16 : vector<64x72xf32> to vector<64x72xbf16>
    %18 = vector.extract_strided_slice %1 {offsets = [0, 2], sizes = [64, 1], strides = [1, 1]} : vector<128x4xi32> to vector<64x1xi32>
    %19 = vector.broadcast %18 : vector<64x1xi32> to vector<64x72xi32>
    %20 = arith.cmpi eq, %19, %11 : vector<64x72xi32>
    %21 = arith.extui %20 : vector<64x72xi1> to vector<64x72xi32>
    %22 = arith.sitofp %21 : vector<64x72xi32> to vector<64x72xf32>
    %23 = arith.truncf %22 : vector<64x72xf32> to vector<64x72xbf16>
    %24 = arith.addf %17, %23 : vector<64x72xbf16>
    %25 = vector.extract_strided_slice %1 {offsets = [0, 3], sizes = [64, 1], strides = [1, 1]} : vector<128x4xi32> to vector<64x1xi32>
    %26 = vector.broadcast %25 : vector<64x1xi32> to vector<64x72xi32>
    %27 = arith.cmpi eq, %26, %11 : vector<64x72xi32>
    %28 = arith.extui %27 : vector<64x72xi1> to vector<64x72xi32>
    %29 = arith.sitofp %28 : vector<64x72xi32> to vector<64x72xf32>
    %30 = arith.truncf %29 : vector<64x72xf32> to vector<64x72xbf16>
    %31 = arith.addf %24, %30 : vector<64x72xbf16>
    %c0_4 = arith.constant 0 : index
    %c0_5 = arith.constant 0 : index
    %32 = vector.load %arg2[%c0_4, %c0_5] : memref<440x128xbf16, #tpu.memory_space<vmem>>, vector<72x32xbf16>
    %cst_6 = arith.constant dense<0.000000e+00> : vector<64x32xf32>
    %33 = tpu.matmul %31, %32, %cst_6 {dimension_numbers = #tpu.dot_dimension_numbers<[1], [0], [0], [1], [0, 0, 1, 1], [], []>} : vector<64x72xbf16>, vector<72x32xbf16>, vector<64x32xf32> -> vector<64x32xf32>
    %c0_7 = arith.constant 0 : index
    %c0_8 = arith.constant 0 : index
    %34 = vector.load %arg1[%c0_7, %c0_8] : memref<128x12xf32, #tpu.memory_space<vmem>>, vector<128x12xf32>
    %35 = arith.truncf %34 : vector<128x12xf32> to vector<128x12xbf16>
    %c88 = arith.constant 88 : index
    %c0_9 = arith.constant 0 : index
    %36 = vector.load %arg2[%c88, %c0_9] : memref<440x128xbf16, #tpu.memory_space<vmem>>, vector<12x10xbf16>
    %cst_10 = arith.constant dense<0.000000e+00> : vector<128x10xf32>
    %37 = tpu.matmul %35, %36, %cst_10 {dimension_numbers = #tpu.dot_dimension_numbers<[1], [0], [0], [1], [0, 0, 1, 1], [], []>} : vector<128x12xbf16>, vector<12x10xbf16>, vector<128x10xf32> -> vector<128x10xf32>
    %c0_11 = arith.constant 0 : index
    %c0_12 = arith.constant 0 : index
    %38 = vector.load %arg3[%c0_11, %c0_12] : memref<16x128xf32, #tpu.memory_space<vmem>>, vector<1x10xf32>
    %39 = vector.broadcast %38 : vector<1x10xf32> to vector<128x10xf32>
    %40 = arith.addf %37, %39 : vector<128x10xf32>
    %cst_13 = arith.constant 0.000000e+00 : f32
    %41 = vector.broadcast %cst_13 : f32 to vector<128x10xf32>
    %42 = arith.maximumf %40, %41 : vector<128x10xf32>
    %43 = arith.truncf %42 : vector<128x10xf32> to vector<128x10xbf16>
    %c104 = arith.constant 104 : index
    %c0_14 = arith.constant 0 : index
    %44 = vector.load %arg2[%c104, %c0_14] : memref<440x128xbf16, #tpu.memory_space<vmem>>, vector<10x8xbf16>
    %cst_15 = arith.constant dense<0.000000e+00> : vector<128x8xf32>
    %45 = tpu.matmul %43, %44, %cst_15 {dimension_numbers = #tpu.dot_dimension_numbers<[1], [0], [0], [1], [0, 0, 1, 1], [], []>} : vector<128x10xbf16>, vector<10x8xbf16>, vector<128x8xf32> -> vector<128x8xf32>
    %c1 = arith.constant 1 : index
    %c0_16 = arith.constant 0 : index
    %46 = vector.load %arg3[%c1, %c0_16] : memref<16x128xf32, #tpu.memory_space<vmem>>, vector<1x8xf32>
    %47 = vector.broadcast %46 : vector<1x8xf32> to vector<128x8xf32>
    %48 = arith.addf %45, %47 : vector<128x8xf32>
    %49 = tpu.concatenate %10, %48 in 1 : vector<128x8xf32>, vector<128x8xf32> -> vector<128x16xf32>
    %50 = arith.truncf %49 : vector<128x16xf32> to vector<128x16xbf16>
    %c120 = arith.constant 120 : index
    %c0_17 = arith.constant 0 : index
    %51 = vector.load %arg2[%c120, %c0_17] : memref<440x128xbf16, #tpu.memory_space<vmem>>, vector<16x16xbf16>
    %cst_18 = arith.constant dense<0.000000e+00> : vector<128x16xf32>
    %52 = tpu.matmul %50, %51, %cst_18 {dimension_numbers = #tpu.dot_dimension_numbers<[1], [0], [0], [1], [0, 0, 1, 1], [], []>} : vector<128x16xbf16>, vector<16x16xbf16>, vector<128x16xf32> -> vector<128x16xf32>
    %c2 = arith.constant 2 : index
    %c0_19 = arith.constant 0 : index
    %53 = vector.load %arg3[%c2, %c0_19] : memref<16x128xf32, #tpu.memory_space<vmem>>, vector<1x16xf32>
    %54 = vector.broadcast %53 : vector<1x16xf32> to vector<128x16xf32>
    %55 = arith.addf %52, %54 : vector<128x16xf32>
    %56 = vector.extract_strided_slice %0 {offsets = [0, 0], sizes = [128, 1], strides = [1, 1]} : vector<128x8xf32> to vector<128x1xf32>
    %57 = vector.broadcast %56 : vector<128x1xf32> to vector<128x16xf32>
    %58 = arith.mulf %55, %57 : vector<128x16xf32>
    %59 = vector.extract_strided_slice %0 {offsets = [0, 1], sizes = [128, 1], strides = [1, 1]} : vector<128x8xf32> to vector<128x1xf32>
    %60 = vector.broadcast %59 : vector<128x1xf32> to vector<128x16xf32>
    %61 = arith.addf %58, %60 : vector<128x16xf32>
    %cst_20 = arith.constant 0.000000e+00 : f32
    %62 = vector.broadcast %cst_20 : f32 to vector<128x16xf32>
    %63 = arith.maximumf %61, %62 : vector<128x16xf32>
    %64 = arith.truncf %63 : vector<128x16xf32> to vector<128x16xbf16>
    %c136 = arith.constant 136 : index
    %c0_21 = arith.constant 0 : index
    %65 = vector.load %arg2[%c136, %c0_21] : memref<440x128xbf16, #tpu.memory_space<vmem>>, vector<16x16xbf16>
    %cst_22 = arith.constant dense<0.000000e+00> : vector<128x16xf32>
    %66 = tpu.matmul %64, %65, %cst_22 {dimension_numbers = #tpu.dot_dimension_numbers<[1], [0], [0], [1], [0, 0, 1, 1], [], []>} : vector<128x16xbf16>, vector<16x16xbf16>, vector<128x16xf32> -> vector<128x16xf32>
    %c3 = arith.constant 3 : index
    %c0_23 = arith.constant 0 : index
    %67 = vector.load %arg3[%c3, %c0_23] : memref<16x128xf32, #tpu.memory_space<vmem>>, vector<1x16xf32>
    %68 = vector.broadcast %67 : vector<1x16xf32> to vector<128x16xf32>
    %69 = arith.addf %66, %68 : vector<128x16xf32>
    %70 = vector.extract_strided_slice %69 {offsets = [0, 0], sizes = [64, 16], strides = [1, 1]} : vector<128x16xf32> to vector<64x16xf32>
    %71 = vector.extract_strided_slice %69 {offsets = [64, 0], sizes = [64, 16], strides = [1, 1]} : vector<128x16xf32> to vector<64x16xf32>
    %72 = tpu.concatenate %33, %70, %71 in 1 : vector<64x32xf32>, vector<64x16xf32>, vector<64x16xf32> -> vector<64x64xf32>
    %73 = arith.truncf %72 : vector<64x64xf32> to vector<64x64xbf16>
    %c152 = arith.constant 152 : index
    %c0_24 = arith.constant 0 : index
    %74 = vector.load %arg2[%c152, %c0_24] : memref<440x128xbf16, #tpu.memory_space<vmem>>, vector<64x32xbf16>
    %cst_25 = arith.constant dense<0.000000e+00> : vector<64x32xf32>
    %75 = tpu.matmul %73, %74, %cst_25 {dimension_numbers = #tpu.dot_dimension_numbers<[1], [0], [0], [1], [0, 0, 1, 1], [], []>} : vector<64x64xbf16>, vector<64x32xbf16>, vector<64x32xf32> -> vector<64x32xf32>
    %c4 = arith.constant 4 : index
    %c0_26 = arith.constant 0 : index
    %76 = vector.load %arg3[%c4, %c0_26] : memref<16x128xf32, #tpu.memory_space<vmem>>, vector<1x32xf32>
    %77 = vector.broadcast %76 : vector<1x32xf32> to vector<64x32xf32>
    %78 = arith.addf %75, %77 : vector<64x32xf32>
    %79 = vector.extract_strided_slice %0 {offsets = [0, 2], sizes = [64, 1], strides = [1, 1]} : vector<128x8xf32> to vector<64x1xf32>
    %80 = vector.broadcast %79 : vector<64x1xf32> to vector<64x32xf32>
    %81 = arith.mulf %78, %80 : vector<64x32xf32>
    %82 = vector.extract_strided_slice %0 {offsets = [0, 3], sizes = [64, 1], strides = [1, 1]} : vector<128x8xf32> to vector<64x1xf32>
    %83 = vector.broadcast %82 : vector<64x1xf32> to vector<64x32xf32>
    %84 = arith.addf %81, %83 : vector<64x32xf32>
    %cst_27 = arith.constant 0.000000e+00 : f32
    %85 = vector.broadcast %cst_27 : f32 to vector<64x32xf32>
    %86 = arith.maximumf %84, %85 : vector<64x32xf32>
    %c216 = arith.constant 216 : index
    %c0_28 = arith.constant 0 : index
    %87 = vector.load %arg2[%c216, %c0_28] : memref<440x128xbf16, #tpu.memory_space<vmem>>, vector<32x128xbf16>
    %c248 = arith.constant 248 : index
    %c0_29 = arith.constant 0 : index
    %88 = vector.load %arg2[%c248, %c0_29] : memref<440x128xbf16, #tpu.memory_space<vmem>>, vector<32x128xbf16>
    %c280 = arith.constant 280 : index
    %c0_30 = arith.constant 0 : index
    %89 = vector.load %arg2[%c280, %c0_30] : memref<440x128xbf16, #tpu.memory_space<vmem>>, vector<64x128xbf16>
    %c5 = arith.constant 5 : index
    %c0_31 = arith.constant 0 : index
    %90 = vector.load %arg3[%c5, %c0_31] : memref<16x128xf32, #tpu.memory_space<vmem>>, vector<1x128xf32>
    %c6 = arith.constant 6 : index
    %c0_32 = arith.constant 0 : index
    %91 = vector.load %arg3[%c6, %c0_32] : memref<16x128xf32, #tpu.memory_space<vmem>>, vector<1x128xf32>
    %92 = arith.truncf %86 : vector<64x32xf32> to vector<64x32xbf16>
    %cst_33 = arith.constant dense<0.000000e+00> : vector<64x128xf32>
    %93 = tpu.matmul %92, %87, %cst_33 {dimension_numbers = #tpu.dot_dimension_numbers<[1], [0], [0], [1], [0, 0, 1, 1], [], []>} : vector<64x32xbf16>, vector<32x128xbf16>, vector<64x128xf32> -> vector<64x128xf32>
    %94 = vector.broadcast %90 : vector<1x128xf32> to vector<64x128xf32>
    %95 = arith.addf %93, %94 : vector<64x128xf32>
    %cst_34 = arith.constant 0.000000e+00 : f32
    %96 = vector.broadcast %cst_34 : f32 to vector<8x32xf32>
    %97 = vector.extract_strided_slice %95 {offsets = [0, 0], sizes = [8, 128], strides = [1, 1]} : vector<64x128xf32> to vector<8x128xf32>
    %98 = arith.truncf %96 : vector<8x32xf32> to vector<8x32xbf16>
    %cst_35 = arith.constant dense<0.000000e+00> : vector<8x128xf32>
    %99 = tpu.matmul %98, %88, %cst_35 {dimension_numbers = #tpu.dot_dimension_numbers<[1], [0], [0], [1], [0, 0, 1, 1], [], []>} : vector<8x32xbf16>, vector<32x128xbf16>, vector<8x128xf32> -> vector<8x128xf32>
    %100 = arith.addf %97, %99 : vector<8x128xf32>
    %101 = arith.negf %100 : vector<8x128xf32>
    %102 = math.exp %101 : vector<8x128xf32>
    %cst_36 = arith.constant 1.000000e+00 : f32
    %103 = vector.broadcast %cst_36 : f32 to vector<8x128xf32>
    %104 = arith.addf %103, %102 : vector<8x128xf32>
    %105 = arith.divf %103, %104 : vector<8x128xf32>
    %106 = vector.extract_strided_slice %105 {offsets = [0, 32], sizes = [8, 32], strides = [1, 1]} : vector<8x128xf32> to vector<8x32xf32>
    %107 = arith.mulf %106, %96 : vector<8x32xf32>
    %108 = vector.extract_strided_slice %105 {offsets = [0, 0], sizes = [8, 32], strides = [1, 1]} : vector<8x128xf32> to vector<8x32xf32>
    %109 = vector.extract_strided_slice %100 {offsets = [0, 64], sizes = [8, 32], strides = [1, 1]} : vector<8x128xf32> to vector<8x32xf32>
    %110 = math.tanh %109 : vector<8x32xf32>
    %111 = arith.mulf %108, %110 : vector<8x32xf32>
    %112 = arith.addf %107, %111 : vector<8x32xf32>
    %113 = vector.extract_strided_slice %105 {offsets = [0, 96], sizes = [8, 32], strides = [1, 1]} : vector<8x128xf32> to vector<8x32xf32>
    %114 = math.tanh %112 : vector<8x32xf32>
    %115 = arith.mulf %113, %114 : vector<8x32xf32>
    %116 = tpu.concatenate %115, %96 in 1 : vector<8x32xf32>, vector<8x32xf32> -> vector<8x64xf32>
    %117 = arith.truncf %116 : vector<8x64xf32> to vector<8x64xbf16>
    %cst_37 = arith.constant dense<0.000000e+00> : vector<8x128xf32>
    %118 = tpu.matmul %117, %89, %cst_37 {dimension_numbers = #tpu.dot_dimension_numbers<[1], [0], [0], [1], [0, 0, 1, 1], [], []>} : vector<8x64xbf16>, vector<64x128xbf16>, vector<8x128xf32> -> vector<8x128xf32>
    %119 = vector.broadcast %91 : vector<1x128xf32> to vector<8x128xf32>
    %120 = arith.addf %118, %119 : vector<8x128xf32>
    %121 = arith.negf %120 : vector<8x128xf32>
    %122 = math.exp %121 : vector<8x128xf32>
    %cst_38 = arith.constant 1.000000e+00 : f32
    %123 = vector.broadcast %cst_38 : f32 to vector<8x128xf32>
    %124 = arith.addf %123, %122 : vector<8x128xf32>
    %125 = arith.divf %123, %124 : vector<8x128xf32>
    %126 = vector.extract_strided_slice %125 {offsets = [0, 32], sizes = [8, 32], strides = [1, 1]} : vector<8x128xf32> to vector<8x32xf32>
    %127 = arith.mulf %126, %96 : vector<8x32xf32>
    %128 = vector.extract_strided_slice %125 {offsets = [0, 0], sizes = [8, 32], strides = [1, 1]} : vector<8x128xf32> to vector<8x32xf32>
    %129 = vector.extract_strided_slice %120 {offsets = [0, 64], sizes = [8, 32], strides = [1, 1]} : vector<8x128xf32> to vector<8x32xf32>
    %130 = math.tanh %129 : vector<8x32xf32>
    %131 = arith.mulf %128, %130 : vector<8x32xf32>
    %132 = arith.addf %127, %131 : vector<8x32xf32>
    %133 = vector.extract_strided_slice %125 {offsets = [0, 96], sizes = [8, 32], strides = [1, 1]} : vector<8x128xf32> to vector<8x32xf32>
    %134 = math.tanh %132 : vector<8x32xf32>
    %135 = arith.mulf %133, %134 : vector<8x32xf32>
    %136 = vector.extract_strided_slice %95 {offsets = [8, 0], sizes = [8, 128], strides = [1, 1]} : vector<64x128xf32> to vector<8x128xf32>
    %137 = arith.truncf %115 : vector<8x32xf32> to vector<8x32xbf16>
    %cst_39 = arith.constant dense<0.000000e+00> : vector<8x128xf32>
    %138 = tpu.matmul %137, %88, %cst_39 {dimension_numbers = #tpu.dot_dimension_numbers<[1], [0], [0], [1], [0, 0, 1, 1], [], []>} : vector<8x32xbf16>, vector<32x128xbf16>, vector<8x128xf32> -> vector<8x128xf32>
    %139 = arith.addf %136, %138 : vector<8x128xf32>
    %140 = arith.negf %139 : vector<8x128xf32>
    %141 = math.exp %140 : vector<8x128xf32>
    %cst_40 = arith.constant 1.000000e+00 : f32
    %142 = vector.broadcast %cst_40 : f32 to vector<8x128xf32>
    %143 = arith.addf %142, %141 : vector<8x128xf32>
    %144 = arith.divf %142, %143 : vector<8x128xf32>
    %145 = vector.extract_strided_slice %144 {offsets = [0, 32], sizes = [8, 32], strides = [1, 1]} : vector<8x128xf32> to vector<8x32xf32>
    %146 = arith.mulf %145, %112 : vector<8x32xf32>
    %147 = vector.extract_strided_slice %144 {offsets = [0, 0], sizes = [8, 32], strides = [1, 1]} : vector<8x128xf32> to vector<8x32xf32>
    %148 = vector.extract_strided_slice %139 {offsets = [0, 64], sizes = [8, 32], strides = [1, 1]} : vector<8x128xf32> to vector<8x32xf32>
    %149 = math.tanh %148 : vector<8x32xf32>
    %150 = arith.mulf %147, %149 : vector<8x32xf32>
    %151 = arith.addf %146, %150 : vector<8x32xf32>
    %152 = vector.extract_strided_slice %144 {offsets = [0, 96], sizes = [8, 32], strides = [1, 1]} : vector<8x128xf32> to vector<8x32xf32>
    %153 = math.tanh %151 : vector<8x32xf32>
    %154 = arith.mulf %152, %153 : vector<8x32xf32>
    %155 = tpu.concatenate %154, %135 in 1 : vector<8x32xf32>, vector<8x32xf32> -> vector<8x64xf32>
    %156 = arith.truncf %155 : vector<8x64xf32> to vector<8x64xbf16>
    %cst_41 = arith.constant dense<0.000000e+00> : vector<8x128xf32>
    %157 = tpu.matmul %156, %89, %cst_41 {dimension_numbers = #tpu.dot_dimension_numbers<[1], [0], [0], [1], [0, 0, 1, 1], [], []>} : vector<8x64xbf16>, vector<64x128xbf16>, vector<8x128xf32> -> vector<8x128xf32>
    %158 = vector.broadcast %91 : vector<1x128xf32> to vector<8x128xf32>
    %159 = arith.addf %157, %158 : vector<8x128xf32>
    %160 = arith.negf %159 : vector<8x128xf32>
    %161 = math.exp %160 : vector<8x128xf32>
    %cst_42 = arith.constant 1.000000e+00 : f32
    %162 = vector.broadcast %cst_42 : f32 to vector<8x128xf32>
    %163 = arith.addf %162, %161 : vector<8x128xf32>
    %164 = arith.divf %162, %163 : vector<8x128xf32>
    %165 = vector.extract_strided_slice %164 {offsets = [0, 32], sizes = [8, 32], strides = [1, 1]} : vector<8x128xf32> to vector<8x32xf32>
    %166 = arith.mulf %165, %132 : vector<8x32xf32>
    %167 = vector.extract_strided_slice %164 {offsets = [0, 0], sizes = [8, 32], strides = [1, 1]} : vector<8x128xf32> to vector<8x32xf32>
    %168 = vector.extract_strided_slice %159 {offsets = [0, 64], sizes = [8, 32], strides = [1, 1]} : vector<8x128xf32> to vector<8x32xf32>
    %169 = math.tanh %168 : vector<8x32xf32>
    %170 = arith.mulf %167, %169 : vector<8x32xf32>
    %171 = arith.addf %166, %170 : vector<8x32xf32>
    %172 = vector.extract_strided_slice %164 {offsets = [0, 96], sizes = [8, 32], strides = [1, 1]} : vector<8x128xf32> to vector<8x32xf32>
    %173 = math.tanh %171 : vector<8x32xf32>
    %174 = arith.mulf %172, %173 : vector<8x32xf32>
    %175 = vector.extract_strided_slice %95 {offsets = [16, 0], sizes = [8, 128], strides = [1, 1]} : vector<64x128xf32> to vector<8x128xf32>
    %176 = arith.truncf %154 : vector<8x32xf32> to vector<8x32xbf16>
    %cst_43 = arith.constant dense<0.000000e+00> : vector<8x128xf32>
    %177 = tpu.matmul %176, %88, %cst_43 {dimension_numbers = #tpu.dot_dimension_numbers<[1], [0], [0], [1], [0, 0, 1, 1], [], []>} : vector<8x32xbf16>, vector<32x128xbf16>, vector<8x128xf32> -> vector<8x128xf32>
    %178 = arith.addf %175, %177 : vector<8x128xf32>
    %179 = arith.negf %178 : vector<8x128xf32>
    %180 = math.exp %179 : vector<8x128xf32>
    %cst_44 = arith.constant 1.000000e+00 : f32
    %181 = vector.broadcast %cst_44 : f32 to vector<8x128xf32>
    %182 = arith.addf %181, %180 : vector<8x128xf32>
    %183 = arith.divf %181, %182 : vector<8x128xf32>
    %184 = vector.extract_strided_slice %183 {offsets = [0, 32], sizes = [8, 32], strides = [1, 1]} : vector<8x128xf32> to vector<8x32xf32>
    %185 = arith.mulf %184, %151 : vector<8x32xf32>
    %186 = vector.extract_strided_slice %183 {offsets = [0, 0], sizes = [8, 32], strides = [1, 1]} : vector<8x128xf32> to vector<8x32xf32>
    %187 = vector.extract_strided_slice %178 {offsets = [0, 64], sizes = [8, 32], strides = [1, 1]} : vector<8x128xf32> to vector<8x32xf32>
    %188 = math.tanh %187 : vector<8x32xf32>
    %189 = arith.mulf %186, %188 : vector<8x32xf32>
    %190 = arith.addf %185, %189 : vector<8x32xf32>
    %191 = vector.extract_strided_slice %183 {offsets = [0, 96], sizes = [8, 32], strides = [1, 1]} : vector<8x128xf32> to vector<8x32xf32>
    %192 = math.tanh %190 : vector<8x32xf32>
    %193 = arith.mulf %191, %192 : vector<8x32xf32>
    %194 = tpu.concatenate %193, %174 in 1 : vector<8x32xf32>, vector<8x32xf32> -> vector<8x64xf32>
    %195 = arith.truncf %194 : vector<8x64xf32> to vector<8x64xbf16>
    %cst_45 = arith.constant dense<0.000000e+00> : vector<8x128xf32>
    %196 = tpu.matmul %195, %89, %cst_45 {dimension_numbers = #tpu.dot_dimension_numbers<[1], [0], [0], [1], [0, 0, 1, 1], [], []>} : vector<8x64xbf16>, vector<64x128xbf16>, vector<8x128xf32> -> vector<8x128xf32>
    %197 = vector.broadcast %91 : vector<1x128xf32> to vector<8x128xf32>
    %198 = arith.addf %196, %197 : vector<8x128xf32>
    %199 = arith.negf %198 : vector<8x128xf32>
    %200 = math.exp %199 : vector<8x128xf32>
    %cst_46 = arith.constant 1.000000e+00 : f32
    %201 = vector.broadcast %cst_46 : f32 to vector<8x128xf32>
    %202 = arith.addf %201, %200 : vector<8x128xf32>
    %203 = arith.divf %201, %202 : vector<8x128xf32>
    %204 = vector.extract_strided_slice %203 {offsets = [0, 32], sizes = [8, 32], strides = [1, 1]} : vector<8x128xf32> to vector<8x32xf32>
    %205 = arith.mulf %204, %171 : vector<8x32xf32>
    %206 = vector.extract_strided_slice %203 {offsets = [0, 0], sizes = [8, 32], strides = [1, 1]} : vector<8x128xf32> to vector<8x32xf32>
    %207 = vector.extract_strided_slice %198 {offsets = [0, 64], sizes = [8, 32], strides = [1, 1]} : vector<8x128xf32> to vector<8x32xf32>
    %208 = math.tanh %207 : vector<8x32xf32>
    %209 = arith.mulf %206, %208 : vector<8x32xf32>
    %210 = arith.addf %205, %209 : vector<8x32xf32>
    %211 = vector.extract_strided_slice %203 {offsets = [0, 96], sizes = [8, 32], strides = [1, 1]} : vector<8x128xf32> to vector<8x32xf32>
    %212 = math.tanh %210 : vector<8x32xf32>
    %213 = arith.mulf %211, %212 : vector<8x32xf32>
    %214 = vector.extract_strided_slice %95 {offsets = [24, 0], sizes = [8, 128], strides = [1, 1]} : vector<64x128xf32> to vector<8x128xf32>
    %215 = arith.truncf %193 : vector<8x32xf32> to vector<8x32xbf16>
    %cst_47 = arith.constant dense<0.000000e+00> : vector<8x128xf32>
    %216 = tpu.matmul %215, %88, %cst_47 {dimension_numbers = #tpu.dot_dimension_numbers<[1], [0], [0], [1], [0, 0, 1, 1], [], []>} : vector<8x32xbf16>, vector<32x128xbf16>, vector<8x128xf32> -> vector<8x128xf32>
    %217 = arith.addf %214, %216 : vector<8x128xf32>
    %218 = arith.negf %217 : vector<8x128xf32>
    %219 = math.exp %218 : vector<8x128xf32>
    %cst_48 = arith.constant 1.000000e+00 : f32
    %220 = vector.broadcast %cst_48 : f32 to vector<8x128xf32>
    %221 = arith.addf %220, %219 : vector<8x128xf32>
    %222 = arith.divf %220, %221 : vector<8x128xf32>
    %223 = vector.extract_strided_slice %222 {offsets = [0, 32], sizes = [8, 32], strides = [1, 1]} : vector<8x128xf32> to vector<8x32xf32>
    %224 = arith.mulf %223, %190 : vector<8x32xf32>
    %225 = vector.extract_strided_slice %222 {offsets = [0, 0], sizes = [8, 32], strides = [1, 1]} : vector<8x128xf32> to vector<8x32xf32>
    %226 = vector.extract_strided_slice %217 {offsets = [0, 64], sizes = [8, 32], strides = [1, 1]} : vector<8x128xf32> to vector<8x32xf32>
    %227 = math.tanh %226 : vector<8x32xf32>
    %228 = arith.mulf %225, %227 : vector<8x32xf32>
    %229 = arith.addf %224, %228 : vector<8x32xf32>
    %230 = vector.extract_strided_slice %222 {offsets = [0, 96], sizes = [8, 32], strides = [1, 1]} : vector<8x128xf32> to vector<8x32xf32>
    %231 = math.tanh %229 : vector<8x32xf32>
    %232 = arith.mulf %230, %231 : vector<8x32xf32>
    %233 = tpu.concatenate %232, %213 in 1 : vector<8x32xf32>, vector<8x32xf32> -> vector<8x64xf32>
    %234 = arith.truncf %233 : vector<8x64xf32> to vector<8x64xbf16>
    %cst_49 = arith.constant dense<0.000000e+00> : vector<8x128xf32>
    %235 = tpu.matmul %234, %89, %cst_49 {dimension_numbers = #tpu.dot_dimension_numbers<[1], [0], [0], [1], [0, 0, 1, 1], [], []>} : vector<8x64xbf16>, vector<64x128xbf16>, vector<8x128xf32> -> vector<8x128xf32>
    %236 = vector.broadcast %91 : vector<1x128xf32> to vector<8x128xf32>
    %237 = arith.addf %235, %236 : vector<8x128xf32>
    %238 = arith.negf %237 : vector<8x128xf32>
    %239 = math.exp %238 : vector<8x128xf32>
    %cst_50 = arith.constant 1.000000e+00 : f32
    %240 = vector.broadcast %cst_50 : f32 to vector<8x128xf32>
    %241 = arith.addf %240, %239 : vector<8x128xf32>
    %242 = arith.divf %240, %241 : vector<8x128xf32>
    %243 = vector.extract_strided_slice %242 {offsets = [0, 32], sizes = [8, 32], strides = [1, 1]} : vector<8x128xf32> to vector<8x32xf32>
    %244 = arith.mulf %243, %210 : vector<8x32xf32>
    %245 = vector.extract_strided_slice %242 {offsets = [0, 0], sizes = [8, 32], strides = [1, 1]} : vector<8x128xf32> to vector<8x32xf32>
    %246 = vector.extract_strided_slice %237 {offsets = [0, 64], sizes = [8, 32], strides = [1, 1]} : vector<8x128xf32> to vector<8x32xf32>
    %247 = math.tanh %246 : vector<8x32xf32>
    %248 = arith.mulf %245, %247 : vector<8x32xf32>
    %249 = arith.addf %244, %248 : vector<8x32xf32>
    %250 = vector.extract_strided_slice %242 {offsets = [0, 96], sizes = [8, 32], strides = [1, 1]} : vector<8x128xf32> to vector<8x32xf32>
    %251 = math.tanh %249 : vector<8x32xf32>
    %252 = arith.mulf %250, %251 : vector<8x32xf32>
    %253 = vector.extract_strided_slice %95 {offsets = [32, 0], sizes = [8, 128], strides = [1, 1]} : vector<64x128xf32> to vector<8x128xf32>
    %254 = arith.truncf %232 : vector<8x32xf32> to vector<8x32xbf16>
    %cst_51 = arith.constant dense<0.000000e+00> : vector<8x128xf32>
    %255 = tpu.matmul %254, %88, %cst_51 {dimension_numbers = #tpu.dot_dimension_numbers<[1], [0], [0], [1], [0, 0, 1, 1], [], []>} : vector<8x32xbf16>, vector<32x128xbf16>, vector<8x128xf32> -> vector<8x128xf32>
    %256 = arith.addf %253, %255 : vector<8x128xf32>
    %257 = arith.negf %256 : vector<8x128xf32>
    %258 = math.exp %257 : vector<8x128xf32>
    %cst_52 = arith.constant 1.000000e+00 : f32
    %259 = vector.broadcast %cst_52 : f32 to vector<8x128xf32>
    %260 = arith.addf %259, %258 : vector<8x128xf32>
    %261 = arith.divf %259, %260 : vector<8x128xf32>
    %262 = vector.extract_strided_slice %261 {offsets = [0, 32], sizes = [8, 32], strides = [1, 1]} : vector<8x128xf32> to vector<8x32xf32>
    %263 = arith.mulf %262, %229 : vector<8x32xf32>
    %264 = vector.extract_strided_slice %261 {offsets = [0, 0], sizes = [8, 32], strides = [1, 1]} : vector<8x128xf32> to vector<8x32xf32>
    %265 = vector.extract_strided_slice %256 {offsets = [0, 64], sizes = [8, 32], strides = [1, 1]} : vector<8x128xf32> to vector<8x32xf32>
    %266 = math.tanh %265 : vector<8x32xf32>
    %267 = arith.mulf %264, %266 : vector<8x32xf32>
    %268 = arith.addf %263, %267 : vector<8x32xf32>
    %269 = vector.extract_strided_slice %261 {offsets = [0, 96], sizes = [8, 32], strides = [1, 1]} : vector<8x128xf32> to vector<8x32xf32>
    %270 = math.tanh %268 : vector<8x32xf32>
    %271 = arith.mulf %269, %270 : vector<8x32xf32>
    %272 = tpu.concatenate %271, %252 in 1 : vector<8x32xf32>, vector<8x32xf32> -> vector<8x64xf32>
    %273 = arith.truncf %272 : vector<8x64xf32> to vector<8x64xbf16>
    %cst_53 = arith.constant dense<0.000000e+00> : vector<8x128xf32>
    %274 = tpu.matmul %273, %89, %cst_53 {dimension_numbers = #tpu.dot_dimension_numbers<[1], [0], [0], [1], [0, 0, 1, 1], [], []>} : vector<8x64xbf16>, vector<64x128xbf16>, vector<8x128xf32> -> vector<8x128xf32>
    %275 = vector.broadcast %91 : vector<1x128xf32> to vector<8x128xf32>
    %276 = arith.addf %274, %275 : vector<8x128xf32>
    %277 = arith.negf %276 : vector<8x128xf32>
    %278 = math.exp %277 : vector<8x128xf32>
    %cst_54 = arith.constant 1.000000e+00 : f32
    %279 = vector.broadcast %cst_54 : f32 to vector<8x128xf32>
    %280 = arith.addf %279, %278 : vector<8x128xf32>
    %281 = arith.divf %279, %280 : vector<8x128xf32>
    %282 = vector.extract_strided_slice %281 {offsets = [0, 32], sizes = [8, 32], strides = [1, 1]} : vector<8x128xf32> to vector<8x32xf32>
    %283 = arith.mulf %282, %249 : vector<8x32xf32>
    %284 = vector.extract_strided_slice %281 {offsets = [0, 0], sizes = [8, 32], strides = [1, 1]} : vector<8x128xf32> to vector<8x32xf32>
    %285 = vector.extract_strided_slice %276 {offsets = [0, 64], sizes = [8, 32], strides = [1, 1]} : vector<8x128xf32> to vector<8x32xf32>
    %286 = math.tanh %285 : vector<8x32xf32>
    %287 = arith.mulf %284, %286 : vector<8x32xf32>
    %288 = arith.addf %283, %287 : vector<8x32xf32>
    %289 = vector.extract_strided_slice %281 {offsets = [0, 96], sizes = [8, 32], strides = [1, 1]} : vector<8x128xf32> to vector<8x32xf32>
    %290 = math.tanh %288 : vector<8x32xf32>
    %291 = arith.mulf %289, %290 : vector<8x32xf32>
    %292 = vector.extract_strided_slice %95 {offsets = [40, 0], sizes = [8, 128], strides = [1, 1]} : vector<64x128xf32> to vector<8x128xf32>
    %293 = arith.truncf %271 : vector<8x32xf32> to vector<8x32xbf16>
    %cst_55 = arith.constant dense<0.000000e+00> : vector<8x128xf32>
    %294 = tpu.matmul %293, %88, %cst_55 {dimension_numbers = #tpu.dot_dimension_numbers<[1], [0], [0], [1], [0, 0, 1, 1], [], []>} : vector<8x32xbf16>, vector<32x128xbf16>, vector<8x128xf32> -> vector<8x128xf32>
    %295 = arith.addf %292, %294 : vector<8x128xf32>
    %296 = arith.negf %295 : vector<8x128xf32>
    %297 = math.exp %296 : vector<8x128xf32>
    %cst_56 = arith.constant 1.000000e+00 : f32
    %298 = vector.broadcast %cst_56 : f32 to vector<8x128xf32>
    %299 = arith.addf %298, %297 : vector<8x128xf32>
    %300 = arith.divf %298, %299 : vector<8x128xf32>
    %301 = vector.extract_strided_slice %300 {offsets = [0, 32], sizes = [8, 32], strides = [1, 1]} : vector<8x128xf32> to vector<8x32xf32>
    %302 = arith.mulf %301, %268 : vector<8x32xf32>
    %303 = vector.extract_strided_slice %300 {offsets = [0, 0], sizes = [8, 32], strides = [1, 1]} : vector<8x128xf32> to vector<8x32xf32>
    %304 = vector.extract_strided_slice %295 {offsets = [0, 64], sizes = [8, 32], strides = [1, 1]} : vector<8x128xf32> to vector<8x32xf32>
    %305 = math.tanh %304 : vector<8x32xf32>
    %306 = arith.mulf %303, %305 : vector<8x32xf32>
    %307 = arith.addf %302, %306 : vector<8x32xf32>
    %308 = vector.extract_strided_slice %300 {offsets = [0, 96], sizes = [8, 32], strides = [1, 1]} : vector<8x128xf32> to vector<8x32xf32>
    %309 = math.tanh %307 : vector<8x32xf32>
    %310 = arith.mulf %308, %309 : vector<8x32xf32>
    %311 = tpu.concatenate %310, %291 in 1 : vector<8x32xf32>, vector<8x32xf32> -> vector<8x64xf32>
    %312 = arith.truncf %311 : vector<8x64xf32> to vector<8x64xbf16>
    %cst_57 = arith.constant dense<0.000000e+00> : vector<8x128xf32>
    %313 = tpu.matmul %312, %89, %cst_57 {dimension_numbers = #tpu.dot_dimension_numbers<[1], [0], [0], [1], [0, 0, 1, 1], [], []>} : vector<8x64xbf16>, vector<64x128xbf16>, vector<8x128xf32> -> vector<8x128xf32>
    %314 = vector.broadcast %91 : vector<1x128xf32> to vector<8x128xf32>
    %315 = arith.addf %313, %314 : vector<8x128xf32>
    %316 = arith.negf %315 : vector<8x128xf32>
    %317 = math.exp %316 : vector<8x128xf32>
    %cst_58 = arith.constant 1.000000e+00 : f32
    %318 = vector.broadcast %cst_58 : f32 to vector<8x128xf32>
    %319 = arith.addf %318, %317 : vector<8x128xf32>
    %320 = arith.divf %318, %319 : vector<8x128xf32>
    %321 = vector.extract_strided_slice %320 {offsets = [0, 32], sizes = [8, 32], strides = [1, 1]} : vector<8x128xf32> to vector<8x32xf32>
    %322 = arith.mulf %321, %288 : vector<8x32xf32>
    %323 = vector.extract_strided_slice %320 {offsets = [0, 0], sizes = [8, 32], strides = [1, 1]} : vector<8x128xf32> to vector<8x32xf32>
    %324 = vector.extract_strided_slice %315 {offsets = [0, 64], sizes = [8, 32], strides = [1, 1]} : vector<8x128xf32> to vector<8x32xf32>
    %325 = math.tanh %324 : vector<8x32xf32>
    %326 = arith.mulf %323, %325 : vector<8x32xf32>
    %327 = arith.addf %322, %326 : vector<8x32xf32>
    %328 = vector.extract_strided_slice %320 {offsets = [0, 96], sizes = [8, 32], strides = [1, 1]} : vector<8x128xf32> to vector<8x32xf32>
    %329 = math.tanh %327 : vector<8x32xf32>
    %330 = arith.mulf %328, %329 : vector<8x32xf32>
    %331 = vector.extract_strided_slice %95 {offsets = [48, 0], sizes = [8, 128], strides = [1, 1]} : vector<64x128xf32> to vector<8x128xf32>
    %332 = arith.truncf %310 : vector<8x32xf32> to vector<8x32xbf16>
    %cst_59 = arith.constant dense<0.000000e+00> : vector<8x128xf32>
    %333 = tpu.matmul %332, %88, %cst_59 {dimension_numbers = #tpu.dot_dimension_numbers<[1], [0], [0], [1], [0, 0, 1, 1], [], []>} : vector<8x32xbf16>, vector<32x128xbf16>, vector<8x128xf32> -> vector<8x128xf32>
    %334 = arith.addf %331, %333 : vector<8x128xf32>
    %335 = arith.negf %334 : vector<8x128xf32>
    %336 = math.exp %335 : vector<8x128xf32>
    %cst_60 = arith.constant 1.000000e+00 : f32
    %337 = vector.broadcast %cst_60 : f32 to vector<8x128xf32>
    %338 = arith.addf %337, %336 : vector<8x128xf32>
    %339 = arith.divf %337, %338 : vector<8x128xf32>
    %340 = vector.extract_strided_slice %339 {offsets = [0, 32], sizes = [8, 32], strides = [1, 1]} : vector<8x128xf32> to vector<8x32xf32>
    %341 = arith.mulf %340, %307 : vector<8x32xf32>
    %342 = vector.extract_strided_slice %339 {offsets = [0, 0], sizes = [8, 32], strides = [1, 1]} : vector<8x128xf32> to vector<8x32xf32>
    %343 = vector.extract_strided_slice %334 {offsets = [0, 64], sizes = [8, 32], strides = [1, 1]} : vector<8x128xf32> to vector<8x32xf32>
    %344 = math.tanh %343 : vector<8x32xf32>
    %345 = arith.mulf %342, %344 : vector<8x32xf32>
    %346 = arith.addf %341, %345 : vector<8x32xf32>
    %347 = vector.extract_strided_slice %339 {offsets = [0, 96], sizes = [8, 32], strides = [1, 1]} : vector<8x128xf32> to vector<8x32xf32>
    %348 = math.tanh %346 : vector<8x32xf32>
    %349 = arith.mulf %347, %348 : vector<8x32xf32>
    %350 = tpu.concatenate %349, %330 in 1 : vector<8x32xf32>, vector<8x32xf32> -> vector<8x64xf32>
    %351 = arith.truncf %350 : vector<8x64xf32> to vector<8x64xbf16>
    %cst_61 = arith.constant dense<0.000000e+00> : vector<8x128xf32>
    %352 = tpu.matmul %351, %89, %cst_61 {dimension_numbers = #tpu.dot_dimension_numbers<[1], [0], [0], [1], [0, 0, 1, 1], [], []>} : vector<8x64xbf16>, vector<64x128xbf16>, vector<8x128xf32> -> vector<8x128xf32>
    %353 = vector.broadcast %91 : vector<1x128xf32> to vector<8x128xf32>
    %354 = arith.addf %352, %353 : vector<8x128xf32>
    %355 = arith.negf %354 : vector<8x128xf32>
    %356 = math.exp %355 : vector<8x128xf32>
    %cst_62 = arith.constant 1.000000e+00 : f32
    %357 = vector.broadcast %cst_62 : f32 to vector<8x128xf32>
    %358 = arith.addf %357, %356 : vector<8x128xf32>
    %359 = arith.divf %357, %358 : vector<8x128xf32>
    %360 = vector.extract_strided_slice %359 {offsets = [0, 32], sizes = [8, 32], strides = [1, 1]} : vector<8x128xf32> to vector<8x32xf32>
    %361 = arith.mulf %360, %327 : vector<8x32xf32>
    %362 = vector.extract_strided_slice %359 {offsets = [0, 0], sizes = [8, 32], strides = [1, 1]} : vector<8x128xf32> to vector<8x32xf32>
    %363 = vector.extract_strided_slice %354 {offsets = [0, 64], sizes = [8, 32], strides = [1, 1]} : vector<8x128xf32> to vector<8x32xf32>
    %364 = math.tanh %363 : vector<8x32xf32>
    %365 = arith.mulf %362, %364 : vector<8x32xf32>
    %366 = arith.addf %361, %365 : vector<8x32xf32>
    %367 = vector.extract_strided_slice %359 {offsets = [0, 96], sizes = [8, 32], strides = [1, 1]} : vector<8x128xf32> to vector<8x32xf32>
    %368 = math.tanh %366 : vector<8x32xf32>
    %369 = arith.mulf %367, %368 : vector<8x32xf32>
    %370 = vector.extract_strided_slice %95 {offsets = [56, 0], sizes = [8, 128], strides = [1, 1]} : vector<64x128xf32> to vector<8x128xf32>
    %371 = arith.truncf %349 : vector<8x32xf32> to vector<8x32xbf16>
    %cst_63 = arith.constant dense<0.000000e+00> : vector<8x128xf32>
    %372 = tpu.matmul %371, %88, %cst_63 {dimension_numbers = #tpu.dot_dimension_numbers<[1], [0], [0], [1], [0, 0, 1, 1], [], []>} : vector<8x32xbf16>, vector<32x128xbf16>, vector<8x128xf32> -> vector<8x128xf32>
    %373 = arith.addf %370, %372 : vector<8x128xf32>
    %374 = arith.negf %373 : vector<8x128xf32>
    %375 = math.exp %374 : vector<8x128xf32>
    %cst_64 = arith.constant 1.000000e+00 : f32
    %376 = vector.broadcast %cst_64 : f32 to vector<8x128xf32>
    %377 = arith.addf %376, %375 : vector<8x128xf32>
    %378 = arith.divf %376, %377 : vector<8x128xf32>
    %379 = vector.extract_strided_slice %378 {offsets = [0, 32], sizes = [8, 32], strides = [1, 1]} : vector<8x128xf32> to vector<8x32xf32>
    %380 = arith.mulf %379, %346 : vector<8x32xf32>
    %381 = vector.extract_strided_slice %378 {offsets = [0, 0], sizes = [8, 32], strides = [1, 1]} : vector<8x128xf32> to vector<8x32xf32>
    %382 = vector.extract_strided_slice %373 {offsets = [0, 64], sizes = [8, 32], strides = [1, 1]} : vector<8x128xf32> to vector<8x32xf32>
    %383 = math.tanh %382 : vector<8x32xf32>
    %384 = arith.mulf %381, %383 : vector<8x32xf32>
    %385 = arith.addf %380, %384 : vector<8x32xf32>
    %386 = vector.extract_strided_slice %378 {offsets = [0, 96], sizes = [8, 32], strides = [1, 1]} : vector<8x128xf32> to vector<8x32xf32>
    %387 = math.tanh %385 : vector<8x32xf32>
    %388 = arith.mulf %386, %387 : vector<8x32xf32>
    %389 = tpu.concatenate %388, %369 in 1 : vector<8x32xf32>, vector<8x32xf32> -> vector<8x64xf32>
    %390 = arith.truncf %389 : vector<8x64xf32> to vector<8x64xbf16>
    %cst_65 = arith.constant dense<0.000000e+00> : vector<8x128xf32>
    %391 = tpu.matmul %390, %89, %cst_65 {dimension_numbers = #tpu.dot_dimension_numbers<[1], [0], [0], [1], [0, 0, 1, 1], [], []>} : vector<8x64xbf16>, vector<64x128xbf16>, vector<8x128xf32> -> vector<8x128xf32>
    %392 = vector.broadcast %91 : vector<1x128xf32> to vector<8x128xf32>
    %393 = arith.addf %391, %392 : vector<8x128xf32>
    %394 = arith.negf %393 : vector<8x128xf32>
    %395 = math.exp %394 : vector<8x128xf32>
    %cst_66 = arith.constant 1.000000e+00 : f32
    %396 = vector.broadcast %cst_66 : f32 to vector<8x128xf32>
    %397 = arith.addf %396, %395 : vector<8x128xf32>
    %398 = arith.divf %396, %397 : vector<8x128xf32>
    %399 = vector.extract_strided_slice %398 {offsets = [0, 32], sizes = [8, 32], strides = [1, 1]} : vector<8x128xf32> to vector<8x32xf32>
    %400 = arith.mulf %399, %366 : vector<8x32xf32>
    %401 = vector.extract_strided_slice %398 {offsets = [0, 0], sizes = [8, 32], strides = [1, 1]} : vector<8x128xf32> to vector<8x32xf32>
    %402 = vector.extract_strided_slice %393 {offsets = [0, 64], sizes = [8, 32], strides = [1, 1]} : vector<8x128xf32> to vector<8x32xf32>
    %403 = math.tanh %402 : vector<8x32xf32>
    %404 = arith.mulf %401, %403 : vector<8x32xf32>
    %405 = arith.addf %400, %404 : vector<8x32xf32>
    %406 = vector.extract_strided_slice %398 {offsets = [0, 96], sizes = [8, 32], strides = [1, 1]} : vector<8x128xf32> to vector<8x32xf32>
    %407 = math.tanh %405 : vector<8x32xf32>
    %408 = arith.mulf %406, %407 : vector<8x32xf32>
    %409 = tpu.concatenate %135, %174, %213, %252, %291, %330, %369, %408 in 0 : vector<8x32xf32>, vector<8x32xf32>, vector<8x32xf32>, vector<8x32xf32>, vector<8x32xf32>, vector<8x32xf32>, vector<8x32xf32>, vector<8x32xf32> -> vector<64x32xf32>
    %410 = arith.truncf %409 : vector<64x32xf32> to vector<64x32xbf16>
    %c344 = arith.constant 344 : index
    %c0_67 = arith.constant 0 : index
    %411 = vector.load %arg2[%c344, %c0_67] : memref<440x128xbf16, #tpu.memory_space<vmem>>, vector<32x64xbf16>
    %cst_68 = arith.constant dense<0.000000e+00> : vector<64x64xf32>
    %412 = tpu.matmul %410, %411, %cst_68 {dimension_numbers = #tpu.dot_dimension_numbers<[1], [0], [0], [1], [0, 0, 1, 1], [], []>} : vector<64x32xbf16>, vector<32x64xbf16>, vector<64x64xf32> -> vector<64x64xf32>
    %c7 = arith.constant 7 : index
    %c0_69 = arith.constant 0 : index
    %413 = vector.load %arg3[%c7, %c0_69] : memref<16x128xf32, #tpu.memory_space<vmem>>, vector<1x64xf32>
    %414 = vector.broadcast %413 : vector<1x64xf32> to vector<64x64xf32>
    %415 = arith.addf %412, %414 : vector<64x64xf32>
    %416 = vector.extract_strided_slice %0 {offsets = [0, 4], sizes = [64, 1], strides = [1, 1]} : vector<128x8xf32> to vector<64x1xf32>
    %417 = vector.broadcast %416 : vector<64x1xf32> to vector<64x64xf32>
    %418 = arith.mulf %415, %417 : vector<64x64xf32>
    %419 = vector.extract_strided_slice %0 {offsets = [0, 5], sizes = [64, 1], strides = [1, 1]} : vector<128x8xf32> to vector<64x1xf32>
    %420 = vector.broadcast %419 : vector<64x1xf32> to vector<64x64xf32>
    %421 = arith.addf %418, %420 : vector<64x64xf32>
    %cst_70 = arith.constant 0.000000e+00 : f32
    %422 = vector.broadcast %cst_70 : f32 to vector<64x64xf32>
    %423 = arith.maximumf %421, %422 : vector<64x64xf32>
    %424 = arith.truncf %423 : vector<64x64xf32> to vector<64x64xbf16>
    %c376 = arith.constant 376 : index
    %c0_71 = arith.constant 0 : index
    %425 = vector.load %arg2[%c376, %c0_71] : memref<440x128xbf16, #tpu.memory_space<vmem>>, vector<64x128xbf16>
    %cst_72 = arith.constant dense<0.000000e+00> : vector<64x128xf32>
    %426 = tpu.matmul %424, %425, %cst_72 {dimension_numbers = #tpu.dot_dimension_numbers<[1], [0], [0], [1], [0, 0, 1, 1], [], []>} : vector<64x64xbf16>, vector<64x128xbf16>, vector<64x128xf32> -> vector<64x128xf32>
    %c8 = arith.constant 8 : index
    %c0_73 = arith.constant 0 : index
    %427 = vector.load %arg3[%c8, %c0_73] : memref<16x128xf32, #tpu.memory_space<vmem>>, vector<1x128xf32>
    %428 = vector.broadcast %427 : vector<1x128xf32> to vector<64x128xf32>
    %429 = arith.addf %426, %428 : vector<64x128xf32>
    %cst_74 = arith.constant dense<0xFF800000> : vector<64xf32>
    %430 = vector.multi_reduction <maximumf>, %429, %cst_74 [1] : vector<64x128xf32> to vector<64xf32>
    %431 = vector.shape_cast %430 : vector<64xf32> to vector<64x1xf32>
    %432 = vector.broadcast %431 : vector<64x1xf32> to vector<64x128xf32>
    %433 = arith.subf %429, %432 : vector<64x128xf32>
    %434 = math.exp %433 : vector<64x128xf32>
    %cst_75 = arith.constant dense<0.000000e+00> : vector<64xf32>
    %435 = vector.multi_reduction <add>, %434, %cst_75 [1] : vector<64x128xf32> to vector<64xf32>
    %436 = vector.shape_cast %435 : vector<64xf32> to vector<64x1xf32>
    %437 = math.log %436 : vector<64x1xf32>
    %438 = vector.broadcast %437 : vector<64x1xf32> to vector<64x128xf32>
    %439 = arith.subf %433, %438 : vector<64x128xf32>
    %c0_76 = arith.constant 0 : index
    %c0_77 = arith.constant 0 : index
    %440 = vector.load %arg5[%c0_76, %c0_77] : memref<64x128xf32, #tpu.memory_space<vmem>>, vector<64x128xf32>
    tpu.vector_store %arg5[%c0_76, %c0_77], %439 {strides = array<i32>} : memref<64x128xf32, #tpu.memory_space<vmem>>, vector<64x128xf32>,
    return
  }
}

</mosaic_0001>

<llo_original>
// kernel: forward.1
$region0: #{forward.1}
  #allocation0 [shape = 'u32[]', space=smem, size = 0x4, offset = 0x4, fixed_abs, tag = 'smem constant byte address 0x4 - core index']
  #allocation1 [shape = 'u32[144,128]{1,0:T(1,128)}', space=vmem, size = 0x12000, scoped, tag = 'internal scratch']
  %s0 = inlined_call_operand.vmem [shape: s32[128,4], index: 0, kind: input, shape index: {}]
  %s1 = inlined_call_operand.vmem [shape: f32[128,12], index: 1, kind: input, shape index: {}]
  %s2 = inlined_call_operand.vmem [shape: bf16[440,128], index: 2, kind: input, shape index: {}]
  %s3 = inlined_call_operand.vmem [shape: f32[16,128], index: 3, kind: input, shape index: {}]
  %s4 = inlined_call_operand.vmem [shape: f32[128,8], index: 4, kind: input, shape index: {}]
  %s5 = inlined_call_operand.vmem [shape: f32[64,128], index: 5, kind: output, shape index: {}]
  %s6 = sld [smem:[#allocation0]]
  $region30: #{forward.1} parent=0
    _
  %s8 = ssub.s32 1, %s6
  %s9 = scalar_select 0, %s8, %s6
  // Predicated region
  $region2: #{forward.1} parent=0 // pred_check
    _
  $region3: #{forward.1} parent=0 // pred_check_branch
    %11 = sbr.rel (0) target = $region5
  $region4: #{forward.1} parent=0 // pred_region
    _
  $region5: #{forward.1} parent=0 // pred_fallthru
    _
  // Predicated region
  $region6: #{forward.1} parent=0 // pred_check
    _
  $region7: #{forward.1} parent=0 // pred_check_branch
    %13 = sbr.rel (0) target = $region9
  $region8: #{forward.1} parent=0 // pred_region
    _
  $region9: #{forward.1} parent=0 // pred_fallthru
    _
  // Predicated region
  $region10: #{forward.1} parent=0 // pred_check
    _
  $region11: #{forward.1} parent=0 // pred_check_branch
    %15 = sbr.rel (0) target = $region13
  $region12: #{forward.1} parent=0 // pred_region
    _
  $region13: #{forward.1} parent=0 // pred_fallthru
    _
  // Predicated region
  $region14: #{forward.1} parent=0 // pred_check
    _
  $region15: #{forward.1} parent=0 // pred_check_branch
    %17 = sbr.rel (0) target = $region17
  $region16: #{forward.1} parent=0 // pred_region
    _
  $region17: #{forward.1} parent=0 // pred_fallthru
    _
  // Predicated region
  $region18: #{forward.1} parent=0 // pred_check
    _
  $region19: #{forward.1} parent=0 // pred_check_branch
    %19 = sbr.rel (0) target = $region21
  $region20: #{forward.1} parent=0 // pred_region
    _
  $region21: #{forward.1} parent=0 // pred_fallthru
    _
  %v21 = vld [vmem:[%s4] sm:$0xff]
  %v22 = vld [vmem:[%s4 + $0x8] sm:$0xff]
  %v23 = vld [vmem:[%s4 + $0x10] sm:$0xff]
  %v24 = vld [vmem:[%s4 + $0x18] sm:$0xff]
  %v25 = vld [vmem:[%s4 + $0x20] sm:$0xff]
  %v26 = vld [vmem:[%s4 + $0x28] sm:$0xff]
  %v27 = vld [vmem:[%s4 + $0x30] sm:$0xff]
  %v28 = vld [vmem:[%s4 + $0x38] sm:$0xff]
  %v29 = vld [vmem:[%s4 + $0x40] sm:$0xff]
  %v30 = vld [vmem:[%s4 + $0x48] sm:$0xff]
  %v31 = vld [vmem:[%s4 + $0x50] sm:$0xff]
  %v32 = vld [vmem:[%s4 + $0x58] sm:$0xff]
  %v33 = vld [vmem:[%s4 + $0x60] sm:$0xff]
  %v34 = vld [vmem:[%s4 + $0x68] sm:$0xff]
  %v35 = vld [vmem:[%s4 + $0x70] sm:$0xff]
  %v36 = vld [vmem:[%s4 + $0x78] sm:$0xff]
  %v37 = vld [vmem:[%s0] sm:$0xff]
  %v38 = vld [vmem:[%s0 + $0x8] sm:$0xff]
  %v39 = vld [vmem:[%s0 + $0x10] sm:$0xff]
  %v40 = vld [vmem:[%s0 + $0x18] sm:$0xff]
  %v41 = vld [vmem:[%s0 + $0x20] sm:$0xff]
  %v42 = vld [vmem:[%s0 + $0x28] sm:$0xff]
  %v43 = vld [vmem:[%s0 + $0x30] sm:$0xff]
  %v44 = vld [vmem:[%s0 + $0x38] sm:$0xff]
  %v45 = vld [vmem:[%s0 + $0x40] sm:$0xff]
  %v46 = vld [vmem:[%s0 + $0x48] sm:$0xff]
  %v47 = vld [vmem:[%s0 + $0x50] sm:$0xff]
  %v48 = vld [vmem:[%s0 + $0x58] sm:$0xff]
  %v49 = vld [vmem:[%s0 + $0x60] sm:$0xff]
  %v50 = vld [vmem:[%s0 + $0x68] sm:$0xff]
  %v51 = vld [vmem:[%s0 + $0x70] sm:$0xff]
  %v52 = vld [vmem:[%s0 + $0x78] sm:$0xff]
  %v53 = vlaneseq
  %v54 = vand.u32 %v53, 127
  %55 = vset.pattern.permute.xlu0 0
  %56 = vperm.xlu0 %55, %v37
  %v57 = vpop.permute.xlu0 %56
  %58 = vset.pattern.permute.xlu0 0
  %59 = vperm.xlu0 %58, %v38
  %v60 = vpop.permute.xlu0 %59
  %61 = vset.pattern.permute.xlu0 0
  %62 = vperm.xlu0 %61, %v39
  %v63 = vpop.permute.xlu0 %62
  %64 = vset.pattern.permute.xlu0 0
  %65 = vperm.xlu0 %64, %v40
  %v66 = vpop.permute.xlu0 %65
  %67 = vset.pattern.permute.xlu0 0
  %68 = vperm.xlu0 %67, %v41
  %v69 = vpop.permute.xlu0 %68
  %70 = vset.pattern.permute.xlu0 0
  %71 = vperm.xlu0 %70, %v42
  %v72 = vpop.permute.xlu0 %71
  %73 = vset.pattern.permute.xlu0 0
  %74 = vperm.xlu0 %73, %v43
  %v75 = vpop.permute.xlu0 %74
  %76 = vset.pattern.permute.xlu0 0
  %77 = vperm.xlu0 %76, %v44
  %v78 = vpop.permute.xlu0 %77
  %79 = vset.pattern.permute.xlu0 0
  %80 = vperm.xlu0 %79, %v45
  %v81 = vpop.permute.xlu0 %80
  %82 = vset.pattern.permute.xlu0 0
  %83 = vperm.xlu0 %82, %v46
  %v84 = vpop.permute.xlu0 %83
  %85 = vset.pattern.permute.xlu0 0
  %86 = vperm.xlu0 %85, %v47
  %v87 = vpop.permute.xlu0 %86
  %88 = vset.pattern.permute.xlu0 0
  %89 = vperm.xlu0 %88, %v48
  %v90 = vpop.permute.xlu0 %89
  %91 = vset.pattern.permute.xlu0 0
  %92 = vperm.xlu0 %91, %v49
  %v93 = vpop.permute.xlu0 %92
  %94 = vset.pattern.permute.xlu0 0
  %95 = vperm.xlu0 %94, %v50
  %v96 = vpop.permute.xlu0 %95
  %97 = vset.pattern.permute.xlu0 0
  %98 = vperm.xlu0 %97, %v51
  %v99 = vpop.permute.xlu0 %98
  %100 = vset.pattern.permute.xlu0 0
  %101 = vperm.xlu0 %100, %v52
  %v102 = vpop.permute.xlu0 %101
  %vm103 = vcmp.eq.s32.totalorder %v57, %v54
  %vm104 = vcmp.eq.s32.totalorder %v60, %v54
  %vm105 = vcmp.eq.s32.totalorder %v63, %v54
  %vm106 = vcmp.eq.s32.totalorder %v66, %v54
  %vm107 = vcmp.eq.s32.totalorder %v69, %v54
  %vm108 = vcmp.eq.s32.totalorder %v72, %v54
  %vm109 = vcmp.eq.s32.totalorder %v75, %v54
  %vm110 = vcmp.eq.s32.totalorder %v78, %v54
  %vm111 = vcmp.eq.s32.totalorder %v81, %v54
  %vm112 = vcmp.eq.s32.totalorder %v84, %v54
  %vm113 = vcmp.eq.s32.totalorder %v87, %v54
  %vm114 = vcmp.eq.s32.totalorder %v90, %v54
  %vm115 = vcmp.eq.s32.totalorder %v93, %v54
  %vm116 = vcmp.eq.s32.totalorder %v96, %v54
  %vm117 = vcmp.eq.s32.totalorder %v99, %v54
  %vm118 = vcmp.eq.s32.totalorder %v102, %v54
  %v119 = vsel %vm103, 1, 0
  %v120 = vsel %vm104, 1, 0
  %v121 = vsel %vm105, 1, 0
  %v122 = vsel %vm106, 1, 0
  %v123 = vsel %vm107, 1, 0
  %v124 = vsel %vm108, 1, 0
  %v125 = vsel %vm109, 1, 0
  %v126 = vsel %vm110, 1, 0
  %v127 = vsel %vm111, 1, 0
  %v128 = vsel %vm112, 1, 0
  %v129 = vsel %vm113, 1, 0
  %v130 = vsel %vm114, 1, 0
  %v131 = vsel %vm115, 1, 0
  %v132 = vsel %vm116, 1, 0
  %v133 = vsel %vm117, 1, 0
  %v134 = vsel %vm118, 1, 0
  %v135 = vcvt.s32.f32 %v119
  %v136 = vcvt.s32.f32 %v120
  %v137 = vcvt.s32.f32 %v121
  %v138 = vcvt.s32.f32 %v122
  %v139 = vcvt.s32.f32 %v123
  %v140 = vcvt.s32.f32 %v124
  %v141 = vcvt.s32.f32 %v125
  %v142 = vcvt.s32.f32 %v126
  %v143 = vcvt.s32.f32 %v127
  %v144 = vcvt.s32.f32 %v128
  %v145 = vcvt.s32.f32 %v129
  %v146 = vcvt.s32.f32 %v130
  %v147 = vcvt.s32.f32 %v131
  %v148 = vcvt.s32.f32 %v132
  %v149 = vcvt.s32.f32 %v133
  %v150 = vcvt.s32.f32 %v134
  %v151 = vpack.c.bf16 %v136, %v135
  %v152 = vpack.c.bf16 %v138, %v137
  %v153 = vpack.c.bf16 %v140, %v139
  %v154 = vpack.c.bf16 %v142, %v141
  %v155 = vpack.c.bf16 %v144, %v143
  %v156 = vpack.c.bf16 %v146, %v145
  %v157 = vpack.c.bf16 %v148, %v147
  %v158 = vpack.c.bf16 %v150, %v149
  %v159 = vld [vmem:[%s2 + $0x24] sm:$0xf]
  %v160 = vld [vmem:[%s2 + $0x28] sm:$0xf]
  %v163 = vunpack.c.l.b16 %v159
  %v164 = vunpack.c.l.b16 %v160
  %v165 = vpack.c.b16 %v164, %v163
  %vm167 = vcmask 130048
  %v169 = vsel %vm167, %v151, 0
  %v172 = vsel %vm167, %v152, 0
  %v175 = vsel %vm167, %v153, 0
  %v178 = vsel %vm167, %v154, 0
  %v181 = vsel %vm167, %v155, 0
  %v184 = vsel %vm167, %v156, 0
  %v187 = vsel %vm167, %v157, 0
  %v190 = vsel %vm167, %v158, 0
  %192 = vmatprep.subr.bf16.mxu0 0
  %193 = vmatpush1.bf16.msra.mxu0 %v165
  %194 = vmatprep.subr.bf16.mxu0 0
  %195 = vmatpush1.bf16.msra.mxu0 0
  %196 = vmatprep.subr.bf16.mxu0 0
  %197 = vmatpush1.bf16.msra.mxu0 0
  %198 = vmatprep.subr.bf16.mxu0 0
  %199 = vmatpush1.bf16.msra.mxu0 0
  %200 = vmatprep.subr.bf16.mxu0 0
  %201 = vmatpush1.bf16.msra.mxu0 0
  %202 = vmatprep.subr.bf16.mxu0 0
  %203 = vmatpush1.bf16.msra.mxu0 0
  %204 = vmatprep.subr.bf16.mxu0 0
  %205 = vmatpush1.bf16.msra.mxu0 0
  %206 = vmatprep.subr.bf16.mxu0 0
  %207 = vmatpush1.bf16.msra.mxu0 0
  %208 = vmatprep.subr.bf16.mxu0 0
  %209 = vmatpush1.bf16.msra.mxu0 0
  %210 = vmatprep.subr.bf16.mxu0 0
  %211 = vmatpush1.bf16.msra.mxu0 0
  %212 = vmatprep.subr.bf16.mxu0 0
  %213 = vmatpush1.bf16.msra.mxu0 0
  %214 = vmatprep.subr.bf16.mxu0 0
  %215 = vmatpush1.bf16.msra.mxu0 0
  %216 = vmatprep.subr.bf16.mxu0 0
  %217 = vmatpush1.bf16.msra.mxu0 0
  %218 = vmatprep.subr.bf16.mxu0 0
  %219 = vmatpush1.bf16.msra.mxu0 0
  %220 = vmatprep.subr.bf16.mxu0 0
  %221 = vmatpush1.bf16.msra.mxu0 0
  %222 = vmatprep.subr.bf16.mxu0 0
  %223 = vmatpush1.bf16.msra.mxu0 0
  %224 = vmatprep.mubr.bf16.mxu0 0
  %225 = vmatmul.mubr.bf16.gmra.mrb[0].mxu0 %v169
  %v226 = vpop.f32.mrb[0].mxu0
  %v227 = vadd.f32 0.0, %v226
  %v228 = vpop.f32.mrb[0].mxu0
  %v229 = vpop.f32.mrb[0].mxu0
  %v230 = vadd.f32 0.0, %v229
  %v231 = vpop.f32.mrb[0].mxu0
  %232 = vmatprep.mubr.bf16.mxu0 0
  %233 = vmatmul.mubr.bf16.gmra.mrb[0].mxu0 %v172
  %v234 = vpop.f32.mrb[0].mxu0
  %v235 = vadd.f32 0.0, %v234
  %v236 = vpop.f32.mrb[0].mxu0
  %v237 = vpop.f32.mrb[0].mxu0
  %v238 = vadd.f32 0.0, %v237
  %v239 = vpop.f32.mrb[0].mxu0
  %240 = vmatprep.mubr.bf16.mxu0 0
  %241 = vmatmul.mubr.bf16.gmra.mrb[0].mxu0 %v175
  %v242 = vpop.f32.mrb[0].mxu0
  %v243 = vadd.f32 0.0, %v242
  %v244 = vpop.f32.mrb[0].mxu0
  %v245 = vpop.f32.mrb[0].mxu0
  %v246 = vadd.f32 0.0, %v245
  %v247 = vpop.f32.mrb[0].mxu0
  %248 = vmatprep.mubr.bf16.mxu0 0
  %249 = vmatmul.mubr.bf16.gmra.mrb[0].mxu0 %v178
  %v250 = vpop.f32.mrb[0].mxu0
  %v251 = vadd.f32 0.0, %v250
  %v252 = vpop.f32.mrb[0].mxu0
  %v253 = vpop.f32.mrb[0].mxu0
  %v254 = vadd.f32 0.0, %v253
  %v255 = vpop.f32.mrb[0].mxu0
  %256 = vmatprep.mubr.bf16.mxu0 0
  %257 = vmatmul.mubr.bf16.gmra.mrb[0].mxu0 %v181
  %v258 = vpop.f32.mrb[0].mxu0
  %v259 = vadd.f32 0.0, %v258
  %v260 = vpop.f32.mrb[0].mxu0
  %v261 = vpop.f32.mrb[0].mxu0
  %v262 = vadd.f32 0.0, %v261
  %v263 = vpop.f32.mrb[0].mxu0
  %264 = vmatprep.mubr.bf16.mxu0 0
  %265 = vmatmul.mubr.bf16.gmra.mrb[0].mxu0 %v184
  %v266 = vpop.f32.mrb[0].mxu0
  %v267 = vadd.f32 0.0, %v266
  %v268 = vpop.f32.mrb[0].mxu0
  %v269 = vpop.f32.mrb[0].mxu0
  %v270 = vadd.f32 0.0, %v269
  %v271 = vpop.f32.mrb[0].mxu0
  %272 = vmatprep.mubr.bf16.mxu0 0
  %273 = vmatmul.mubr.bf16.gmra.mrb[0].mxu0 %v187
  %v274 = vpop.f32.mrb[0].mxu0
  %v275 = vadd.f32 0.0, %v274
  %v276 = vpop.f32.mrb[0].mxu0
  %v277 = vpop.f32.mrb[0].mxu0
  %v278 = vadd.f32 0.0, %v277
  %v279 = vpop.f32.mrb[0].mxu0
  %280 = vmatprep.mubr.bf16.mxu0 0
  %281 = vmatmul.mubr.bf16.gmra.mrb[0].mxu0 %v190
  %v282 = vpop.f32.mrb[0].mxu0
  %v283 = vadd.f32 0.0, %v282
  %v284 = vpop.f32.mrb[0].mxu0
  %v285 = vpop.f32.mrb[0].mxu0
  %v286 = vadd.f32 0.0, %v285
  %v287 = vpop.f32.mrb[0].mxu0
  %288 = vdwg.mxu0
  %289 = vset.pattern.permute.xlu0 1
  %290 = vperm.xlu0 %289, %v37
  %v291 = vpop.permute.xlu0 %290
  %292 = vset.pattern.permute.xlu0 1
  %293 = vperm.xlu0 %292, %v38
  %v294 = vpop.permute.xlu0 %293
  %295 = vset.pattern.permute.xlu0 1
  %296 = vperm.xlu0 %295, %v39
  %v297 = vpop.permute.xlu0 %296
  %298 = vset.pattern.permute.xlu0 1
  %299 = vperm.xlu0 %298, %v40
  %v300 = vpop.permute.xlu0 %299
  %301 = vset.pattern.permute.xlu0 1
  %302 = vperm.xlu0 %301, %v41
  %v303 = vpop.permute.xlu0 %302
  %304 = vset.pattern.permute.xlu0 1
  %305 = vperm.xlu0 %304, %v42
  %v306 = vpop.permute.xlu0 %305
  %307 = vset.pattern.permute.xlu0 1
  %308 = vperm.xlu0 %307, %v43
  %v309 = vpop.permute.xlu0 %308
  %310 = vset.pattern.permute.xlu0 1
  %311 = vperm.xlu0 %310, %v44
  %v312 = vpop.permute.xlu0 %311
  %vm313 = vcmp.eq.s32.totalorder %v291, %v54
  %vm314 = vcmp.eq.s32.totalorder %v294, %v54
  %vm315 = vcmp.eq.s32.totalorder %v297, %v54
  %vm316 = vcmp.eq.s32.totalorder %v300, %v54
  %vm317 = vcmp.eq.s32.totalorder %v303, %v54
  %vm318 = vcmp.eq.s32.totalorder %v306, %v54
  %vm319 = vcmp.eq.s32.totalorder %v309, %v54
  %vm320 = vcmp.eq.s32.totalorder %v312, %v54
  %v321 = vsel %vm313, 1, 0
  %v322 = vsel %vm314, 1, 0
  %v323 = vsel %vm315, 1, 0
  %v324 = vsel %vm316, 1, 0
  %v325 = vsel %vm317, 1, 0
  %v326 = vsel %vm318, 1, 0
  %v327 = vsel %vm319, 1, 0
  %v328 = vsel %vm320, 1, 0
  %v329 = vcvt.s32.f32 %v321
  %v330 = vcvt.s32.f32 %v322
  %v331 = vcvt.s32.f32 %v323
  %v332 = vcvt.s32.f32 %v324
  %v333 = vcvt.s32.f32 %v325
  %v334 = vcvt.s32.f32 %v326
  %v335 = vcvt.s32.f32 %v327
  %v336 = vcvt.s32.f32 %v328
  %v337 = vpack.c.bf16 %v330, %v329
  %v338 = vpack.c.bf16 %v332, %v331
  %v339 = vpack.c.bf16 %v334, %v333
  %v340 = vpack.c.bf16 %v336, %v335
  %341 = vset.pattern.permute.xlu0 2
  %342 = vperm.xlu0 %341, %v37
  %v343 = vpop.permute.xlu0 %342
  %344 = vset.pattern.permute.xlu0 2
  %345 = vperm.xlu0 %344, %v38
  %v346 = vpop.permute.xlu0 %345
  %347 = vset.pattern.permute.xlu0 2
  %348 = vperm.xlu0 %347, %v39
  %v349 = vpop.permute.xlu0 %348
  %350 = vset.pattern.permute.xlu0 2
  %351 = vperm.xlu0 %350, %v40
  %v352 = vpop.permute.xlu0 %351
  %353 = vset.pattern.permute.xlu0 2
  %354 = vperm.xlu0 %353, %v41
  %v355 = vpop.permute.xlu0 %354
  %356 = vset.pattern.permute.xlu0 2
  %357 = vperm.xlu0 %356, %v42
  %v358 = vpop.permute.xlu0 %357
  %359 = vset.pattern.permute.xlu0 2
  %360 = vperm.xlu0 %359, %v43
  %v361 = vpop.permute.xlu0 %360
  %362 = vset.pattern.permute.xlu0 2
  %363 = vperm.xlu0 %362, %v44
  %v364 = vpop.permute.xlu0 %363
  %vm365 = vcmp.eq.s32.totalorder %v343, %v54
  %vm366 = vcmp.eq.s32.totalorder %v346, %v54
  %vm367 = vcmp.eq.s32.totalorder %v349, %v54
  %vm368 = vcmp.eq.s32.totalorder %v352, %v54
  %vm369 = vcmp.eq.s32.totalorder %v355, %v54
  %vm370 = vcmp.eq.s32.totalorder %v358, %v54
  %vm371 = vcmp.eq.s32.totalorder %v361, %v54
  %vm372 = vcmp.eq.s32.totalorder %v364, %v54
  %v373 = vsel %vm365, 1, 0
  %v374 = vsel %vm366, 1, 0
  %v375 = vsel %vm367, 1, 0
  %v376 = vsel %vm368, 1, 0
  %v377 = vsel %vm369, 1, 0
  %v378 = vsel %vm370, 1, 0
  %v379 = vsel %vm371, 1, 0
  %v380 = vsel %vm372, 1, 0
  %v381 = vcvt.s32.f32 %v373
  %v382 = vcvt.s32.f32 %v374
  %v383 = vcvt.s32.f32 %v375
  %v384 = vcvt.s32.f32 %v376
  %v385 = vcvt.s32.f32 %v377
  %v386 = vcvt.s32.f32 %v378
  %v387 = vcvt.s32.f32 %v379
  %v388 = vcvt.s32.f32 %v380
  %v389 = vpack.c.bf16 %v382, %v381
  %v390 = vpack.c.bf16 %v384, %v383
  %v391 = vpack.c.bf16 %v386, %v385
  %v392 = vpack.c.bf16 %v388, %v387
  %v393 = vadd.bf16 %v337, %v389
  %v394 = vadd.bf16 %v338, %v390
  %v395 = vadd.bf16 %v339, %v391
  %v396 = vadd.bf16 %v340, %v392
  %397 = vset.pattern.permute.xlu0 3
  %398 = vperm.xlu0 %397, %v37
  %v399 = vpop.permute.xlu0 %398
  %400 = vset.pattern.permute.xlu0 3
  %401 = vperm.xlu0 %400, %v38
  %v402 = vpop.permute.xlu0 %401
  %403 = vset.pattern.permute.xlu0 3
  %404 = vperm.xlu0 %403, %v39
  %v405 = vpop.permute.xlu0 %404
  %406 = vset.pattern.permute.xlu0 3
  %407 = vperm.xlu0 %406, %v40
  %v408 = vpop.permute.xlu0 %407
  %409 = vset.pattern.permute.xlu0 3
  %410 = vperm.xlu0 %409, %v41
  %v411 = vpop.permute.xlu0 %410
  %412 = vset.pattern.permute.xlu0 3
  %413 = vperm.xlu0 %412, %v42
  %v414 = vpop.permute.xlu0 %413
  %415 = vset.pattern.permute.xlu0 3
  %416 = vperm.xlu0 %415, %v43
  %v417 = vpop.permute.xlu0 %416
  %418 = vset.pattern.permute.xlu0 3
  %419 = vperm.xlu0 %418, %v44
  %v420 = vpop.permute.xlu0 %419
  %vm421 = vcmp.eq.s32.totalorder %v399, %v54
  %vm422 = vcmp.eq.s32.totalorder %v402, %v54
  %vm423 = vcmp.eq.s32.totalorder %v405, %v54
  %vm424 = vcmp.eq.s32.totalorder %v408, %v54
  %vm425 = vcmp.eq.s32.totalorder %v411, %v54
  %vm426 = vcmp.eq.s32.totalorder %v414, %v54
  %vm427 = vcmp.eq.s32.totalorder %v417, %v54
  %vm428 = vcmp.eq.s32.totalorder %v420, %v54
  %v429 = vsel %vm421, 1, 0
  %v430 = vsel %vm422, 1, 0
  %v431 = vsel %vm423, 1, 0
  %v432 = vsel %vm424, 1, 0
  %v433 = vsel %vm425, 1, 0
  %v434 = vsel %vm426, 1, 0
  %v435 = vsel %vm427, 1, 0
  %v436 = vsel %vm428, 1, 0
  %v437 = vcvt.s32.f32 %v429
  %v438 = vcvt.s32.f32 %v430
  %v439 = vcvt.s32.f32 %v431
  %v440 = vcvt.s32.f32 %v432
  %v441 = vcvt.s32.f32 %v433
  %v442 = vcvt.s32.f32 %v434
  %v443 = vcvt.s32.f32 %v435
  %v444 = vcvt.s32.f32 %v436
  %v445 = vpack.c.bf16 %v438, %v437
  %v446 = vpack.c.bf16 %v440, %v439
  %v447 = vpack.c.bf16 %v442, %v441
  %v448 = vpack.c.bf16 %v444, %v443
  %v449 = vadd.bf16 %v393, %v445
  %v450 = vadd.bf16 %v394, %v446
  %v451 = vadd.bf16 %v395, %v447
  %v452 = vadd.bf16 %v396, %v448
  %v453 = vld [vmem:[%s2] sm:$0xf]
  %v454 = vld [vmem:[%s2 + $0x4] sm:$0xf]
  %v455 = vld [vmem:[%s2 + $0x8] sm:$0xf]
  %v456 = vld [vmem:[%s2 + $0xc] sm:$0xf]
  %v457 = vld [vmem:[%s2 + $0x10] sm:$0xf]
  %v458 = vld [vmem:[%s2 + $0x14] sm:$0xf]
  %v459 = vld [vmem:[%s2 + $0x18] sm:$0xf]
  %v460 = vld [vmem:[%s2 + $0x1c] sm:$0xf]
  %v461 = vld [vmem:[%s2 + $0x20] sm:$0xf]
  %v471 = vunpack.c.l.b16 %v453
  %v472 = vunpack.c.l.b16 %v454
  %v473 = vunpack.c.l.b16 %v455
  %v474 = vunpack.c.l.b16 %v456
  %v475 = vunpack.c.l.b16 %v457
  %v476 = vunpack.c.l.b16 %v458
  %v477 = vunpack.c.l.b16 %v459
  %v478 = vunpack.c.l.b16 %v460
  %v479 = vunpack.c.l.b16 %v461
  %v480 = vpack.c.b16 %v472, %v471
  %v481 = vpack.c.b16 %v474, %v473
  %v482 = vpack.c.b16 %v476, %v475
  %v483 = vpack.c.b16 %v478, %v477
  %v484 = vpack.c.b16 %v479, %v479
  %vm489 = vcmask 588800
  %v491 = vsel %vm489, %v449, 0
  %v494 = vsel %vm489, %v450, 0
  %v497 = vsel %vm489, %v451, 0
  %v500 = vsel %vm489, %v452, 0
  %vm502 = vcmask 1043456
  %v504 = vsel %vm502, %v484, 0
  %506 = vmatprep.subr.bf16.mxu0 0
  %507 = vmatpush1.bf16.msra.mxu0 %v480
  %508 = vmatprep.subr.bf16.mxu0 0
  %509 = vmatpush1.bf16.msra.mxu0 %v481
  %510 = vmatprep.subr.bf16.mxu0 0
  %511 = vmatpush1.bf16.msra.mxu0 %v482
  %512 = vmatprep.subr.bf16.mxu0 0
  %513 = vmatpush1.bf16.msra.mxu0 %v483
  %514 = vmatprep.subr.bf16.mxu0 0
  %515 = vmatpush1.bf16.msra.mxu0 %v504
  %516 = vmatprep.subr.bf16.mxu0 0
  %517 = vmatpush1.bf16.msra.mxu0 0
  %518 = vmatprep.subr.bf16.mxu0 0
  %519 = vmatpush1.bf16.msra.mxu0 0
  %520 = vmatprep.subr.bf16.mxu0 0
  %521 = vmatpush1.bf16.msra.mxu0 0
  %522 = vmatprep.subr.bf16.mxu0 0
  %523 = vmatpush1.bf16.msra.mxu0 0
  %524 = vmatprep.subr.bf16.mxu0 0
  %525 = vmatpush1.bf16.msra.mxu0 0
  %526 = vmatprep.subr.bf16.mxu0 0
  %527 = vmatpush1.bf16.msra.mxu0 0
  %528 = vmatprep.subr.bf16.mxu0 0
  %529 = vmatpush1.bf16.msra.mxu0 0
  %530 = vmatprep.subr.bf16.mxu0 0
  %531 = vmatpush1.bf16.msra.mxu0 0
  %532 = vmatprep.subr.bf16.mxu0 0
  %533 = vmatpush1.bf16.msra.mxu0 0
  %534 = vmatprep.subr.bf16.mxu0 0
  %535 = vmatpush1.bf16.msra.mxu0 0
  %536 = vmatprep.subr.bf16.mxu0 0
  %537 = vmatpush1.bf16.msra.mxu0 0
  %538 = vmatprep.mubr.bf16.mxu0 0
  %539 = vmatmul.mubr.bf16.gmra.mrb[0].mxu0 %v491
  %v540 = vpop.f32.mrb[0].mxu0
  %v541 = vadd.f32 0.0, %v540
  %v542 = vpop.f32.mrb[0].mxu0
  %v543 = vpop.f32.mrb[0].mxu0
  %v544 = vadd.f32 0.0, %v543
  %v545 = vpop.f32.mrb[0].mxu0
  %546 = vmatprep.mubr.bf16.mxu0 0
  %547 = vmatmul.mubr.bf16.gmra.mrb[0].mxu0 %v494
  %v548 = vpop.f32.mrb[0].mxu0
  %v549 = vadd.f32 0.0, %v548
  %v550 = vpop.f32.mrb[0].mxu0
  %v551 = vpop.f32.mrb[0].mxu0
  %v552 = vadd.f32 0.0, %v551
  %v553 = vpop.f32.mrb[0].mxu0
  %554 = vmatprep.mubr.bf16.mxu0 0
  %555 = vmatmul.mubr.bf16.gmra.mrb[0].mxu0 %v497
  %v556 = vpop.f32.mrb[0].mxu0
  %v557 = vadd.f32 0.0, %v556
  %v558 = vpop.f32.mrb[0].mxu0
  %v559 = vpop.f32.mrb[0].mxu0
  %v560 = vadd.f32 0.0, %v559
  %v561 = vpop.f32.mrb[0].mxu0
  %562 = vmatprep.mubr.bf16.mxu0 0
  %563 = vmatmul.mubr.bf16.gmra.mrb[0].mxu0 %v500
  %v564 = vpop.f32.mrb[0].mxu0
  %v565 = vadd.f32 0.0, %v564
  %v566 = vpop.f32.mrb[0].mxu0
  %v567 = vpop.f32.mrb[0].mxu0
  %v568 = vadd.f32 0.0, %v567
  %v569 = vpop.f32.mrb[0].mxu0
  %570 = vdwg.mxu0
  %v571 = vld [vmem:[%s1] sm:$0xff]
  %v572 = vld [vmem:[%s1 + $0x8] sm:$0xff]
  %v573 = vld [vmem:[%s1 + $0x10] sm:$0xff]
  %v574 = vld [vmem:[%s1 + $0x18] sm:$0xff]
  %v575 = vld [vmem:[%s1 + $0x20] sm:$0xff]
  %v576 = vld [vmem:[%s1 + $0x28] sm:$0xff]
  %v577 = vld [vmem:[%s1 + $0x30] sm:$0xff]
  %v578 = vld [vmem:[%s1 + $0x38] sm:$0xff]
  %v579 = vld [vmem:[%s1 + $0x40] sm:$0xff]
  %v580 = vld [vmem:[%s1 + $0x48] sm:$0xff]
  %v581 = vld [vmem:[%s1 + $0x50] sm:$0xff]
  %v582 = vld [vmem:[%s1 + $0x58] sm:$0xff]
  %v583 = vld [vmem:[%s1 + $0x60] sm:$0xff]
  %v584 = vld [vmem:[%s1 + $0x68] sm:$0xff]
  %v585 = vld [vmem:[%s1 + $0x70] sm:$0xff]
  %v586 = vld [vmem:[%s1 + $0x78] sm:$0xff]
  %v587 = vpack.c.bf16 %v572, %v571
  %v588 = vpack.c.bf16 %v574, %v573
  %v589 = vpack.c.bf16 %v576, %v575
  %v590 = vpack.c.bf16 %v578, %v577
  %v591 = vpack.c.bf16 %v580, %v579
  %v592 = vpack.c.bf16 %v582, %v581
  %v593 = vpack.c.bf16 %v584, %v583
  %v594 = vpack.c.bf16 %v586, %v585
  %v595 = vld [vmem:[%s2 + $0x2c] sm:$0xf]
  %v596 = vld [vmem:[%s2 + $0x30] sm:$0x3]
  %v597 = vld [vmem:[%s3] sm:$0x1]
  %v598 = vlaneseq
  %v599 = vshrl.u32 %v598, 7
  %v600 = vsub.s32 0, %v599
  %v601 = vrot.slane %v597, %v600
  %v604 = vunpack.c.l.b16 %v595
  %v605 = vunpack.c.l.b16 %v596
  %v606 = vpack.c.b16 %v605, %v604
  %vm607 = vcmask 97280
  %v609 = vsel %vm607, %v587, 0
  %v612 = vsel %vm607, %v588, 0
  %v615 = vsel %vm607, %v589, 0
  %v618 = vsel %vm607, %v590, 0
  %v621 = vsel %vm607, %v591, 0
  %v624 = vsel %vm607, %v592, 0
  %v627 = vsel %vm607, %v593, 0
  %v630 = vsel %vm607, %v594, 0
  %vm632 = vcmask 1045504
  %v634 = vsel %vm632, %v606, 0
  %636 = vmatprep.subr.bf16.mxu0 0
  %637 = vmatpush1.bf16.msra.mxu0 %v634
  %638 = vmatprep.subr.bf16.mxu0 0
  %639 = vmatpush1.bf16.msra.mxu0 0
  %640 = vmatprep.subr.bf16.mxu0 0
  %641 = vmatpush1.bf16.msra.mxu0 0
  %642 = vmatprep.subr.bf16.mxu0 0
  %643 = vmatpush1.bf16.msra.mxu0 0
  %644 = vmatprep.subr.bf16.mxu0 0
  %645 = vmatpush1.bf16.msra.mxu0 0
  %646 = vmatprep.subr.bf16.mxu0 0
  %647 = vmatpush1.bf16.msra.mxu0 0
  %648 = vmatprep.subr.bf16.mxu0 0
  %649 = vmatpush1.bf16.msra.mxu0 0
  %650 = vmatprep.subr.bf16.mxu0 0
  %651 = vmatpush1.bf16.msra.mxu0 0
  %652 = vmatprep.subr.bf16.mxu0 0
  %653 = vmatpush1.bf16.msra.mxu0 0
  %654 = vmatprep.subr.bf16.mxu0 0
  %655 = vmatpush1.bf16.msra.mxu0 0
  %656 = vmatprep.subr.bf16.mxu0 0
  %657 = vmatpush1.bf16.msra.mxu0 0
  %658 = vmatprep.subr.bf16.mxu0 0
  %659 = vmatpush1.bf16.msra.mxu0 0
  %660 = vmatprep.subr.bf16.mxu0 0
  %661 = vmatpush1.bf16.msra.mxu0 0
  %662 = vmatprep.subr.bf16.mxu0 0
  %663 = vmatpush1.bf16.msra.mxu0 0
  %664 = vmatprep.subr.bf16.mxu0 0
  %665 = vmatpush1.bf16.msra.mxu0 0
  %666 = vmatprep.subr.bf16.mxu0 0
  %667 = vmatpush1.bf16.msra.mxu0 0
  %668 = vmatprep.mubr.bf16.mxu0 0
  %669 = vmatmul.mubr.bf16.gmra.mrb[0].mxu0 %v609
  %v670 = vpop.f32.mrb[0].mxu0
  %v671 = vadd.f32 %v601, %v670
  %v672 = vpop.f32.mrb[0].mxu0
  %v673 = vpop.f32.mrb[0].mxu0
  %v674 = vadd.f32 %v601, %v673
  %v675 = vpop.f32.mrb[0].mxu0
  %676 = vmatprep.mubr.bf16.mxu0 0
  %677 = vmatmul.mubr.bf16.gmra.mrb[0].mxu0 %v612
  %v678 = vpop.f32.mrb[0].mxu0
  %v679 = vadd.f32 %v601, %v678
  %v680 = vpop.f32.mrb[0].mxu0
  %v681 = vpop.f32.mrb[0].mxu0
  %v682 = vadd.f32 %v601, %v681
  %v683 = vpop.f32.mrb[0].mxu0
  %684 = vmatprep.mubr.bf16.mxu0 0
  %685 = vmatmul.mubr.bf16.gmra.mrb[0].mxu0 %v615
  %v686 = vpop.f32.mrb[0].mxu0
  %v687 = vadd.f32 %v601, %v686
  %v688 = vpop.f32.mrb[0].mxu0
  %v689 = vpop.f32.mrb[0].mxu0
  %v690 = vadd.f32 %v601, %v689
  %v691 = vpop.f32.mrb[0].mxu0
  %692 = vmatprep.mubr.bf16.mxu0 0
  %693 = vmatmul.mubr.bf16.gmra.mrb[0].mxu0 %v618
  %v694 = vpop.f32.mrb[0].mxu0
  %v695 = vadd.f32 %v601, %v694
  %v696 = vpop.f32.mrb[0].mxu0
  %v697 = vpop.f32.mrb[0].mxu0
  %v698 = vadd.f32 %v601, %v697
  %v699 = vpop.f32.mrb[0].mxu0
  %700 = vmatprep.mubr.bf16.mxu0 0
  %701 = vmatmul.mubr.bf16.gmra.mrb[0].mxu0 %v621
  %v702 = vpop.f32.mrb[0].mxu0
  %v703 = vadd.f32 %v601, %v702
  %v704 = vpop.f32.mrb[0].mxu0
  %v705 = vpop.f32.mrb[0].mxu0
  %v706 = vadd.f32 %v601, %v705
  %v707 = vpop.f32.mrb[0].mxu0
  %708 = vmatprep.mubr.bf16.mxu0 0
  %709 = vmatmul.mubr.bf16.gmra.mrb[0].mxu0 %v624
  %v710 = vpop.f32.mrb[0].mxu0
  %v711 = vadd.f32 %v601, %v710
  %v712 = vpop.f32.mrb[0].mxu0
  %v713 = vpop.f32.mrb[0].mxu0
  %v714 = vadd.f32 %v601, %v713
  %v715 = vpop.f32.mrb[0].mxu0
  %716 = vmatprep.mubr.bf16.mxu0 0
  %717 = vmatmul.mubr.bf16.gmra.mrb[0].mxu0 %v627
  %v718 = vpop.f32.mrb[0].mxu0
  %v719 = vadd.f32 %v601, %v718
  %v720 = vpop.f32.mrb[0].mxu0
  %v721 = vpop.f32.mrb[0].mxu0
  %v722 = vadd.f32 %v601, %v721
  %v723 = vpop.f32.mrb[0].mxu0
  %724 = vmatprep.mubr.bf16.mxu0 0
  %725 = vmatmul.mubr.bf16.gmra.mrb[0].mxu0 %v630
  %v726 = vpop.f32.mrb[0].mxu0
  %v727 = vadd.f32 %v601, %v726
  %v728 = vpop.f32.mrb[0].mxu0
  %v729 = vpop.f32.mrb[0].mxu0
  %v730 = vadd.f32 %v601, %v729
  %v731 = vpop.f32.mrb[0].mxu0
  %732 = vdwg.mxu0
  %v733 = vmax.f32 %v671, 0.0
  %v734 = vmax.f32 %v674, 0.0
  %v735 = vmax.f32 %v679, 0.0
  %v736 = vmax.f32 %v682, 0.0
  %v737 = vmax.f32 %v687, 0.0
  %v738 = vmax.f32 %v690, 0.0
  %v739 = vmax.f32 %v695, 0.0
  %v740 = vmax.f32 %v698, 0.0
  %v741 = vmax.f32 %v703, 0.0
  %v742 = vmax.f32 %v706, 0.0
  %v743 = vmax.f32 %v711, 0.0
  %v744 = vmax.f32 %v714, 0.0
  %v745 = vmax.f32 %v719, 0.0
  %v746 = vmax.f32 %v722, 0.0
  %v747 = vmax.f32 %v727, 0.0
  %v748 = vmax.f32 %v730, 0.0
  %v749 = vpack.c.bf16 %v734, %v733
  %v750 = vpack.c.bf16 %v736, %v735
  %v751 = vpack.c.bf16 %v738, %v737
  %v752 = vpack.c.bf16 %v740, %v739
  %v753 = vpack.c.bf16 %v742, %v741
  %v754 = vpack.c.bf16 %v744, %v743
  %v755 = vpack.c.bf16 %v746, %v745
  %v756 = vpack.c.bf16 %v748, %v747
  %v757 = vld [vmem:[%s2 + $0x34] sm:$0xf]
  %v758 = vld [vmem:[%s2 + $0x38] sm:$0x1]
  %v759 = vld [vmem:[%s3 + $0x1] sm:$0x1]
  %v760 = vlaneseq
  %v761 = vshrl.u32 %v760, 7
  %v762 = vsub.s32 0, %v761
  %v763 = vrot.slane %v759, %v762
  %v766 = vunpack.c.l.b16 %v757
  %v767 = vunpack.c.l.b16 %v758
  %v768 = vpack.c.b16 %v767, %v766
  %vm769 = vcmask 80896
  %v771 = vsel %vm769, %v749, 0
  %v774 = vsel %vm769, %v750, 0
  %v777 = vsel %vm769, %v751, 0
  %v780 = vsel %vm769, %v752, 0
  %v783 = vsel %vm769, %v753, 0
  %v786 = vsel %vm769, %v754, 0
  %v789 = vsel %vm769, %v755, 0
  %v792 = vsel %vm769, %v756, 0
  %vm794 = vcmask 1044480
  %v796 = vsel %vm794, %v768, 0
  %798 = vmatprep.subr.bf16.mxu0 0
  %799 = vmatpush1.bf16.msra.mxu0 %v796
  %800 = vmatprep.subr.bf16.mxu0 0
  %801 = vmatpush1.bf16.msra.mxu0 0
  %802 = vmatprep.subr.bf16.mxu0 0
  %803 = vmatpush1.bf16.msra.mxu0 0
  %804 = vmatprep.subr.bf16.mxu0 0
  %805 = vmatpush1.bf16.msra.mxu0 0
  %806 = vmatprep.subr.bf16.mxu0 0
  %807 = vmatpush1.bf16.msra.mxu0 0
  %808 = vmatprep.subr.bf16.mxu0 0
  %809 = vmatpush1.bf16.msra.mxu0 0
  %810 = vmatprep.subr.bf16.mxu0 0
  %811 = vmatpush1.bf16.msra.mxu0 0
  %812 = vmatprep.subr.bf16.mxu0 0
  %813 = vmatpush1.bf16.msra.mxu0 0
  %814 = vmatprep.subr.bf16.mxu0 0
  %815 = vmatpush1.bf16.msra.mxu0 0
  %816 = vmatprep.subr.bf16.mxu0 0
  %817 = vmatpush1.bf16.msra.mxu0 0
  %818 = vmatprep.subr.bf16.mxu0 0
  %819 = vmatpush1.bf16.msra.mxu0 0
  %820 = vmatprep.subr.bf16.mxu0 0
  %821 = vmatpush1.bf16.msra.mxu0 0
  %822 = vmatprep.subr.bf16.mxu0 0
  %823 = vmatpush1.bf16.msra.mxu0 0
  %824 = vmatprep.subr.bf16.mxu0 0
  %825 = vmatpush1.bf16.msra.mxu0 0
  %826 = vmatprep.subr.bf16.mxu0 0
  %827 = vmatpush1.bf16.msra.mxu0 0
  %828 = vmatprep.subr.bf16.mxu0 0
  %829 = vmatpush1.bf16.msra.mxu0 0
  %830 = vmatprep.mubr.bf16.mxu0 0
  %831 = vmatmul.mubr.bf16.gmra.mrb[0].mxu0 %v771
  %v832 = vpop.f32.mrb[0].mxu0
  %v833 = vadd.f32 %v763, %v832
  %v834 = vpop.f32.mrb[0].mxu0
  %v835 = vpop.f32.mrb[0].mxu0
  %v836 = vadd.f32 %v763, %v835
  %v837 = vpop.f32.mrb[0].mxu0
  %838 = vmatprep.mubr.bf16.mxu0 0
  %839 = vmatmul.mubr.bf16.gmra.mrb[0].mxu0 %v774
  %v840 = vpop.f32.mrb[0].mxu0
  %v841 = vadd.f32 %v763, %v840
  %v842 = vpop.f32.mrb[0].mxu0
  %v843 = vpop.f32.mrb[0].mxu0
  %v844 = vadd.f32 %v763, %v843
  %v845 = vpop.f32.mrb[0].mxu0
  %846 = vmatprep.mubr.bf16.mxu0 0
  %847 = vmatmul.mubr.bf16.gmra.mrb[0].mxu0 %v777
  %v848 = vpop.f32.mrb[0].mxu0
  %v849 = vadd.f32 %v763, %v848
  %v850 = vpop.f32.mrb[0].mxu0
  %v851 = vpop.f32.mrb[0].mxu0
  %v852 = vadd.f32 %v763, %v851
  %v853 = vpop.f32.mrb[0].mxu0
  %854 = vmatprep.mubr.bf16.mxu0 0
  %855 = vmatmul.mubr.bf16.gmra.mrb[0].mxu0 %v780
  %v856 = vpop.f32.mrb[0].mxu0
  %v857 = vadd.f32 %v763, %v856
  %v858 = vpop.f32.mrb[0].mxu0
  %v859 = vpop.f32.mrb[0].mxu0
  %v860 = vadd.f32 %v763, %v859
  %v861 = vpop.f32.mrb[0].mxu0
  %862 = vmatprep.mubr.bf16.mxu0 0
  %863 = vmatmul.mubr.bf16.gmra.mrb[0].mxu0 %v783
  %v864 = vpop.f32.mrb[0].mxu0
  %v865 = vadd.f32 %v763, %v864
  %v866 = vpop.f32.mrb[0].mxu0
  %v867 = vpop.f32.mrb[0].mxu0
  %v868 = vadd.f32 %v763, %v867
  %v869 = vpop.f32.mrb[0].mxu0
  %870 = vmatprep.mubr.bf16.mxu0 0
  %871 = vmatmul.mubr.bf16.gmra.mrb[0].mxu0 %v786
  %v872 = vpop.f32.mrb[0].mxu0
  %v873 = vadd.f32 %v763, %v872
  %v874 = vpop.f32.mrb[0].mxu0
  %v875 = vpop.f32.mrb[0].mxu0
  %v876 = vadd.f32 %v763, %v875
  %v877 = vpop.f32.mrb[0].mxu0
  %878 = vmatprep.mubr.bf16.mxu0 0
  %879 = vmatmul.mubr.bf16.gmra.mrb[0].mxu0 %v789
  %v880 = vpop.f32.mrb[0].mxu0
  %v881 = vadd.f32 %v763, %v880
  %v882 = vpop.f32.mrb[0].mxu0
  %v883 = vpop.f32.mrb[0].mxu0
  %v884 = vadd.f32 %v763, %v883
  %v885 = vpop.f32.mrb[0].mxu0
  %886 = vmatprep.mubr.bf16.mxu0 0
  %887 = vmatmul.mubr.bf16.gmra.mrb[0].mxu0 %v792
  %v888 = vpop.f32.mrb[0].mxu0
  %v889 = vadd.f32 %v763, %v888
  %v890 = vpop.f32.mrb[0].mxu0
  %v891 = vpop.f32.mrb[0].mxu0
  %v892 = vadd.f32 %v763, %v891
  %v893 = vpop.f32.mrb[0].mxu0
  %894 = vdwg.mxu0
  %911 = vrot.lane.b32.xlu0 %v833, 8
  %v912 = vpop.permute.xlu0 %911
  %913 = vrot.lane.b32.xlu0 %v836, 8
  %v914 = vpop.permute.xlu0 %913
  %915 = vrot.lane.b32.xlu0 %v841, 8
  %v916 = vpop.permute.xlu0 %915
  %917 = vrot.lane.b32.xlu0 %v844, 8
  %v918 = vpop.permute.xlu0 %917
  %919 = vrot.lane.b32.xlu0 %v849, 8
  %v920 = vpop.permute.xlu0 %919
  %921 = vrot.lane.b32.xlu0 %v852, 8
  %v922 = vpop.permute.xlu0 %921
  %923 = vrot.lane.b32.xlu0 %v857, 8
  %v924 = vpop.permute.xlu0 %923
  %925 = vrot.lane.b32.xlu0 %v860, 8
  %v926 = vpop.permute.xlu0 %925
  %927 = vrot.lane.b32.xlu0 %v865, 8
  %v928 = vpop.permute.xlu0 %927
  %929 = vrot.lane.b32.xlu0 %v868, 8
  %v930 = vpop.permute.xlu0 %929
  %931 = vrot.lane.b32.xlu0 %v873, 8
  %v932 = vpop.permute.xlu0 %931
  %933 = vrot.lane.b32.xlu0 %v876, 8
  %v934 = vpop.permute.xlu0 %933
  %935 = vrot.lane.b32.xlu0 %v881, 8
  %v936 = vpop.permute.xlu0 %935
  %937 = vrot.lane.b32.xlu0 %v884, 8
  %v938 = vpop.permute.xlu0 %937
  %939 = vrot.lane.b32.xlu0 %v889, 8
  %v940 = vpop.permute.xlu0 %939
  %941 = vrot.lane.b32.xlu0 %v892, 8
  %v942 = vpop.permute.xlu0 %941
  %vm959 = vcmask 64512
  %v960 = vsel %vm959, %v227, %v912
  %v961 = vsel %vm959, %v230, %v914
  %v962 = vsel %vm959, %v235, %v916
  %v963 = vsel %vm959, %v238, %v918
  %v964 = vsel %vm959, %v243, %v920
  %v965 = vsel %vm959, %v246, %v922
  %v966 = vsel %vm959, %v251, %v924
  %v967 = vsel %vm959, %v254, %v926
  %v968 = vsel %vm959, %v259, %v928
  %v969 = vsel %vm959, %v262, %v930
  %v970 = vsel %vm959, %v267, %v932
  %v971 = vsel %vm959, %v270, %v934
  %v972 = vsel %vm959, %v275, %v936
  %v973 = vsel %vm959, %v278, %v938
  %v974 = vsel %vm959, %v283, %v940
  %v975 = vsel %vm959, %v286, %v942
  %v976 = vpack.c.bf16 %v961, %v960
  %v977 = vpack.c.bf16 %v963, %v962
  %v978 = vpack.c.bf16 %v965, %v964
  %v979 = vpack.c.bf16 %v967, %v966
  %v980 = vpack.c.bf16 %v969, %v968
  %v981 = vpack.c.bf16 %v971, %v970
  %v982 = vpack.c.bf16 %v973, %v972
  %v983 = vpack.c.bf16 %v975, %v974
  %v984 = vld [vmem:[%s2 + $0x3c] sm:$0xf]
  %v985 = vld [vmem:[%s2 + $0x40] sm:$0xf]
  %v986 = vld [vmem:[%s3 + $0x2] sm:$0x1]
  %v987 = vlaneseq
  %v988 = vshrl.u32 %v987, 7
  %v989 = vsub.s32 0, %v988
  %v990 = vrot.slane %v986, %v989
  %v993 = vunpack.c.l.b16 %v984
  %v994 = vunpack.c.l.b16 %v985
  %v995 = vpack.c.b16 %v994, %v993
  %v998 = vsel %vm167, %v976, 0
  %v1001 = vsel %vm167, %v977, 0
  %v1004 = vsel %vm167, %v978, 0
  %v1007 = vsel %vm167, %v979, 0
  %v1010 = vsel %vm167, %v980, 0
  %v1013 = vsel %vm167, %v981, 0
  %v1016 = vsel %vm167, %v982, 0
  %v1019 = vsel %vm167, %v983, 0
  %1021 = vmatprep.subr.bf16.mxu0 0
  %1022 = vmatpush1.bf16.msra.mxu0 %v995
  %1023 = vmatprep.subr.bf16.mxu0 0
  %1024 = vmatpush1.bf16.msra.mxu0 0
  %1025 = vmatprep.subr.bf16.mxu0 0
  %1026 = vmatpush1.bf16.msra.mxu0 0
  %1027 = vmatprep.subr.bf16.mxu0 0
  %1028 = vmatpush1.bf16.msra.mxu0 0
  %1029 = vmatprep.subr.bf16.mxu0 0
  %1030 = vmatpush1.bf16.msra.mxu0 0
  %1031 = vmatprep.subr.bf16.mxu0 0
  %1032 = vmatpush1.bf16.msra.mxu0 0
  %1033 = vmatprep.subr.bf16.mxu0 0
  %1034 = vmatpush1.bf16.msra.mxu0 0
  %1035 = vmatprep.subr.bf16.mxu0 0
  %1036 = vmatpush1.bf16.msra.mxu0 0
  %1037 = vmatprep.subr.bf16.mxu0 0
  %1038 = vmatpush1.bf16.msra.mxu0 0
  %1039 = vmatprep.subr.bf16.mxu0 0
  %1040 = vmatpush1.bf16.msra.mxu0 0
  %1041 = vmatprep.subr.bf16.mxu0 0
  %1042 = vmatpush1.bf16.msra.mxu0 0
  %1043 = vmatprep.subr.bf16.mxu0 0
  %1044 = vmatpush1.bf16.msra.mxu0 0
  %1045 = vmatprep.subr.bf16.mxu0 0
  %1046 = vmatpush1.bf16.msra.mxu0 0
  %1047 = vmatprep.subr.bf16.mxu0 0
  %1048 = vmatpush1.bf16.msra.mxu0 0
  %1049 = vmatprep.subr.bf16.mxu0 0
  %1050 = vmatpush1.bf16.msra.mxu0 0
  %1051 = vmatprep.subr.bf16.mxu0 0
  %1052 = vmatpush1.bf16.msra.mxu0 0
  %1053 = vmatprep.mubr.bf16.mxu0 0
  %1054 = vmatmul.mubr.bf16.gmra.mrb[0].mxu0 %v998
  %v1055 = vpop.f32.mrb[0].mxu0
  %v1056 = vadd.f32 %v990, %v1055
  %v1057 = vpop.f32.mrb[0].mxu0
  %v1058 = vpop.f32.mrb[0].mxu0
  %v1059 = vadd.f32 %v990, %v1058
  %v1060 = vpop.f32.mrb[0].mxu0
  %1061 = vmatprep.mubr.bf16.mxu0 0
  %1062 = vmatmul.mubr.bf16.gmra.mrb[0].mxu0 %v1001
  %v1063 = vpop.f32.mrb[0].mxu0
  %v1064 = vadd.f32 %v990, %v1063
  %v1065 = vpop.f32.mrb[0].mxu0
  %v1066 = vpop.f32.mrb[0].mxu0
  %v1067 = vadd.f32 %v990, %v1066
  %v1068 = vpop.f32.mrb[0].mxu0
  %1069 = vmatprep.mubr.bf16.mxu0 0
  %1070 = vmatmul.mubr.bf16.gmra.mrb[0].mxu0 %v1004
  %v1071 = vpop.f32.mrb[0].mxu0
  %v1072 = vadd.f32 %v990, %v1071
  %v1073 = vpop.f32.mrb[0].mxu0
  %v1074 = vpop.f32.mrb[0].mxu0
  %v1075 = vadd.f32 %v990, %v1074
  %v1076 = vpop.f32.mrb[0].mxu0
  %1077 = vmatprep.mubr.bf16.mxu0 0
  %1078 = vmatmul.mubr.bf16.gmra.mrb[0].mxu0 %v1007
  %v1079 = vpop.f32.mrb[0].mxu0
  %v1080 = vadd.f32 %v990, %v1079
  %v1081 = vpop.f32.mrb[0].mxu0
  %v1082 = vpop.f32.mrb[0].mxu0
  %v1083 = vadd.f32 %v990, %v1082
  %v1084 = vpop.f32.mrb[0].mxu0
  %1085 = vmatprep.mubr.bf16.mxu0 0
  %1086 = vmatmul.mubr.bf16.gmra.mrb[0].mxu0 %v1010
  %v1087 = vpop.f32.mrb[0].mxu0
  %v1088 = vadd.f32 %v990, %v1087
  %v1089 = vpop.f32.mrb[0].mxu0
  %v1090 = vpop.f32.mrb[0].mxu0
  %v1091 = vadd.f32 %v990, %v1090
  %v1092 = vpop.f32.mrb[0].mxu0
  %1093 = vmatprep.mubr.bf16.mxu0 0
  %1094 = vmatmul.mubr.bf16.gmra.mrb[0].mxu0 %v1013
  %v1095 = vpop.f32.mrb[0].mxu0
  %v1096 = vadd.f32 %v990, %v1095
  %v1097 = vpop.f32.mrb[0].mxu0
  %v1098 = vpop.f32.mrb[0].mxu0
  %v1099 = vadd.f32 %v990, %v1098
  %v1100 = vpop.f32.mrb[0].mxu0
  %1101 = vmatprep.mubr.bf16.mxu0 0
  %1102 = vmatmul.mubr.bf16.gmra.mrb[0].mxu0 %v1016
  %v1103 = vpop.f32.mrb[0].mxu0
  %v1104 = vadd.f32 %v990, %v1103
  %v1105 = vpop.f32.mrb[0].mxu0
  %v1106 = vpop.f32.mrb[0].mxu0
  %v1107 = vadd.f32 %v990, %v1106
  %v1108 = vpop.f32.mrb[0].mxu0
  %1109 = vmatprep.mubr.bf16.mxu0 0
  %1110 = vmatmul.mubr.bf16.gmra.mrb[0].mxu0 %v1019
  %v1111 = vpop.f32.mrb[0].mxu0
  %v1112 = vadd.f32 %v990, %v1111
  %v1113 = vpop.f32.mrb[0].mxu0
  %v1114 = vpop.f32.mrb[0].mxu0
  %v1115 = vadd.f32 %v990, %v1114
  %v1116 = vpop.f32.mrb[0].mxu0
  %1117 = vdwg.mxu0
  %1119 = vset.pattern.permute.xlu0 0
  %1120 = vperm.xlu0 %1119, %v21
  %v1121 = vpop.permute.xlu0 %1120
  %1124 = vset.pattern.permute.xlu0 0
  %1125 = vperm.xlu0 %1124, %v22
  %v1126 = vpop.permute.xlu0 %1125
  %1129 = vset.pattern.permute.xlu0 0
  %1130 = vperm.xlu0 %1129, %v23
  %v1131 = vpop.permute.xlu0 %1130
  %1134 = vset.pattern.permute.xlu0 0
  %1135 = vperm.xlu0 %1134, %v24
  %v1136 = vpop.permute.xlu0 %1135
  %1139 = vset.pattern.permute.xlu0 0
  %1140 = vperm.xlu0 %1139, %v25
  %v1141 = vpop.permute.xlu0 %1140
  %1144 = vset.pattern.permute.xlu0 0
  %1145 = vperm.xlu0 %1144, %v26
  %v1146 = vpop.permute.xlu0 %1145
  %1149 = vset.pattern.permute.xlu0 0
  %1150 = vperm.xlu0 %1149, %v27
  %v1151 = vpop.permute.xlu0 %1150
  %1154 = vset.pattern.permute.xlu0 0
  %1155 = vperm.xlu0 %1154, %v28
  %v1156 = vpop.permute.xlu0 %1155
  %1159 = vset.pattern.permute.xlu0 0
  %1160 = vperm.xlu0 %1159, %v29
  %v1161 = vpop.permute.xlu0 %1160
  %1164 = vset.pattern.permute.xlu0 0
  %1165 = vperm.xlu0 %1164, %v30
  %v1166 = vpop.permute.xlu0 %1165
  %1169 = vset.pattern.permute.xlu0 0
  %1170 = vperm.xlu0 %1169, %v31
  %v1171 = vpop.permute.xlu0 %1170
  %1174 = vset.pattern.permute.xlu0 0
  %1175 = vperm.xlu0 %1174, %v32
  %v1176 = vpop.permute.xlu0 %1175
  %1179 = vset.pattern.permute.xlu0 0
  %1180 = vperm.xlu0 %1179, %v33
  %v1181 = vpop.permute.xlu0 %1180
  %1184 = vset.pattern.permute.xlu0 0
  %1185 = vperm.xlu0 %1184, %v34
  %v1186 = vpop.permute.xlu0 %1185
  %1189 = vset.pattern.permute.xlu0 0
  %1190 = vperm.xlu0 %1189, %v35
  %v1191 = vpop.permute.xlu0 %1190
  %1194 = vset.pattern.permute.xlu0 0
  %1195 = vperm.xlu0 %1194, %v36
  %v1196 = vpop.permute.xlu0 %1195
  %v1198 = vmul.f32 %v1056, %v1121
  %v1199 = vmul.f32 %v1059, %v1126
  %v1200 = vmul.f32 %v1064, %v1131
  %v1201 = vmul.f32 %v1067, %v1136
  %v1202 = vmul.f32 %v1072, %v1141
  %v1203 = vmul.f32 %v1075, %v1146
  %v1204 = vmul.f32 %v1080, %v1151
  %v1205 = vmul.f32 %v1083, %v1156
  %v1206 = vmul.f32 %v1088, %v1161
  %v1207 = vmul.f32 %v1091, %v1166
  %v1208 = vmul.f32 %v1096, %v1171
  %v1209 = vmul.f32 %v1099, %v1176
  %v1210 = vmul.f32 %v1104, %v1181
  %v1211 = vmul.f32 %v1107, %v1186
  %v1212 = vmul.f32 %v1112, %v1191
  %v1213 = vmul.f32 %v1115, %v1196
  %1214 = vset.pattern.permute.xlu0 1
  %1215 = vperm.xlu0 %1214, %v21
  %v1216 = vpop.permute.xlu0 %1215
  %1218 = vset.pattern.permute.xlu0 1
  %1219 = vperm.xlu0 %1218, %v22
  %v1220 = vpop.permute.xlu0 %1219
  %1222 = vset.pattern.permute.xlu0 1
  %1223 = vperm.xlu0 %1222, %v23
  %v1224 = vpop.permute.xlu0 %1223
  %1226 = vset.pattern.permute.xlu0 1
  %1227 = vperm.xlu0 %1226, %v24
  %v1228 = vpop.permute.xlu0 %1227
  %1230 = vset.pattern.permute.xlu0 1
  %1231 = vperm.xlu0 %1230, %v25
  %v1232 = vpop.permute.xlu0 %1231
  %1234 = vset.pattern.permute.xlu0 1
  %1235 = vperm.xlu0 %1234, %v26
  %v1236 = vpop.permute.xlu0 %1235
  %1238 = vset.pattern.permute.xlu0 1
  %1239 = vperm.xlu0 %1238, %v27
  %v1240 = vpop.permute.xlu0 %1239
  %1242 = vset.pattern.permute.xlu0 1
  %1243 = vperm.xlu0 %1242, %v28
  %v1244 = vpop.permute.xlu0 %1243
  %1246 = vset.pattern.permute.xlu0 1
  %1247 = vperm.xlu0 %1246, %v29
  %v1248 = vpop.permute.xlu0 %1247
  %1250 = vset.pattern.permute.xlu0 1
  %1251 = vperm.xlu0 %1250, %v30
  %v1252 = vpop.permute.xlu0 %1251
  %1254 = vset.pattern.permute.xlu0 1
  %1255 = vperm.xlu0 %1254, %v31
  %v1256 = vpop.permute.xlu0 %1255
  %1258 = vset.pattern.permute.xlu0 1
  %1259 = vperm.xlu0 %1258, %v32
  %v1260 = vpop.permute.xlu0 %1259
  %1262 = vset.pattern.permute.xlu0 1
  %1263 = vperm.xlu0 %1262, %v33
  %v1264 = vpop.permute.xlu0 %1263
  %1266 = vset.pattern.permute.xlu0 1
  %1267 = vperm.xlu0 %1266, %v34
  %v1268 = vpop.permute.xlu0 %1267
  %1270 = vset.pattern.permute.xlu0 1
  %1271 = vperm.xlu0 %1270, %v35
  %v1272 = vpop.permute.xlu0 %1271
  %1274 = vset.pattern.permute.xlu0 1
  %1275 = vperm.xlu0 %1274, %v36
  %v1276 = vpop.permute.xlu0 %1275
  %v1278 = vadd.f32 %v1198, %v1216
  %v1279 = vadd.f32 %v1199, %v1220
  %v1280 = vadd.f32 %v1200, %v1224
  %v1281 = vadd.f32 %v1201, %v1228
  %v1282 = vadd.f32 %v1202, %v1232
  %v1283 = vadd.f32 %v1203, %v1236
  %v1284 = vadd.f32 %v1204, %v1240
  %v1285 = vadd.f32 %v1205, %v1244
  %v1286 = vadd.f32 %v1206, %v1248
  %v1287 = vadd.f32 %v1207, %v1252
  %v1288 = vadd.f32 %v1208, %v1256
  %v1289 = vadd.f32 %v1209, %v1260
  %v1290 = vadd.f32 %v1210, %v1264
  %v1291 = vadd.f32 %v1211, %v1268
  %v1292 = vadd.f32 %v1212, %v1272
  %v1293 = vadd.f32 %v1213, %v1276
  %v1294 = vmax.f32 %v1278, 0.0
  %v1295 = vmax.f32 %v1279, 0.0
  %v1296 = vmax.f32 %v1280, 0.0
  %v1297 = vmax.f32 %v1281, 0.0
  %v1298 = vmax.f32 %v1282, 0.0
  %v1299 = vmax.f32 %v1283, 0.0
  %v1300 = vmax.f32 %v1284, 0.0
  %v1301 = vmax.f32 %v1285, 0.0
  %v1302 = vmax.f32 %v1286, 0.0
  %v1303 = vmax.f32 %v1287, 0.0
  %v1304 = vmax.f32 %v1288, 0.0
  %v1305 = vmax.f32 %v1289, 0.0
  %v1306 = vmax.f32 %v1290, 0.0
  %v1307 = vmax.f32 %v1291, 0.0
  %v1308 = vmax.f32 %v1292, 0.0
  %v1309 = vmax.f32 %v1293, 0.0
  %v1310 = vpack.c.bf16 %v1295, %v1294
  %v1311 = vpack.c.bf16 %v1297, %v1296
  %v1312 = vpack.c.bf16 %v1299, %v1298
  %v1313 = vpack.c.bf16 %v1301, %v1300
  %v1314 = vpack.c.bf16 %v1303, %v1302
  %v1315 = vpack.c.bf16 %v1305, %v1304
  %v1316 = vpack.c.bf16 %v1307, %v1306
  %v1317 = vpack.c.bf16 %v1309, %v1308
  %v1318 = vld [vmem:[%s2 + $0x44] sm:$0xf]
  %v1319 = vld [vmem:[%s2 + $0x48] sm:$0xf]
  %v1320 = vld [vmem:[%s3 + $0x3] sm:$0x1]
  %v1321 = vlaneseq
  %v1322 = vshrl.u32 %v1321, 7
  %v1323 = vsub.s32 0, %v1322
  %v1324 = vrot.slane %v1320, %v1323
  %v1327 = vunpack.c.l.b16 %v1318
  %v1328 = vunpack.c.l.b16 %v1319
  %v1329 = vpack.c.b16 %v1328, %v1327
  %v1332 = vsel %vm167, %v1310, 0
  %v1335 = vsel %vm167, %v1311, 0
  %v1338 = vsel %vm167, %v1312, 0
  %v1341 = vsel %vm167, %v1313, 0
  %v1344 = vsel %vm167, %v1314, 0
  %v1347 = vsel %vm167, %v1315, 0
  %v1350 = vsel %vm167, %v1316, 0
  %v1353 = vsel %vm167, %v1317, 0
  %1355 = vmatprep.subr.bf16.mxu0 0
  %1356 = vmatpush1.bf16.msra.mxu0 %v1329
  %1357 = vmatprep.subr.bf16.mxu0 0
  %1358 = vmatpush1.bf16.msra.mxu0 0
  %1359 = vmatprep.subr.bf16.mxu0 0
  %1360 = vmatpush1.bf16.msra.mxu0 0
  %1361 = vmatprep.subr.bf16.mxu0 0
  %1362 = vmatpush1.bf16.msra.mxu0 0
  %1363 = vmatprep.subr.bf16.mxu0 0
  %1364 = vmatpush1.bf16.msra.mxu0 0
  %1365 = vmatprep.subr.bf16.mxu0 0
  %1366 = vmatpush1.bf16.msra.mxu0 0
  %1367 = vmatprep.subr.bf16.mxu0 0
  %1368 = vmatpush1.bf16.msra.mxu0 0
  %1369 = vmatprep.subr.bf16.mxu0 0
  %1370 = vmatpush1.bf16.msra.mxu0 0
  %1371 = vmatprep.subr.bf16.mxu0 0
  %1372 = vmatpush1.bf16.msra.mxu0 0
  %1373 = vmatprep.subr.bf16.mxu0 0
  %1374 = vmatpush1.bf16.msra.mxu0 0
  %1375 = vmatprep.subr.bf16.mxu0 0
  %1376 = vmatpush1.bf16.msra.mxu0 0
  %1377 = vmatprep.subr.bf16.mxu0 0
  %1378 = vmatpush1.bf16.msra.mxu0 0
  %1379 = vmatprep.subr.bf16.mxu0 0
  %1380 = vmatpush1.bf16.msra.mxu0 0
  %1381 = vmatprep.subr.bf16.mxu0 0
  %1382 = vmatpush1.bf16.msra.mxu0 0
  %1383 = vmatprep.subr.bf16.mxu0 0
  %1384 = vmatpush1.bf16.msra.mxu0 0
  %1385 = vmatprep.subr.bf16.mxu0 0
  %1386 = vmatpush1.bf16.msra.mxu0 0
  %1387 = vmatprep.mubr.bf16.mxu0 0
  %1388 = vmatmul.mubr.bf16.gmra.mrb[0].mxu0 %v1332
  %v1389 = vpop.f32.mrb[0].mxu0
  %v1390 = vadd.f32 %v1324, %v1389
  %v1391 = vpop.f32.mrb[0].mxu0
  %v1392 = vpop.f32.mrb[0].mxu0
  %v1393 = vadd.f32 %v1324, %v1392
  %v1394 = vpop.f32.mrb[0].mxu0
  %1395 = vmatprep.mubr.bf16.mxu0 0
  %1396 = vmatmul.mubr.bf16.gmra.mrb[0].mxu0 %v1335
  %v1397 = vpop.f32.mrb[0].mxu0
  %v1398 = vadd.f32 %v1324, %v1397
  %v1399 = vpop.f32.mrb[0].mxu0
  %v1400 = vpop.f32.mrb[0].mxu0
  %v1401 = vadd.f32 %v1324, %v1400
  %v1402 = vpop.f32.mrb[0].mxu0
  %1403 = vmatprep.mubr.bf16.mxu0 0
  %1404 = vmatmul.mubr.bf16.gmra.mrb[0].mxu0 %v1338
  %v1405 = vpop.f32.mrb[0].mxu0
  %v1406 = vadd.f32 %v1324, %v1405
  %v1407 = vpop.f32.mrb[0].mxu0
  %v1408 = vpop.f32.mrb[0].mxu0
  %v1409 = vadd.f32 %v1324, %v1408
  %v1410 = vpop.f32.mrb[0].mxu0
  %1411 = vmatprep.mubr.bf16.mxu0 0
  %1412 = vmatmul.mubr.bf16.gmra.mrb[0].mxu0 %v1341
  %v1413 = vpop.f32.mrb[0].mxu0
  %v1414 = vadd.f32 %v1324, %v1413
  %v1415 = vpop.f32.mrb[0].mxu0
  %v1416 = vpop.f32.mrb[0].mxu0
  %v1417 = vadd.f32 %v1324, %v1416
  %v1418 = vpop.f32.mrb[0].mxu0
  %1419 = vmatprep.mubr.bf16.mxu0 0
  %1420 = vmatmul.mubr.bf16.gmra.mrb[0].mxu0 %v1344
  %v1421 = vpop.f32.mrb[0].mxu0
  %v1422 = vadd.f32 %v1324, %v1421
  %v1423 = vpop.f32.mrb[0].mxu0
  %v1424 = vpop.f32.mrb[0].mxu0
  %v1425 = vadd.f32 %v1324, %v1424
  %v1426 = vpop.f32.mrb[0].mxu0
  %1427 = vmatprep.mubr.bf16.mxu0 0
  %1428 = vmatmul.mubr.bf16.gmra.mrb[0].mxu0 %v1347
  %v1429 = vpop.f32.mrb[0].mxu0
  %v1430 = vadd.f32 %v1324, %v1429
  %v1431 = vpop.f32.mrb[0].mxu0
  %v1432 = vpop.f32.mrb[0].mxu0
  %v1433 = vadd.f32 %v1324, %v1432
  %v1434 = vpop.f32.mrb[0].mxu0
  %1435 = vmatprep.mubr.bf16.mxu0 0
  %1436 = vmatmul.mubr.bf16.gmra.mrb[0].mxu0 %v1350
  %v1437 = vpop.f32.mrb[0].mxu0
  %v1438 = vadd.f32 %v1324, %v1437
  %v1439 = vpop.f32.mrb[0].mxu0
  %v1440 = vpop.f32.mrb[0].mxu0
  %v1441 = vadd.f32 %v1324, %v1440
  %v1442 = vpop.f32.mrb[0].mxu0
  %1443 = vmatprep.mubr.bf16.mxu0 0
  %1444 = vmatmul.mubr.bf16.gmra.mrb[0].mxu0 %v1353
  %v1445 = vpop.f32.mrb[0].mxu0
  %v1446 = vadd.f32 %v1324, %v1445
  %v1447 = vpop.f32.mrb[0].mxu0
  %v1448 = vpop.f32.mrb[0].mxu0
  %v1449 = vadd.f32 %v1324, %v1448
  %v1450 = vpop.f32.mrb[0].mxu0
  %1451 = vdwg.mxu0
  %1460 = vrot.lane.b32.xlu0 %v1390, 32
  %v1461 = vpop.permute.xlu0 %1460
  %1462 = vrot.lane.b32.xlu0 %v1393, 32
  %v1463 = vpop.permute.xlu0 %1462
  %1464 = vrot.lane.b32.xlu0 %v1398, 32
  %v1465 = vpop.permute.xlu0 %1464
  %1466 = vrot.lane.b32.xlu0 %v1401, 32
  %v1467 = vpop.permute.xlu0 %1466
  %1468 = vrot.lane.b32.xlu0 %v1406, 32
  %v1469 = vpop.permute.xlu0 %1468
  %1470 = vrot.lane.b32.xlu0 %v1409, 32
  %v1471 = vpop.permute.xlu0 %1470
  %1472 = vrot.lane.b32.xlu0 %v1414, 32
  %v1473 = vpop.permute.xlu0 %1472
  %1474 = vrot.lane.b32.xlu0 %v1417, 32
  %v1475 = vpop.permute.xlu0 %1474
  %1492 = vrot.lane.b32.xlu0 %v1422, 48
  %v1493 = vpop.permute.xlu0 %1492
  %1494 = vrot.lane.b32.xlu0 %v1425, 48
  %v1495 = vpop.permute.xlu0 %1494
  %1496 = vrot.lane.b32.xlu0 %v1430, 48
  %v1497 = vpop.permute.xlu0 %1496
  %1498 = vrot.lane.b32.xlu0 %v1433, 48
  %v1499 = vpop.permute.xlu0 %1498
  %1500 = vrot.lane.b32.xlu0 %v1438, 48
  %v1501 = vpop.permute.xlu0 %1500
  %1502 = vrot.lane.b32.xlu0 %v1441, 48
  %v1503 = vpop.permute.xlu0 %1502
  %1504 = vrot.lane.b32.xlu0 %v1446, 48
  %v1505 = vpop.permute.xlu0 %1504
  %1506 = vrot.lane.b32.xlu0 %v1449, 48
  %v1507 = vpop.permute.xlu0 %1506
  %vm1516 = vcmask 261120
  %v1517 = vsel %vm1516, %v541, %v1461
  %v1518 = vsel %vm1516, %v544, %v1463
  %v1519 = vsel %vm1516, %v549, %v1465
  %v1520 = vsel %vm1516, %v552, %v1467
  %v1521 = vsel %vm1516, %v557, %v1469
  %v1522 = vsel %vm1516, %v560, %v1471
  %v1523 = vsel %vm1516, %v565, %v1473
  %v1524 = vsel %vm1516, %v568, %v1475
  %vm1525 = vcmask 392192
  %v1526 = vsel %vm1525, %v1517, %v1493
  %v1527 = vsel %vm1525, %v1518, %v1495
  %v1528 = vsel %vm1525, %v1519, %v1497
  %v1529 = vsel %vm1525, %v1520, %v1499
  %v1530 = vsel %vm1525, %v1521, %v1501
  %v1531 = vsel %vm1525, %v1522, %v1503
  %v1532 = vsel %vm1525, %v1523, %v1505
  %v1533 = vsel %vm1525, %v1524, %v1507
  %v1534 = vpack.c.bf16 %v1527, %v1526
  %v1535 = vpack.c.bf16 %v1529, %v1528
  %v1536 = vpack.c.bf16 %v1531, %v1530
  %v1537 = vpack.c.bf16 %v1533, %v1532
  %v1538 = vld [vmem:[%s2 + $0x4c] sm:$0xf]
  %v1539 = vld [vmem:[%s2 + $0x50] sm:$0xf]
  %v1540 = vld [vmem:[%s2 + $0x54] sm:$0xf]
  %v1541 = vld [vmem:[%s2 + $0x58] sm:$0xf]
  %v1542 = vld [vmem:[%s2 + $0x5c] sm:$0xf]
  %v1543 = vld [vmem:[%s2 + $0x60] sm:$0xf]
  %v1544 = vld [vmem:[%s2 + $0x64] sm:$0xf]
  %v1545 = vld [vmem:[%s2 + $0x68] sm:$0xf]
  %v1546 = vld [vmem:[%s3 + $0x4] sm:$0x1]
  %v1547 = vlaneseq
  %v1548 = vshrl.u32 %v1547, 7
  %v1549 = vsub.s32 0, %v1548
  %v1550 = vrot.slane %v1546, %v1549
  %v1559 = vunpack.c.l.b16 %v1538
  %v1560 = vunpack.c.l.b16 %v1539
  %v1561 = vunpack.c.l.b16 %v1540
  %v1562 = vunpack.c.l.b16 %v1541
  %v1563 = vunpack.c.l.b16 %v1542
  %v1564 = vunpack.c.l.b16 %v1543
  %v1565 = vunpack.c.l.b16 %v1544
  %v1566 = vunpack.c.l.b16 %v1545
  %v1567 = vpack.c.b16 %v1560, %v1559
  %v1568 = vpack.c.b16 %v1562, %v1561
  %v1569 = vpack.c.b16 %v1564, %v1563
  %v1570 = vpack.c.b16 %v1566, %v1565
  %vm1575 = vcmask 523264
  %v1577 = vsel %vm1575, %v1534, 0
  %v1580 = vsel %vm1575, %v1535, 0
  %v1583 = vsel %vm1575, %v1536, 0
  %v1586 = vsel %vm1575, %v1537, 0
  %1588 = vmatprep.subr.bf16.mxu0 0
  %1589 = vmatpush1.bf16.msra.mxu0 %v1567
  %1590 = vmatprep.subr.bf16.mxu0 0
  %1591 = vmatpush1.bf16.msra.mxu0 %v1568
  %1592 = vmatprep.subr.bf16.mxu0 0
  %1593 = vmatpush1.bf16.msra.mxu0 %v1569
  %1594 = vmatprep.subr.bf16.mxu0 0
  %1595 = vmatpush1.bf16.msra.mxu0 %v1570
  %1596 = vmatprep.subr.bf16.mxu0 0
  %1597 = vmatpush1.bf16.msra.mxu0 0
  %1598 = vmatprep.subr.bf16.mxu0 0
  %1599 = vmatpush1.bf16.msra.mxu0 0
  %1600 = vmatprep.subr.bf16.mxu0 0
  %1601 = vmatpush1.bf16.msra.mxu0 0
  %1602 = vmatprep.subr.bf16.mxu0 0
  %1603 = vmatpush1.bf16.msra.mxu0 0
  %1604 = vmatprep.subr.bf16.mxu0 0
  %1605 = vmatpush1.bf16.msra.mxu0 0
  %1606 = vmatprep.subr.bf16.mxu0 0
  %1607 = vmatpush1.bf16.msra.mxu0 0
  %1608 = vmatprep.subr.bf16.mxu0 0
  %1609 = vmatpush1.bf16.msra.mxu0 0
  %1610 = vmatprep.subr.bf16.mxu0 0
  %1611 = vmatpush1.bf16.msra.mxu0 0
  %1612 = vmatprep.subr.bf16.mxu0 0
  %1613 = vmatpush1.bf16.msra.mxu0 0
  %1614 = vmatprep.subr.bf16.mxu0 0
  %1615 = vmatpush1.bf16.msra.mxu0 0
  %1616 = vmatprep.subr.bf16.mxu0 0
  %1617 = vmatpush1.bf16.msra.mxu0 0
  %1618 = vmatprep.subr.bf16.mxu0 0
  %1619 = vmatpush1.bf16.msra.mxu0 0
  %1620 = vmatprep.mubr.bf16.mxu0 0
  %1621 = vmatmul.mubr.bf16.gmra.mrb[0].mxu0 %v1577
  %v1622 = vpop.f32.mrb[0].mxu0
  %v1623 = vadd.f32 %v1550, %v1622
  %v1624 = vpop.f32.mrb[0].mxu0
  %v1625 = vpop.f32.mrb[0].mxu0
  %v1626 = vadd.f32 %v1550, %v1625
  %v1627 = vpop.f32.mrb[0].mxu0
  %1628 = vmatprep.mubr.bf16.mxu0 0
  %1629 = vmatmul.mubr.bf16.gmra.mrb[0].mxu0 %v1580
  %v1630 = vpop.f32.mrb[0].mxu0
  %v1631 = vadd.f32 %v1550, %v1630
  %v1632 = vpop.f32.mrb[0].mxu0
  %v1633 = vpop.f32.mrb[0].mxu0
  %v1634 = vadd.f32 %v1550, %v1633
  %v1635 = vpop.f32.mrb[0].mxu0
  %1636 = vmatprep.mubr.bf16.mxu0 0
  %1637 = vmatmul.mubr.bf16.gmra.mrb[0].mxu0 %v1583
  %v1638 = vpop.f32.mrb[0].mxu0
  %v1639 = vadd.f32 %v1550, %v1638
  %v1640 = vpop.f32.mrb[0].mxu0
  %v1641 = vpop.f32.mrb[0].mxu0
  %v1642 = vadd.f32 %v1550, %v1641
  %v1643 = vpop.f32.mrb[0].mxu0
  %1644 = vmatprep.mubr.bf16.mxu0 0
  %1645 = vmatmul.mubr.bf16.gmra.mrb[0].mxu0 %v1586
  %v1646 = vpop.f32.mrb[0].mxu0
  %v1647 = vadd.f32 %v1550, %v1646
  %v1648 = vpop.f32.mrb[0].mxu0
  %v1649 = vpop.f32.mrb[0].mxu0
  %v1650 = vadd.f32 %v1550, %v1649
  %v1651 = vpop.f32.mrb[0].mxu0
  %1652 = vdwg.mxu0
  %1653 = vset.pattern.permute.xlu0 2
  %1654 = vperm.xlu0 %1653, %v21
  %v1655 = vpop.permute.xlu0 %1654
  %1657 = vset.pattern.permute.xlu0 2
  %1658 = vperm.xlu0 %1657, %v22
  %v1659 = vpop.permute.xlu0 %1658
  %1661 = vset.pattern.permute.xlu0 2
  %1662 = vperm.xlu0 %1661, %v23
  %v1663 = vpop.permute.xlu0 %1662
  %1665 = vset.pattern.permute.xlu0 2
  %1666 = vperm.xlu0 %1665, %v24
  %v1667 = vpop.permute.xlu0 %1666
  %1669 = vset.pattern.permute.xlu0 2
  %1670 = vperm.xlu0 %1669, %v25
  %v1671 = vpop.permute.xlu0 %1670
  %1673 = vset.pattern.permute.xlu0 2
  %1674 = vperm.xlu0 %1673, %v26
  %v1675 = vpop.permute.xlu0 %1674
  %1677 = vset.pattern.permute.xlu0 2
  %1678 = vperm.xlu0 %1677, %v27
  %v1679 = vpop.permute.xlu0 %1678
  %1681 = vset.pattern.permute.xlu0 2
  %1682 = vperm.xlu0 %1681, %v28
  %v1683 = vpop.permute.xlu0 %1682
  %v1685 = vmul.f32 %v1623, %v1655
  %v1686 = vmul.f32 %v1626, %v1659
  %v1687 = vmul.f32 %v1631, %v1663
  %v1688 = vmul.f32 %v1634, %v1667
  %v1689 = vmul.f32 %v1639, %v1671
  %v1690 = vmul.f32 %v1642, %v1675
  %v1691 = vmul.f32 %v1647, %v1679
  %v1692 = vmul.f32 %v1650, %v1683
  %1693 = vset.pattern.permute.xlu0 3
  %1694 = vperm.xlu0 %1693, %v21
  %v1695 = vpop.permute.xlu0 %1694
  %1697 = vset.pattern.permute.xlu0 3
  %1698 = vperm.xlu0 %1697, %v22
  %v1699 = vpop.permute.xlu0 %1698
  %1701 = vset.pattern.permute.xlu0 3
  %1702 = vperm.xlu0 %1701, %v23
  %v1703 = vpop.permute.xlu0 %1702
  %1705 = vset.pattern.permute.xlu0 3
  %1706 = vperm.xlu0 %1705, %v24
  %v1707 = vpop.permute.xlu0 %1706
  %1709 = vset.pattern.permute.xlu0 3
  %1710 = vperm.xlu0 %1709, %v25
  %v1711 = vpop.permute.xlu0 %1710
  %1713 = vset.pattern.permute.xlu0 3
  %1714 = vperm.xlu0 %1713, %v26
  %v1715 = vpop.permute.xlu0 %1714
  %1717 = vset.pattern.permute.xlu0 3
  %1718 = vperm.xlu0 %1717, %v27
  %v1719 = vpop.permute.xlu0 %1718
  %1721 = vset.pattern.permute.xlu0 3
  %1722 = vperm.xlu0 %1721, %v28
  %v1723 = vpop.permute.xlu0 %1722
  %v1725 = vadd.f32 %v1685, %v1695
  %v1726 = vadd.f32 %v1686, %v1699
  %v1727 = vadd.f32 %v1687, %v1703
  %v1728 = vadd.f32 %v1688, %v1707
  %v1729 = vadd.f32 %v1689, %v1711
  %v1730 = vadd.f32 %v1690, %v1715
  %v1731 = vadd.f32 %v1691, %v1719
  %v1732 = vadd.f32 %v1692, %v1723
  %v1733 = vmax.f32 %v1725, 0.0
  %v1734 = vmax.f32 %v1726, 0.0
  %v1735 = vmax.f32 %v1727, 0.0
  %v1736 = vmax.f32 %v1728, 0.0
  %v1737 = vmax.f32 %v1729, 0.0
  %v1738 = vmax.f32 %v1730, 0.0
  %v1739 = vmax.f32 %v1731, 0.0
  %v1740 = vmax.f32 %v1732, 0.0
  %v1741 = vld [vmem:[%s2 + $0x6c] sm:$0xf]
  %v1742 = vld [vmem:[%s2 + $0x70] sm:$0xf]
  %v1743 = vld [vmem:[%s2 + $0x74] sm:$0xf]
  %v1744 = vld [vmem:[%s2 + $0x78] sm:$0xf]
  %v1745 = vld [vmem:[%s2 + $0x7c] sm:$0xf]
  %v1746 = vld [vmem:[%s2 + $0x80] sm:$0xf]
  %v1747 = vld [vmem:[%s2 + $0x84] sm:$0xf]
  %v1748 = vld [vmem:[%s2 + $0x88] sm:$0xf]
  %v1749 = vld [vmem:[%s2 + $0x8c] sm:$0xf]
  %v1750 = vld [vmem:[%s2 + $0x90] sm:$0xf]
  %v1751 = vld [vmem:[%s2 + $0x94] sm:$0xf]
  %v1752 = vld [vmem:[%s2 + $0x98] sm:$0xf]
  %v1753 = vld [vmem:[%s2 + $0x9c] sm:$0xf]
  %v1754 = vld [vmem:[%s2 + $0xa0] sm:$0xf]
  %v1755 = vld [vmem:[%s2 + $0xa4] sm:$0xf]
  %v1756 = vld [vmem:[%s2 + $0xa8] sm:$0xf]
  %v1757 = vld [vmem:[%s3 + $0x5] sm:$0x1]
  %v1758 = vld [vmem:[%s3 + $0x6] sm:$0x1]
  %v1759 = vpack.c.bf16 %v1734, %v1733
  %v1760 = vpack.c.bf16 %v1736, %v1735
  %v1761 = vpack.c.bf16 %v1738, %v1737
  %v1762 = vpack.c.bf16 %v1740, %v1739
  %v1763 = vlaneseq
  %v1764 = vshrl.u32 %v1763, 7
  %v1765 = vsub.s32 0, %v1764
  %v1766 = vrot.slane %v1757, %v1765
  %v1771 = vunpack.c.l.b16 %v1741
  %v1772 = vunpack.c.l.b16 %v1742
  %v1773 = vunpack.c.l.b16 %v1743
  %v1774 = vunpack.c.l.b16 %v1744
  %v1775 = vpack.c.b16 %v1772, %v1771
  %v1776 = vpack.c.b16 %v1774, %v1773
  %v1780 = vsel %vm1516, %v1759, 0
  %v1783 = vsel %vm1516, %v1760, 0
  %v1786 = vsel %vm1516, %v1761, 0
  %v1789 = vsel %vm1516, %v1762, 0
  %1791 = vmatprep.subr.bf16.mxu0 0
  %1792 = vmatpush1.bf16.msra.mxu0 %v1775
  %1793 = vmatprep.subr.bf16.mxu0 0
  %1794 = vmatpush1.bf16.msra.mxu0 %v1776
  %1795 = vmatprep.subr.bf16.mxu0 0
  %1796 = vmatpush1.bf16.msra.mxu0 0
  %1797 = vmatprep.subr.bf16.mxu0 0
  %1798 = vmatpush1.bf16.msra.mxu0 0
  %1799 = vmatprep.subr.bf16.mxu0 0
  %1800 = vmatpush1.bf16.msra.mxu0 0
  %1801 = vmatprep.subr.bf16.mxu0 0
  %1802 = vmatpush1.bf16.msra.mxu0 0
  %1803 = vmatprep.subr.bf16.mxu0 0
  %1804 = vmatpush1.bf16.msra.mxu0 0
  %1805 = vmatprep.subr.bf16.mxu0 0
  %1806 = vmatpush1.bf16.msra.mxu0 0
  %1807 = vmatprep.subr.bf16.mxu0 0
  %1808 = vmatpush1.bf16.msra.mxu0 0
  %1809 = vmatprep.subr.bf16.mxu0 0
  %1810 = vmatpush1.bf16.msra.mxu0 0
  %1811 = vmatprep.subr.bf16.mxu0 0
  %1812 = vmatpush1.bf16.msra.mxu0 0
  %1813 = vmatprep.subr.bf16.mxu0 0
  %1814 = vmatpush1.bf16.msra.mxu0 0
  %1815 = vmatprep.subr.bf16.mxu0 0
  %1816 = vmatpush1.bf16.msra.mxu0 0
  %1817 = vmatprep.subr.bf16.mxu0 0
  %1818 = vmatpush1.bf16.msra.mxu0 0
  %1819 = vmatprep.subr.bf16.mxu0 0
  %1820 = vmatpush1.bf16.msra.mxu0 0
  %1821 = vmatprep.subr.bf16.mxu0 0
  %1822 = vmatpush1.bf16.msra.mxu0 0
  %1823 = vmatprep.mubr.bf16.mxu0 0
  %1824 = vmatmul.mubr.bf16.gmra.mrb[0].mxu0 %v1780
  %v1825 = vpop.f32.mrb[0].mxu0
  %v1826 = vadd.f32 %v1766, %v1825
  %v1827 = vpop.f32.mrb[0].mxu0
  %v1828 = vpop.f32.mrb[0].mxu0
  %v1829 = vadd.f32 %v1766, %v1828
  %v1830 = vpop.f32.mrb[0].mxu0
  %1831 = vmatprep.mubr.bf16.mxu0 0
  %1832 = vmatmul.mubr.bf16.gmra.mrb[0].mxu0 %v1783
  %v1833 = vpop.f32.mrb[0].mxu0
  %v1834 = vadd.f32 %v1766, %v1833
  %v1835 = vpop.f32.mrb[0].mxu0
  %v1836 = vpop.f32.mrb[0].mxu0
  %v1837 = vadd.f32 %v1766, %v1836
  %v1838 = vpop.f32.mrb[0].mxu0
  %1839 = vmatprep.mubr.bf16.mxu0 0
  %1840 = vmatmul.mubr.bf16.gmra.mrb[0].mxu0 %v1786
  %v1841 = vpop.f32.mrb[0].mxu0
  %v1842 = vadd.f32 %v1766, %v1841
  %v1843 = vpop.f32.mrb[0].mxu0
  %v1844 = vpop.f32.mrb[0].mxu0
  %v1845 = vadd.f32 %v1766, %v1844
  %v1846 = vpop.f32.mrb[0].mxu0
  %1847 = vmatprep.mubr.bf16.mxu0 0
  %1848 = vmatmul.mubr.bf16.gmra.mrb[0].mxu0 %v1789
  %v1849 = vpop.f32.mrb[0].mxu0
  %v1850 = vadd.f32 %v1766, %v1849
  %v1851 = vpop.f32.mrb[0].mxu0
  %v1852 = vpop.f32.mrb[0].mxu0
  %v1853 = vadd.f32 %v1766, %v1852
  %v1854 = vpop.f32.mrb[0].mxu0
  %1855 = vdwg.mxu0
  %v1860 = vunpack.c.l.b16 %v1745
  %v1861 = vunpack.c.l.b16 %v1746
  %v1862 = vunpack.c.l.b16 %v1747
  %v1863 = vunpack.c.l.b16 %v1748
  %v1864 = vpack.c.b16 %v1861, %v1860
  %v1865 = vpack.c.b16 %v1863, %v1862
  %v1869 = vsel %vm1516, 0, 0
  %1871 = vmatprep.subr.bf16.mxu0 0
  %1872 = vmatpush1.bf16.msra.mxu0 %v1864
  %1873 = vmatprep.subr.bf16.mxu0 0
  %1874 = vmatpush1.bf16.msra.mxu0 %v1865
  %1875 = vmatprep.subr.bf16.mxu0 0
  %1876 = vmatpush1.bf16.msra.mxu0 0
  %1877 = vmatprep.subr.bf16.mxu0 0
  %1878 = vmatpush1.bf16.msra.mxu0 0
  %1879 = vmatprep.subr.bf16.mxu0 0
  %1880 = vmatpush1.bf16.msra.mxu0 0
  %1881 = vmatprep.subr.bf16.mxu0 0
  %1882 = vmatpush1.bf16.msra.mxu0 0
  %1883 = vmatprep.subr.bf16.mxu0 0
  %1884 = vmatpush1.bf16.msra.mxu0 0
  %1885 = vmatprep.subr.bf16.mxu0 0
  %1886 = vmatpush1.bf16.msra.mxu0 0
  %1887 = vmatprep.subr.bf16.mxu0 0
  %1888 = vmatpush1.bf16.msra.mxu0 0
  %1889 = vmatprep.subr.bf16.mxu0 0
  %1890 = vmatpush1.bf16.msra.mxu0 0
  %1891 = vmatprep.subr.bf16.mxu0 0
  %1892 = vmatpush1.bf16.msra.mxu0 0
  %1893 = vmatprep.subr.bf16.mxu0 0
  %1894 = vmatpush1.bf16.msra.mxu0 0
  %1895 = vmatprep.subr.bf16.mxu0 0
  %1896 = vmatpush1.bf16.msra.mxu0 0
  %1897 = vmatprep.subr.bf16.mxu0 0
  %1898 = vmatpush1.bf16.msra.mxu0 0
  %1899 = vmatprep.subr.bf16.mxu0 0
  %1900 = vmatpush1.bf16.msra.mxu0 0
  %1901 = vmatprep.subr.bf16.mxu0 0
  %1902 = vmatpush1.bf16.msra.mxu0 0
  %1903 = vmatprep.mubr.bf16.mxu0 0
  %1904 = vmatmul.mubr.bf16.gmra.mrb[0].mxu0 %v1869
  %v1905 = vpop.f32.mrb[0].mxu0
  %v1906 = vadd.f32 0.0, %v1905
  %v1907 = vpop.f32.mrb[0].mxu0
  %v1908 = vpop.f32.mrb[0].mxu0
  %v1909 = vpop.f32.mrb[0].mxu0
  %1910 = vdwg.mxu0
  %v1911 = vadd.f32 %v1826, %v1906
  %v1912 = vxor.u32 %v1911, 2147483648
  %v1913 = vmul.f32 %v1912, 1.442695
  %v1914 = vpow.pop %v1913
  %v1915 = vadd.f32 %v1914, 1.0
  %v1916 = vrcp.pop %v1915
  %v1917 = vmul.f32 1.0, %v1916
  %v1918 = vmul.f32 %v1917, 0.0
  %v1919 = vtanh.pop %v1911
  %1921 = vrot.lane.b32.xlu0 %v1919, 64
  %v1922 = vpop.permute.xlu0 %1921
  %v1924 = vmul.f32 %v1917, %v1922
  %1926 = vrot.lane.b32.xlu0 %v1924, 32
  %v1927 = vpop.permute.xlu0 %1926
  %v1929 = vadd.f32 %v1918, %v1927
  %v1930 = vtanh.pop %v1929
  %1932 = vrot.lane.b32.xlu0 %v1930, 64
  %v1933 = vpop.permute.xlu0 %1932
  %v1935 = vmul.f32 %v1917, %v1933
  %1937 = vrot.lane.b32.xlu0 %v1935, 32
  %v1938 = vpop.permute.xlu0 %1937
  %v1940 = vsel %vm1516, %v1938, 0.0
  %v1941 = vpack.c.bf16 %v1940, %v1940
  %v1942 = vlaneseq
  %v1943 = vshrl.u32 %v1942, 7
  %v1944 = vsub.s32 0, %v1943
  %v1945 = vrot.slane %v1758, %v1944
  %v1954 = vunpack.c.l.b16 %v1749
  %v1955 = vunpack.c.l.b16 %v1750
  %v1956 = vunpack.c.l.b16 %v1751
  %v1957 = vunpack.c.l.b16 %v1752
  %v1958 = vunpack.c.l.b16 %v1753
  %v1959 = vunpack.c.l.b16 %v1754
  %v1960 = vunpack.c.l.b16 %v1755
  %v1961 = vunpack.c.l.b16 %v1756
  %v1962 = vpack.c.b16 %v1955, %v1954
  %v1963 = vpack.c.b16 %v1957, %v1956
  %v1964 = vpack.c.b16 %v1959, %v1958
  %v1965 = vpack.c.b16 %v1961, %v1960
  %v1971 = vsel %vm1575, %v1941, 0
  %1973 = vmatprep.subr.bf16.mxu0 0
  %1974 = vmatpush1.bf16.msra.mxu0 %v1962
  %1975 = vmatprep.subr.bf16.mxu0 0
  %1976 = vmatpush1.bf16.msra.mxu0 %v1963
  %1977 = vmatprep.subr.bf16.mxu0 0
  %1978 = vmatpush1.bf16.msra.mxu0 %v1964
  %1979 = vmatprep.subr.bf16.mxu0 0
  %1980 = vmatpush1.bf16.msra.mxu0 %v1965
  %1981 = vmatprep.subr.bf16.mxu0 0
  %1982 = vmatpush1.bf16.msra.mxu0 0
  %1983 = vmatprep.subr.bf16.mxu0 0
  %1984 = vmatpush1.bf16.msra.mxu0 0
  %1985 = vmatprep.subr.bf16.mxu0 0
  %1986 = vmatpush1.bf16.msra.mxu0 0
  %1987 = vmatprep.subr.bf16.mxu0 0
  %1988 = vmatpush1.bf16.msra.mxu0 0
  %1989 = vmatprep.subr.bf16.mxu0 0
  %1990 = vmatpush1.bf16.msra.mxu0 0
  %1991 = vmatprep.subr.bf16.mxu0 0
  %1992 = vmatpush1.bf16.msra.mxu0 0
  %1993 = vmatprep.subr.bf16.mxu0 0
  %1994 = vmatpush1.bf16.msra.mxu0 0
  %1995 = vmatprep.subr.bf16.mxu0 0
  %1996 = vmatpush1.bf16.msra.mxu0 0
  %1997 = vmatprep.subr.bf16.mxu0 0
  %1998 = vmatpush1.bf16.msra.mxu0 0
  %1999 = vmatprep.subr.bf16.mxu0 0
  %2000 = vmatpush1.bf16.msra.mxu0 0
  %2001 = vmatprep.subr.bf16.mxu0 0
  %2002 = vmatpush1.bf16.msra.mxu0 0
  %2003 = vmatprep.subr.bf16.mxu0 0
  %2004 = vmatpush1.bf16.msra.mxu0 0
  %2005 = vmatprep.mubr.bf16.mxu0 0
  %2006 = vmatmul.mubr.bf16.gmra.mrb[0].mxu0 %v1971
  %v2007 = vpop.f32.mrb[0].mxu0
  %v2008 = vadd.f32 %v1945, %v2007
  %v2009 = vpop.f32.mrb[0].mxu0
  %v2010 = vpop.f32.mrb[0].mxu0
  %v2011 = vpop.f32.mrb[0].mxu0
  %2012 = vdwg.mxu0
  %v2013 = vxor.u32 %v2008, 2147483648
  %v2014 = vmul.f32 %v2013, 1.442695
  %v2015 = vpow.pop %v2014
  %v2016 = vadd.f32 %v2015, 1.0
  %v2017 = vrcp.pop %v2016
  %v2018 = vmul.f32 1.0, %v2017
  %v2019 = vmul.f32 %v2018, 0.0
  %v2020 = vtanh.pop %v2008
  %2022 = vrot.lane.b32.xlu0 %v2020, 64
  %v2023 = vpop.permute.xlu0 %2022
  %v2025 = vmul.f32 %v2018, %v2023
  %2027 = vrot.lane.b32.xlu0 %v2025, 32
  %v2028 = vpop.permute.xlu0 %2027
  %v2030 = vadd.f32 %v2019, %v2028
  %v2031 = vtanh.pop %v2030
  %2033 = vrot.lane.b32.xlu0 %v2031, 64
  %v2034 = vpop.permute.xlu0 %2033
  %v2036 = vmul.f32 %v2018, %v2034
  %v2037 = vpack.c.bf16 %v1935, %v1935
  %2039 = vrot.lane.b32.xlu0 %v2037, 32
  %v2040 = vpop.permute.xlu0 %2039
  %v2042 = vsel %vm1516, %v2040, 0
  %2044 = vmatprep.subr.bf16.mxu0 0
  %2045 = vmatpush1.bf16.msra.mxu0 %v1864
  %2046 = vmatprep.subr.bf16.mxu0 0
  %2047 = vmatpush1.bf16.msra.mxu0 %v1865
  %2048 = vmatprep.subr.bf16.mxu0 0
  %2049 = vmatpush1.bf16.msra.mxu0 0
  %2050 = vmatprep.subr.bf16.mxu0 0
  %2051 = vmatpush1.bf16.msra.mxu0 0
  %2052 = vmatprep.subr.bf16.mxu0 0
  %2053 = vmatpush1.bf16.msra.mxu0 0
  %2054 = vmatprep.subr.bf16.mxu0 0
  %2055 = vmatpush1.bf16.msra.mxu0 0
  %2056 = vmatprep.subr.bf16.mxu0 0
  %2057 = vmatpush1.bf16.msra.mxu0 0
  %2058 = vmatprep.subr.bf16.mxu0 0
  %2059 = vmatpush1.bf16.msra.mxu0 0
  %2060 = vmatprep.subr.bf16.mxu0 0
  %2061 = vmatpush1.bf16.msra.mxu0 0
  %2062 = vmatprep.subr.bf16.mxu0 0
  %2063 = vmatpush1.bf16.msra.mxu0 0
  %2064 = vmatprep.subr.bf16.mxu0 0
  %2065 = vmatpush1.bf16.msra.mxu0 0
  %2066 = vmatprep.subr.bf16.mxu0 0
  %2067 = vmatpush1.bf16.msra.mxu0 0
  %2068 = vmatprep.subr.bf16.mxu0 0
  %2069 = vmatpush1.bf16.msra.mxu0 0
  %2070 = vmatprep.subr.bf16.mxu0 0
  %2071 = vmatpush1.bf16.msra.mxu0 0
  %2072 = vmatprep.subr.bf16.mxu0 0
  %2073 = vmatpush1.bf16.msra.mxu0 0
  %2074 = vmatprep.subr.bf16.mxu0 0
  %2075 = vmatpush1.bf16.msra.mxu0 0
  %2076 = vmatprep.mubr.bf16.mxu0 0
  %2077 = vmatmul.mubr.bf16.gmra.mrb[0].mxu0 %v2042
  %v2078 = vpop.f32.mrb[0].mxu0
  %v2079 = vadd.f32 0.0, %v2078
  %v2080 = vpop.f32.mrb[0].mxu0
  %v2081 = vpop.f32.mrb[0].mxu0
  %v2082 = vpop.f32.mrb[0].mxu0
  %2083 = vdwg.mxu0
  %v2084 = vadd.f32 %v1829, %v2079
  %v2085 = vxor.u32 %v2084, 2147483648
  %v2086 = vmul.f32 %v2085, 1.442695
  %v2087 = vpow.pop %v2086
  %v2088 = vadd.f32 %v2087, 1.0
  %v2089 = vrcp.pop %v2088
  %v2090 = vmul.f32 1.0, %v2089
  %v2091 = vmul.f32 %v2090, %v1929
  %v2092 = vtanh.pop %v2084
  %2094 = vrot.lane.b32.xlu0 %v2092, 64
  %v2095 = vpop.permute.xlu0 %2094
  %v2097 = vmul.f32 %v2090, %v2095
  %2099 = vrot.lane.b32.xlu0 %v2097, 32
  %v2100 = vpop.permute.xlu0 %2099
  %v2102 = vadd.f32 %v2091, %v2100
  %v2103 = vtanh.pop %v2102
  %2105 = vrot.lane.b32.xlu0 %v2103, 64
  %v2106 = vpop.permute.xlu0 %2105
  %v2108 = vmul.f32 %v2090, %v2106
  %2110 = vrot.lane.b32.xlu0 %v2108, 32
  %v2111 = vpop.permute.xlu0 %2110
  %2114 = vrot.lane.b32.xlu0 %v2036, 64
  %v2115 = vpop.permute.xlu0 %2114
  %v2117 = vsel %vm1516, %v2111, %v2115
  %v2118 = vpack.c.bf16 %v2117, %v2117
  %v2120 = vsel %vm1575, %v2118, 0
  %2122 = vmatprep.subr.bf16.mxu0 0
  %2123 = vmatpush1.bf16.msra.mxu0 %v1962
  %2124 = vmatprep.subr.bf16.mxu0 0
  %2125 = vmatpush1.bf16.msra.mxu0 %v1963
  %2126 = vmatprep.subr.bf16.mxu0 0
  %2127 = vmatpush1.bf16.msra.mxu0 %v1964
  %2128 = vmatprep.subr.bf16.mxu0 0
  %2129 = vmatpush1.bf16.msra.mxu0 %v1965
  %2130 = vmatprep.subr.bf16.mxu0 0
  %2131 = vmatpush1.bf16.msra.mxu0 0
  %2132 = vmatprep.subr.bf16.mxu0 0
  %2133 = vmatpush1.bf16.msra.mxu0 0
  %2134 = vmatprep.subr.bf16.mxu0 0
  %2135 = vmatpush1.bf16.msra.mxu0 0
  %2136 = vmatprep.subr.bf16.mxu0 0
  %2137 = vmatpush1.bf16.msra.mxu0 0
  %2138 = vmatprep.subr.bf16.mxu0 0
  %2139 = vmatpush1.bf16.msra.mxu0 0
  %2140 = vmatprep.subr.bf16.mxu0 0
  %2141 = vmatpush1.bf16.msra.mxu0 0
  %2142 = vmatprep.subr.bf16.mxu0 0
  %2143 = vmatpush1.bf16.msra.mxu0 0
  %2144 = vmatprep.subr.bf16.mxu0 0
  %2145 = vmatpush1.bf16.msra.mxu0 0
  %2146 = vmatprep.subr.bf16.mxu0 0
  %2147 = vmatpush1.bf16.msra.mxu0 0
  %2148 = vmatprep.subr.bf16.mxu0 0
  %2149 = vmatpush1.bf16.msra.mxu0 0
  %2150 = vmatprep.subr.bf16.mxu0 0
  %2151 = vmatpush1.bf16.msra.mxu0 0
  %2152 = vmatprep.subr.bf16.mxu0 0
  %2153 = vmatpush1.bf16.msra.mxu0 0
  %2154 = vmatprep.mubr.bf16.mxu0 0
  %2155 = vmatmul.mubr.bf16.gmra.mrb[0].mxu0 %v2120
  %v2156 = vpop.f32.mrb[0].mxu0
  %v2157 = vadd.f32 %v1945, %v2156
  %v2158 = vpop.f32.mrb[0].mxu0
  %v2159 = vpop.f32.mrb[0].mxu0
  %v2160 = vpop.f32.mrb[0].mxu0
  %2161 = vdwg.mxu0
  %v2162 = vxor.u32 %v2157, 2147483648
  %v2163 = vmul.f32 %v2162, 1.442695
  %v2164 = vpow.pop %v2163
  %v2165 = vadd.f32 %v2164, 1.0
  %v2166 = vrcp.pop %v2165
  %v2167 = vmul.f32 1.0, %v2166
  %v2168 = vmul.f32 %v2167, %v2030
  %v2169 = vtanh.pop %v2157
  %2171 = vrot.lane.b32.xlu0 %v2169, 64
  %v2172 = vpop.permute.xlu0 %2171
  %v2174 = vmul.f32 %v2167, %v2172
  %2176 = vrot.lane.b32.xlu0 %v2174, 32
  %v2177 = vpop.permute.xlu0 %2176
  %v2179 = vadd.f32 %v2168, %v2177
  %v2180 = vtanh.pop %v2179
  %2182 = vrot.lane.b32.xlu0 %v2180, 64
  %v2183 = vpop.permute.xlu0 %2182
  %v2185 = vmul.f32 %v2167, %v2183
  %v2186 = vpack.c.bf16 %v2108, %v2108
  %2188 = vrot.lane.b32.xlu0 %v2186, 32
  %v2189 = vpop.permute.xlu0 %2188
  %v2191 = vsel %vm1516, %v2189, 0
  %2193 = vmatprep.subr.bf16.mxu0 0
  %2194 = vmatpush1.bf16.msra.mxu0 %v1864
  %2195 = vmatprep.subr.bf16.mxu0 0
  %2196 = vmatpush1.bf16.msra.mxu0 %v1865
  %2197 = vmatprep.subr.bf16.mxu0 0
  %2198 = vmatpush1.bf16.msra.mxu0 0
  %2199 = vmatprep.subr.bf16.mxu0 0
  %2200 = vmatpush1.bf16.msra.mxu0 0
  %2201 = vmatprep.subr.bf16.mxu0 0
  %2202 = vmatpush1.bf16.msra.mxu0 0
  %2203 = vmatprep.subr.bf16.mxu0 0
  %2204 = vmatpush1.bf16.msra.mxu0 0
  %2205 = vmatprep.subr.bf16.mxu0 0
  %2206 = vmatpush1.bf16.msra.mxu0 0
  %2207 = vmatprep.subr.bf16.mxu0 0
  %2208 = vmatpush1.bf16.msra.mxu0 0
  %2209 = vmatprep.subr.bf16.mxu0 0
  %2210 = vmatpush1.bf16.msra.mxu0 0
  %2211 = vmatprep.subr.bf16.mxu0 0
  %2212 = vmatpush1.bf16.msra.mxu0 0
  %2213 = vmatprep.subr.bf16.mxu0 0
  %2214 = vmatpush1.bf16.msra.mxu0 0
  %2215 = vmatprep.subr.bf16.mxu0 0
  %2216 = vmatpush1.bf16.msra.mxu0 0
  %2217 = vmatprep.subr.bf16.mxu0 0
  %2218 = vmatpush1.bf16.msra.mxu0 0
  %2219 = vmatprep.subr.bf16.mxu0 0
  %2220 = vmatpush1.bf16.msra.mxu0 0
  %2221 = vmatprep.subr.bf16.mxu0 0
  %2222 = vmatpush1.bf16.msra.mxu0 0
  %2223 = vmatprep.subr.bf16.mxu0 0
  %2224 = vmatpush1.bf16.msra.mxu0 0
  %2225 = vmatprep.mubr.bf16.mxu0 0
  %2226 = vmatmul.mubr.bf16.gmra.mrb[0].mxu0 %v2191
  %v2227 = vpop.f32.mrb[0].mxu0
  %v2228 = vadd.f32 0.0, %v2227
  %v2229 = vpop.f32.mrb[0].mxu0
  %v2230 = vpop.f32.mrb[0].mxu0
  %v2231 = vpop.f32.mrb[0].mxu0
  %2232 = vdwg.mxu0
  %v2233 = vadd.f32 %v1834, %v2228
  %v2234 = vxor.u32 %v2233, 2147483648
  %v2235 = vmul.f32 %v2234, 1.442695
  %v2236 = vpow.pop %v2235
  %v2237 = vadd.f32 %v2236, 1.0
  %v2238 = vrcp.pop %v2237
  %v2239 = vmul.f32 1.0, %v2238
  %v2240 = vmul.f32 %v2239, %v2102
  %v2241 = vtanh.pop %v2233
  %2243 = vrot.lane.b32.xlu0 %v2241, 64
  %v2244 = vpop.permute.xlu0 %2243
  %v2246 = vmul.f32 %v2239, %v2244
  %2248 = vrot.lane.b32.xlu0 %v2246, 32
  %v2249 = vpop.permute.xlu0 %2248
  %v2251 = vadd.f32 %v2240, %v2249
  %v2252 = vtanh.pop %v2251
  %2254 = vrot.lane.b32.xlu0 %v2252, 64
  %v2255 = vpop.permute.xlu0 %2254
  %v2257 = vmul.f32 %v2239, %v2255
  %2259 = vrot.lane.b32.xlu0 %v2257, 32
  %v2260 = vpop.permute.xlu0 %2259
  %2263 = vrot.lane.b32.xlu0 %v2185, 64
  %v2264 = vpop.permute.xlu0 %2263
  %v2266 = vsel %vm1516, %v2260, %v2264
  %v2267 = vpack.c.bf16 %v2266, %v2266
  %v2269 = vsel %vm1575, %v2267, 0
  %2271 = vmatprep.subr.bf16.mxu0 0
  %2272 = vmatpush1.bf16.msra.mxu0 %v1962
  %2273 = vmatprep.subr.bf16.mxu0 0
  %2274 = vmatpush1.bf16.msra.mxu0 %v1963
  %2275 = vmatprep.subr.bf16.mxu0 0
  %2276 = vmatpush1.bf16.msra.mxu0 %v1964
  %2277 = vmatprep.subr.bf16.mxu0 0
  %2278 = vmatpush1.bf16.msra.mxu0 %v1965
  %2279 = vmatprep.subr.bf16.mxu0 0
  %2280 = vmatpush1.bf16.msra.mxu0 0
  %2281 = vmatprep.subr.bf16.mxu0 0
  %2282 = vmatpush1.bf16.msra.mxu0 0
  %2283 = vmatprep.subr.bf16.mxu0 0
  %2284 = vmatpush1.bf16.msra.mxu0 0
  %2285 = vmatprep.subr.bf16.mxu0 0
  %2286 = vmatpush1.bf16.msra.mxu0 0
  %2287 = vmatprep.subr.bf16.mxu0 0
  %2288 = vmatpush1.bf16.msra.mxu0 0
  %2289 = vmatprep.subr.bf16.mxu0 0
  %2290 = vmatpush1.bf16.msra.mxu0 0
  %2291 = vmatprep.subr.bf16.mxu0 0
  %2292 = vmatpush1.bf16.msra.mxu0 0
  %2293 = vmatprep.subr.bf16.mxu0 0
  %2294 = vmatpush1.bf16.msra.mxu0 0
  %2295 = vmatprep.subr.bf16.mxu0 0
  %2296 = vmatpush1.bf16.msra.mxu0 0
  %2297 = vmatprep.subr.bf16.mxu0 0
  %2298 = vmatpush1.bf16.msra.mxu0 0
  %2299 = vmatprep.subr.bf16.mxu0 0
  %2300 = vmatpush1.bf16.msra.mxu0 0
  %2301 = vmatprep.subr.bf16.mxu0 0
  %2302 = vmatpush1.bf16.msra.mxu0 0
  %2303 = vmatprep.mubr.bf16.mxu0 0
  %2304 = vmatmul.mubr.bf16.gmra.mrb[0].mxu0 %v2269
  %v2305 = vpop.f32.mrb[0].mxu0
  %v2306 = vadd.f32 %v1945, %v2305
  %v2307 = vpop.f32.mrb[0].mxu0
  %v2308 = vpop.f32.mrb[0].mxu0
  %v2309 = vpop.f32.mrb[0].mxu0
  %2310 = vdwg.mxu0
  %v2311 = vxor.u32 %v2306, 2147483648
  %v2312 = vmul.f32 %v2311, 1.442695
  %v2313 = vpow.pop %v2312
  %v2314 = vadd.f32 %v2313, 1.0
  %v2315 = vrcp.pop %v2314
  %v2316 = vmul.f32 1.0, %v2315
  %v2317 = vmul.f32 %v2316, %v2179
  %v2318 = vtanh.pop %v2306
  %2320 = vrot.lane.b32.xlu0 %v2318, 64
  %v2321 = vpop.permute.xlu0 %2320
  %v2323 = vmul.f32 %v2316, %v2321
  %2325 = vrot.lane.b32.xlu0 %v2323, 32
  %v2326 = vpop.permute.xlu0 %2325
  %v2328 = vadd.f32 %v2317, %v2326
  %v2329 = vtanh.pop %v2328
  %2331 = vrot.lane.b32.xlu0 %v2329, 64
  %v2332 = vpop.permute.xlu0 %2331
  %v2334 = vmul.f32 %v2316, %v2332
  %v2335 = vpack.c.bf16 %v2257, %v2257
  %2337 = vrot.lane.b32.xlu0 %v2335, 32
  %v2338 = vpop.permute.xlu0 %2337
  %v2340 = vsel %vm1516, %v2338, 0
  %2342 = vmatprep.subr.bf16.mxu0 0
  %2343 = vmatpush1.bf16.msra.mxu0 %v1864
  %2344 = vmatprep.subr.bf16.mxu0 0
  %2345 = vmatpush1.bf16.msra.mxu0 %v1865
  %2346 = vmatprep.subr.bf16.mxu0 0
  %2347 = vmatpush1.bf16.msra.mxu0 0
  %2348 = vmatprep.subr.bf16.mxu0 0
  %2349 = vmatpush1.bf16.msra.mxu0 0
  %2350 = vmatprep.subr.bf16.mxu0 0
  %2351 = vmatpush1.bf16.msra.mxu0 0
  %2352 = vmatprep.subr.bf16.mxu0 0
  %2353 = vmatpush1.bf16.msra.mxu0 0
  %2354 = vmatprep.subr.bf16.mxu0 0
  %2355 = vmatpush1.bf16.msra.mxu0 0
  %2356 = vmatprep.subr.bf16.mxu0 0
  %2357 = vmatpush1.bf16.msra.mxu0 0
  %2358 = vmatprep.subr.bf16.mxu0 0
  %2359 = vmatpush1.bf16.msra.mxu0 0
  %2360 = vmatprep.subr.bf16.mxu0 0
  %2361 = vmatpush1.bf16.msra.mxu0 0
  %2362 = vmatprep.subr.bf16.mxu0 0
  %2363 = vmatpush1.bf16.msra.mxu0 0
  %2364 = vmatprep.subr.bf16.mxu0 0
  %2365 = vmatpush1.bf16.msra.mxu0 0
  %2366 = vmatprep.subr.bf16.mxu0 0
  %2367 = vmatpush1.bf16.msra.mxu0 0
  %2368 = vmatprep.subr.bf16.mxu0 0
  %2369 = vmatpush1.bf16.msra.mxu0 0
  %2370 = vmatprep.subr.bf16.mxu0 0
  %2371 = vmatpush1.bf16.msra.mxu0 0
  %2372 = vmatprep.subr.bf16.mxu0 0
  %2373 = vmatpush1.bf16.msra.mxu0 0
  %2374 = vmatprep.mubr.bf16.mxu0 0
  %2375 = vmatmul.mubr.bf16.gmra.mrb[0].mxu0 %v2340
  %v2376 = vpop.f32.mrb[0].mxu0
  %v2377 = vadd.f32 0.0, %v2376
  %v2378 = vpop.f32.mrb[0].mxu0
  %v2379 = vpop.f32.mrb[0].mxu0
  %v2380 = vpop.f32.mrb[0].mxu0
  %2381 = vdwg.mxu0
  %v2382 = vadd.f32 %v1837, %v2377
  %v2383 = vxor.u32 %v2382, 2147483648
  %v2384 = vmul.f32 %v2383, 1.442695
  %v2385 = vpow.pop %v2384
  %v2386 = vadd.f32 %v2385, 1.0
  %v2387 = vrcp.pop %v2386
  %v2388 = vmul.f32 1.0, %v2387
  %v2389 = vmul.f32 %v2388, %v2251
  %v2390 = vtanh.pop %v2382
  %2392 = vrot.lane.b32.xlu0 %v2390, 64
  %v2393 = vpop.permute.xlu0 %2392
  %v2395 = vmul.f32 %v2388, %v2393
  %2397 = vrot.lane.b32.xlu0 %v2395, 32
  %v2398 = vpop.permute.xlu0 %2397
  %v2400 = vadd.f32 %v2389, %v2398
  %v2401 = vtanh.pop %v2400
  %2403 = vrot.lane.b32.xlu0 %v2401, 64
  %v2404 = vpop.permute.xlu0 %2403
  %v2406 = vmul.f32 %v2388, %v2404
  %2408 = vrot.lane.b32.xlu0 %v2406, 32
  %v2409 = vpop.permute.xlu0 %2408
  %2412 = vrot.lane.b32.xlu0 %v2334, 64
  %v2413 = vpop.permute.xlu0 %2412
  %v2415 = vsel %vm1516, %v2409, %v2413
  %v2416 = vpack.c.bf16 %v2415, %v2415
  %v2418 = vsel %vm1575, %v2416, 0
  %2420 = vmatprep.subr.bf16.mxu0 0
  %2421 = vmatpush1.bf16.msra.mxu0 %v1962
  %2422 = vmatprep.subr.bf16.mxu0 0
  %2423 = vmatpush1.bf16.msra.mxu0 %v1963
  %2424 = vmatprep.subr.bf16.mxu0 0
  %2425 = vmatpush1.bf16.msra.mxu0 %v1964
  %2426 = vmatprep.subr.bf16.mxu0 0
  %2427 = vmatpush1.bf16.msra.mxu0 %v1965
  %2428 = vmatprep.subr.bf16.mxu0 0
  %2429 = vmatpush1.bf16.msra.mxu0 0
  %2430 = vmatprep.subr.bf16.mxu0 0
  %2431 = vmatpush1.bf16.msra.mxu0 0
  %2432 = vmatprep.subr.bf16.mxu0 0
  %2433 = vmatpush1.bf16.msra.mxu0 0
  %2434 = vmatprep.subr.bf16.mxu0 0
  %2435 = vmatpush1.bf16.msra.mxu0 0
  %2436 = vmatprep.subr.bf16.mxu0 0
  %2437 = vmatpush1.bf16.msra.mxu0 0
  %2438 = vmatprep.subr.bf16.mxu0 0
  %2439 = vmatpush1.bf16.msra.mxu0 0
  %2440 = vmatprep.subr.bf16.mxu0 0
  %2441 = vmatpush1.bf16.msra.mxu0 0
  %2442 = vmatprep.subr.bf16.mxu0 0
  %2443 = vmatpush1.bf16.msra.mxu0 0
  %2444 = vmatprep.subr.bf16.mxu0 0
  %2445 = vmatpush1.bf16.msra.mxu0 0
  %2446 = vmatprep.subr.bf16.mxu0 0
  %2447 = vmatpush1.bf16.msra.mxu0 0
  %2448 = vmatprep.subr.bf16.mxu0 0
  %2449 = vmatpush1.bf16.msra.mxu0 0
  %2450 = vmatprep.subr.bf16.mxu0 0
  %2451 = vmatpush1.bf16.msra.mxu0 0
  %2452 = vmatprep.mubr.bf16.mxu0 0
  %2453 = vmatmul.mubr.bf16.gmra.mrb[0].mxu0 %v2418
  %v2454 = vpop.f32.mrb[0].mxu0
  %v2455 = vadd.f32 %v1945, %v2454
  %v2456 = vpop.f32.mrb[0].mxu0
  %v2457 = vpop.f32.mrb[0].mxu0
  %v2458 = vpop.f32.mrb[0].mxu0
  %2459 = vdwg.mxu0
  %v2460 = vxor.u32 %v2455, 2147483648
  %v2461 = vmul.f32 %v2460, 1.442695
  %v2462 = vpow.pop %v2461
  %v2463 = vadd.f32 %v2462, 1.0
  %v2464 = vrcp.pop %v2463
  %v2465 = vmul.f32 1.0, %v2464
  %v2466 = vmul.f32 %v2465, %v2328
  %v2467 = vtanh.pop %v2455
  %2469 = vrot.lane.b32.xlu0 %v2467, 64
  %v2470 = vpop.permute.xlu0 %2469
  %v2472 = vmul.f32 %v2465, %v2470
  %2474 = vrot.lane.b32.xlu0 %v2472, 32
  %v2475 = vpop.permute.xlu0 %2474
  %v2477 = vadd.f32 %v2466, %v2475
  %v2478 = vtanh.pop %v2477
  %2480 = vrot.lane.b32.xlu0 %v2478, 64
  %v2481 = vpop.permute.xlu0 %2480
  %v2483 = vmul.f32 %v2465, %v2481
  %v2484 = vpack.c.bf16 %v2406, %v2406
  %2486 = vrot.lane.b32.xlu0 %v2484, 32
  %v2487 = vpop.permute.xlu0 %2486
  %v2489 = vsel %vm1516, %v2487, 0
  %2491 = vmatprep.subr.bf16.mxu0 0
  %2492 = vmatpush1.bf16.msra.mxu0 %v1864
  %2493 = vmatprep.subr.bf16.mxu0 0
  %2494 = vmatpush1.bf16.msra.mxu0 %v1865
  %2495 = vmatprep.subr.bf16.mxu0 0
  %2496 = vmatpush1.bf16.msra.mxu0 0
  %2497 = vmatprep.subr.bf16.mxu0 0
  %2498 = vmatpush1.bf16.msra.mxu0 0
  %2499 = vmatprep.subr.bf16.mxu0 0
  %2500 = vmatpush1.bf16.msra.mxu0 0
  %2501 = vmatprep.subr.bf16.mxu0 0
  %2502 = vmatpush1.bf16.msra.mxu0 0
  %2503 = vmatprep.subr.bf16.mxu0 0
  %2504 = vmatpush1.bf16.msra.mxu0 0
  %2505 = vmatprep.subr.bf16.mxu0 0
  %2506 = vmatpush1.bf16.msra.mxu0 0
  %2507 = vmatprep.subr.bf16.mxu0 0
  %2508 = vmatpush1.bf16.msra.mxu0 0
  %2509 = vmatprep.subr.bf16.mxu0 0
  %2510 = vmatpush1.bf16.msra.mxu0 0
  %2511 = vmatprep.subr.bf16.mxu0 0
  %2512 = vmatpush1.bf16.msra.mxu0 0
  %2513 = vmatprep.subr.bf16.mxu0 0
  %2514 = vmatpush1.bf16.msra.mxu0 0
  %2515 = vmatprep.subr.bf16.mxu0 0
  %2516 = vmatpush1.bf16.msra.mxu0 0
  %2517 = vmatprep.subr.bf16.mxu0 0
  %2518 = vmatpush1.bf16.msra.mxu0 0
  %2519 = vmatprep.subr.bf16.mxu0 0
  %2520 = vmatpush1.bf16.msra.mxu0 0
  %2521 = vmatprep.subr.bf16.mxu0 0
  %2522 = vmatpush1.bf16.msra.mxu0 0
  %2523 = vmatprep.mubr.bf16.mxu0 0
  %2524 = vmatmul.mubr.bf16.gmra.mrb[0].mxu0 %v2489
  %v2525 = vpop.f32.mrb[0].mxu0
  %v2526 = vadd.f32 0.0, %v2525
  %v2527 = vpop.f32.mrb[0].mxu0
  %v2528 = vpop.f32.mrb[0].mxu0
  %v2529 = vpop.f32.mrb[0].mxu0
  %2530 = vdwg.mxu0
  %v2531 = vadd.f32 %v1842, %v2526
  %v2532 = vxor.u32 %v2531, 2147483648
  %v2533 = vmul.f32 %v2532, 1.442695
  %v2534 = vpow.pop %v2533
  %v2535 = vadd.f32 %v2534, 1.0
  %v2536 = vrcp.pop %v2535
  %v2537 = vmul.f32 1.0, %v2536
  %v2538 = vmul.f32 %v2537, %v2400
  %v2539 = vtanh.pop %v2531
  %2541 = vrot.lane.b32.xlu0 %v2539, 64
  %v2542 = vpop.permute.xlu0 %2541
  %v2544 = vmul.f32 %v2537, %v2542
  %2546 = vrot.lane.b32.xlu0 %v2544, 32
  %v2547 = vpop.permute.xlu0 %2546
  %v2549 = vadd.f32 %v2538, %v2547
  %v2550 = vtanh.pop %v2549
  %2552 = vrot.lane.b32.xlu0 %v2550, 64
  %v2553 = vpop.permute.xlu0 %2552
  %v2555 = vmul.f32 %v2537, %v2553
  %2557 = vrot.lane.b32.xlu0 %v2555, 32
  %v2558 = vpop.permute.xlu0 %2557
  %2561 = vrot.lane.b32.xlu0 %v2483, 64
  %v2562 = vpop.permute.xlu0 %2561
  %v2564 = vsel %vm1516, %v2558, %v2562
  %v2565 = vpack.c.bf16 %v2564, %v2564
  %v2567 = vsel %vm1575, %v2565, 0
  %2569 = vmatprep.subr.bf16.mxu0 0
  %2570 = vmatpush1.bf16.msra.mxu0 %v1962
  %2571 = vmatprep.subr.bf16.mxu0 0
  %2572 = vmatpush1.bf16.msra.mxu0 %v1963
  %2573 = vmatprep.subr.bf16.mxu0 0
  %2574 = vmatpush1.bf16.msra.mxu0 %v1964
  %2575 = vmatprep.subr.bf16.mxu0 0
  %2576 = vmatpush1.bf16.msra.mxu0 %v1965
  %2577 = vmatprep.subr.bf16.mxu0 0
  %2578 = vmatpush1.bf16.msra.mxu0 0
  %2579 = vmatprep.subr.bf16.mxu0 0
  %2580 = vmatpush1.bf16.msra.mxu0 0
  %2581 = vmatprep.subr.bf16.mxu0 0
  %2582 = vmatpush1.bf16.msra.mxu0 0
  %2583 = vmatprep.subr.bf16.mxu0 0
  %2584 = vmatpush1.bf16.msra.mxu0 0
  %2585 = vmatprep.subr.bf16.mxu0 0
  %2586 = vmatpush1.bf16.msra.mxu0 0
  %2587 = vmatprep.subr.bf16.mxu0 0
  %2588 = vmatpush1.bf16.msra.mxu0 0
  %2589 = vmatprep.subr.bf16.mxu0 0
  %2590 = vmatpush1.bf16.msra.mxu0 0
  %2591 = vmatprep.subr.bf16.mxu0 0
  %2592 = vmatpush1.bf16.msra.mxu0 0
  %2593 = vmatprep.subr.bf16.mxu0 0
  %2594 = vmatpush1.bf16.msra.mxu0 0
  %2595 = vmatprep.subr.bf16.mxu0 0
  %2596 = vmatpush1.bf16.msra.mxu0 0
  %2597 = vmatprep.subr.bf16.mxu0 0
  %2598 = vmatpush1.bf16.msra.mxu0 0
  %2599 = vmatprep.subr.bf16.mxu0 0
  %2600 = vmatpush1.bf16.msra.mxu0 0
  %2601 = vmatprep.mubr.bf16.mxu0 0
  %2602 = vmatmul.mubr.bf16.gmra.mrb[0].mxu0 %v2567
  %v2603 = vpop.f32.mrb[0].mxu0
  %v2604 = vadd.f32 %v1945, %v2603
  %v2605 = vpop.f32.mrb[0].mxu0
  %v2606 = vpop.f32.mrb[0].mxu0
  %v2607 = vpop.f32.mrb[0].mxu0
  %2608 = vdwg.mxu0
  %v2609 = vxor.u32 %v2604, 2147483648
  %v2610 = vmul.f32 %v2609, 1.442695
  %v2611 = vpow.pop %v2610
  %v2612 = vadd.f32 %v2611, 1.0
  %v2613 = vrcp.pop %v2612
  %v2614 = vmul.f32 1.0, %v2613
  %v2615 = vmul.f32 %v2614, %v2477
  %v2616 = vtanh.pop %v2604
  %2618 = vrot.lane.b32.xlu0 %v2616, 64
  %v2619 = vpop.permute.xlu0 %2618
  %v2621 = vmul.f32 %v2614, %v2619
  %2623 = vrot.lane.b32.xlu0 %v2621, 32
  %v2624 = vpop.permute.xlu0 %2623
  %v2626 = vadd.f32 %v2615, %v2624
  %v2627 = vtanh.pop %v2626
  %2629 = vrot.lane.b32.xlu0 %v2627, 64
  %v2630 = vpop.permute.xlu0 %2629
  %v2632 = vmul.f32 %v2614, %v2630
  %v2633 = vpack.c.bf16 %v2555, %v2555
  %2635 = vrot.lane.b32.xlu0 %v2633, 32
  %v2636 = vpop.permute.xlu0 %2635
  %v2638 = vsel %vm1516, %v2636, 0
  %2640 = vmatprep.subr.bf16.mxu0 0
  %2641 = vmatpush1.bf16.msra.mxu0 %v1864
  %2642 = vmatprep.subr.bf16.mxu0 0
  %2643 = vmatpush1.bf16.msra.mxu0 %v1865
  %2644 = vmatprep.subr.bf16.mxu0 0
  %2645 = vmatpush1.bf16.msra.mxu0 0
  %2646 = vmatprep.subr.bf16.mxu0 0
  %2647 = vmatpush1.bf16.msra.mxu0 0
  %2648 = vmatprep.subr.bf16.mxu0 0
  %2649 = vmatpush1.bf16.msra.mxu0 0
  %2650 = vmatprep.subr.bf16.mxu0 0
  %2651 = vmatpush1.bf16.msra.mxu0 0
  %2652 = vmatprep.subr.bf16.mxu0 0
  %2653 = vmatpush1.bf16.msra.mxu0 0
  %2654 = vmatprep.subr.bf16.mxu0 0
  %2655 = vmatpush1.bf16.msra.mxu0 0
  %2656 = vmatprep.subr.bf16.mxu0 0
  %2657 = vmatpush1.bf16.msra.mxu0 0
  %2658 = vmatprep.subr.bf16.mxu0 0
  %2659 = vmatpush1.bf16.msra.mxu0 0
  %2660 = vmatprep.subr.bf16.mxu0 0
  %2661 = vmatpush1.bf16.msra.mxu0 0
  %2662 = vmatprep.subr.bf16.mxu0 0
  %2663 = vmatpush1.bf16.msra.mxu0 0
  %2664 = vmatprep.subr.bf16.mxu0 0
  %2665 = vmatpush1.bf16.msra.mxu0 0
  %2666 = vmatprep.subr.bf16.mxu0 0
  %2667 = vmatpush1.bf16.msra.mxu0 0
  %2668 = vmatprep.subr.bf16.mxu0 0
  %2669 = vmatpush1.bf16.msra.mxu0 0
  %2670 = vmatprep.subr.bf16.mxu0 0
  %2671 = vmatpush1.bf16.msra.mxu0 0
  %2672 = vmatprep.mubr.bf16.mxu0 0
  %2673 = vmatmul.mubr.bf16.gmra.mrb[0].mxu0 %v2638
  %v2674 = vpop.f32.mrb[0].mxu0
  %v2675 = vadd.f32 0.0, %v2674
  %v2676 = vpop.f32.mrb[0].mxu0
  %v2677 = vpop.f32.mrb[0].mxu0
  %v2678 = vpop.f32.mrb[0].mxu0
  %2679 = vdwg.mxu0
  %v2680 = vadd.f32 %v1845, %v2675
  %v2681 = vxor.u32 %v2680, 2147483648
  %v2682 = vmul.f32 %v2681, 1.442695
  %v2683 = vpow.pop %v2682
  %v2684 = vadd.f32 %v2683, 1.0
  %v2685 = vrcp.pop %v2684
  %v2686 = vmul.f32 1.0, %v2685
  %v2687 = vmul.f32 %v2686, %v2549
  %v2688 = vtanh.pop %v2680
  %2690 = vrot.lane.b32.xlu0 %v2688, 64
  %v2691 = vpop.permute.xlu0 %2690
  %v2693 = vmul.f32 %v2686, %v2691
  %2695 = vrot.lane.b32.xlu0 %v2693, 32
  %v2696 = vpop.permute.xlu0 %2695
  %v2698 = vadd.f32 %v2687, %v2696
  %v2699 = vtanh.pop %v2698
  %2701 = vrot.lane.b32.xlu0 %v2699, 64
  %v2702 = vpop.permute.xlu0 %2701
  %v2704 = vmul.f32 %v2686, %v2702
  %2706 = vrot.lane.b32.xlu0 %v2704, 32
  %v2707 = vpop.permute.xlu0 %2706
  %2710 = vrot.lane.b32.xlu0 %v2632, 64
  %v2711 = vpop.permute.xlu0 %2710
  %v2713 = vsel %vm1516, %v2707, %v2711
  %v2714 = vpack.c.bf16 %v2713, %v2713
  %v2716 = vsel %vm1575, %v2714, 0
  %2718 = vmatprep.subr.bf16.mxu0 0
  %2719 = vmatpush1.bf16.msra.mxu0 %v1962
  %2720 = vmatprep.subr.bf16.mxu0 0
  %2721 = vmatpush1.bf16.msra.mxu0 %v1963
  %2722 = vmatprep.subr.bf16.mxu0 0
  %2723 = vmatpush1.bf16.msra.mxu0 %v1964
  %2724 = vmatprep.subr.bf16.mxu0 0
  %2725 = vmatpush1.bf16.msra.mxu0 %v1965
  %2726 = vmatprep.subr.bf16.mxu0 0
  %2727 = vmatpush1.bf16.msra.mxu0 0
  %2728 = vmatprep.subr.bf16.mxu0 0
  %2729 = vmatpush1.bf16.msra.mxu0 0
  %2730 = vmatprep.subr.bf16.mxu0 0
  %2731 = vmatpush1.bf16.msra.mxu0 0
  %2732 = vmatprep.subr.bf16.mxu0 0
  %2733 = vmatpush1.bf16.msra.mxu0 0
  %2734 = vmatprep.subr.bf16.mxu0 0
  %2735 = vmatpush1.bf16.msra.mxu0 0
  %2736 = vmatprep.subr.bf16.mxu0 0
  %2737 = vmatpush1.bf16.msra.mxu0 0
  %2738 = vmatprep.subr.bf16.mxu0 0
  %2739 = vmatpush1.bf16.msra.mxu0 0
  %2740 = vmatprep.subr.bf16.mxu0 0
  %2741 = vmatpush1.bf16.msra.mxu0 0
  %2742 = vmatprep.subr.bf16.mxu0 0
  %2743 = vmatpush1.bf16.msra.mxu0 0
  %2744 = vmatprep.subr.bf16.mxu0 0
  %2745 = vmatpush1.bf16.msra.mxu0 0
  %2746 = vmatprep.subr.bf16.mxu0 0
  %2747 = vmatpush1.bf16.msra.mxu0 0
  %2748 = vmatprep.subr.bf16.mxu0 0
  %2749 = vmatpush1.bf16.msra.mxu0 0
  %2750 = vmatprep.mubr.bf16.mxu0 0
  %2751 = vmatmul.mubr.bf16.gmra.mrb[0].mxu0 %v2716
  %v2752 = vpop.f32.mrb[0].mxu0
  %v2753 = vadd.f32 %v1945, %v2752
  %v2754 = vpop.f32.mrb[0].mxu0
  %v2755 = vpop.f32.mrb[0].mxu0
  %v2756 = vpop.f32.mrb[0].mxu0
  %2757 = vdwg.mxu0
  %v2758 = vxor.u32 %v2753, 2147483648
  %v2759 = vmul.f32 %v2758, 1.442695
  %v2760 = vpow.pop %v2759
  %v2761 = vadd.f32 %v2760, 1.0
  %v2762 = vrcp.pop %v2761
  %v2763 = vmul.f32 1.0, %v2762
  %v2764 = vmul.f32 %v2763, %v2626
  %v2765 = vtanh.pop %v2753
  %2767 = vrot.lane.b32.xlu0 %v2765, 64
  %v2768 = vpop.permute.xlu0 %2767
  %v2770 = vmul.f32 %v2763, %v2768
  %2772 = vrot.lane.b32.xlu0 %v2770, 32
  %v2773 = vpop.permute.xlu0 %2772
  %v2775 = vadd.f32 %v2764, %v2773
  %v2776 = vtanh.pop %v2775
  %2778 = vrot.lane.b32.xlu0 %v2776, 64
  %v2779 = vpop.permute.xlu0 %2778
  %v2781 = vmul.f32 %v2763, %v2779
  %v2782 = vpack.c.bf16 %v2704, %v2704
  %2784 = vrot.lane.b32.xlu0 %v2782, 32
  %v2785 = vpop.permute.xlu0 %2784
  %v2787 = vsel %vm1516, %v2785, 0
  %2789 = vmatprep.subr.bf16.mxu0 0
  %2790 = vmatpush1.bf16.msra.mxu0 %v1864
  %2791 = vmatprep.subr.bf16.mxu0 0
  %2792 = vmatpush1.bf16.msra.mxu0 %v1865
  %2793 = vmatprep.subr.bf16.mxu0 0
  %2794 = vmatpush1.bf16.msra.mxu0 0
  %2795 = vmatprep.subr.bf16.mxu0 0
  %2796 = vmatpush1.bf16.msra.mxu0 0
  %2797 = vmatprep.subr.bf16.mxu0 0
  %2798 = vmatpush1.bf16.msra.mxu0 0
  %2799 = vmatprep.subr.bf16.mxu0 0
  %2800 = vmatpush1.bf16.msra.mxu0 0
  %2801 = vmatprep.subr.bf16.mxu0 0
  %2802 = vmatpush1.bf16.msra.mxu0 0
  %2803 = vmatprep.subr.bf16.mxu0 0
  %2804 = vmatpush1.bf16.msra.mxu0 0
  %2805 = vmatprep.subr.bf16.mxu0 0
  %2806 = vmatpush1.bf16.msra.mxu0 0
  %2807 = vmatprep.subr.bf16.mxu0 0
  %2808 = vmatpush1.bf16.msra.mxu0 0
  %2809 = vmatprep.subr.bf16.mxu0 0
  %2810 = vmatpush1.bf16.msra.mxu0 0
  %2811 = vmatprep.subr.bf16.mxu0 0
  %2812 = vmatpush1.bf16.msra.mxu0 0
  %2813 = vmatprep.subr.bf16.mxu0 0
  %2814 = vmatpush1.bf16.msra.mxu0 0
  %2815 = vmatprep.subr.bf16.mxu0 0
  %2816 = vmatpush1.bf16.msra.mxu0 0
  %2817 = vmatprep.subr.bf16.mxu0 0
  %2818 = vmatpush1.bf16.msra.mxu0 0
  %2819 = vmatprep.subr.bf16.mxu0 0
  %2820 = vmatpush1.bf16.msra.mxu0 0
  %2821 = vmatprep.mubr.bf16.mxu0 0
  %2822 = vmatmul.mubr.bf16.gmra.mrb[0].mxu0 %v2787
  %v2823 = vpop.f32.mrb[0].mxu0
  %v2824 = vadd.f32 0.0, %v2823
  %v2825 = vpop.f32.mrb[0].mxu0
  %v2826 = vpop.f32.mrb[0].mxu0
  %v2827 = vpop.f32.mrb[0].mxu0
  %2828 = vdwg.mxu0
  %v2829 = vadd.f32 %v1850, %v2824
  %v2830 = vxor.u32 %v2829, 2147483648
  %v2831 = vmul.f32 %v2830, 1.442695
  %v2832 = vpow.pop %v2831
  %v2833 = vadd.f32 %v2832, 1.0
  %v2834 = vrcp.pop %v2833
  %v2835 = vmul.f32 1.0, %v2834
  %v2836 = vmul.f32 %v2835, %v2698
  %v2837 = vtanh.pop %v2829
  %2839 = vrot.lane.b32.xlu0 %v2837, 64
  %v2840 = vpop.permute.xlu0 %2839
  %v2842 = vmul.f32 %v2835, %v2840
  %2844 = vrot.lane.b32.xlu0 %v2842, 32
  %v2845 = vpop.permute.xlu0 %2844
  %v2847 = vadd.f32 %v2836, %v2845
  %v2848 = vtanh.pop %v2847
  %2850 = vrot.lane.b32.xlu0 %v2848, 64
  %v2851 = vpop.permute.xlu0 %2850
  %v2853 = vmul.f32 %v2835, %v2851
  %2855 = vrot.lane.b32.xlu0 %v2853, 32
  %v2856 = vpop.permute.xlu0 %2855
  %2859 = vrot.lane.b32.xlu0 %v2781, 64
  %v2860 = vpop.permute.xlu0 %2859
  %v2862 = vsel %vm1516, %v2856, %v2860
  %v2863 = vpack.c.bf16 %v2862, %v2862
  %v2865 = vsel %vm1575, %v2863, 0
  %2867 = vmatprep.subr.bf16.mxu0 0
  %2868 = vmatpush1.bf16.msra.mxu0 %v1962
  %2869 = vmatprep.subr.bf16.mxu0 0
  %2870 = vmatpush1.bf16.msra.mxu0 %v1963
  %2871 = vmatprep.subr.bf16.mxu0 0
  %2872 = vmatpush1.bf16.msra.mxu0 %v1964
  %2873 = vmatprep.subr.bf16.mxu0 0
  %2874 = vmatpush1.bf16.msra.mxu0 %v1965
  %2875 = vmatprep.subr.bf16.mxu0 0
  %2876 = vmatpush1.bf16.msra.mxu0 0
  %2877 = vmatprep.subr.bf16.mxu0 0
  %2878 = vmatpush1.bf16.msra.mxu0 0
  %2879 = vmatprep.subr.bf16.mxu0 0
  %2880 = vmatpush1.bf16.msra.mxu0 0
  %2881 = vmatprep.subr.bf16.mxu0 0
  %2882 = vmatpush1.bf16.msra.mxu0 0
  %2883 = vmatprep.subr.bf16.mxu0 0
  %2884 = vmatpush1.bf16.msra.mxu0 0
  %2885 = vmatprep.subr.bf16.mxu0 0
  %2886 = vmatpush1.bf16.msra.mxu0 0
  %2887 = vmatprep.subr.bf16.mxu0 0
  %2888 = vmatpush1.bf16.msra.mxu0 0
  %2889 = vmatprep.subr.bf16.mxu0 0
  %2890 = vmatpush1.bf16.msra.mxu0 0
  %2891 = vmatprep.subr.bf16.mxu0 0
  %2892 = vmatpush1.bf16.msra.mxu0 0
  %2893 = vmatprep.subr.bf16.mxu0 0
  %2894 = vmatpush1.bf16.msra.mxu0 0
  %2895 = vmatprep.subr.bf16.mxu0 0
  %2896 = vmatpush1.bf16.msra.mxu0 0
  %2897 = vmatprep.subr.bf16.mxu0 0
  %2898 = vmatpush1.bf16.msra.mxu0 0
  %2899 = vmatprep.mubr.bf16.mxu0 0
  %2900 = vmatmul.mubr.bf16.gmra.mrb[0].mxu0 %v2865
  %v2901 = vpop.f32.mrb[0].mxu0
  %v2902 = vadd.f32 %v1945, %v2901
  %v2903 = vpop.f32.mrb[0].mxu0
  %v2904 = vpop.f32.mrb[0].mxu0
  %v2905 = vpop.f32.mrb[0].mxu0
  %2906 = vdwg.mxu0
  %v2907 = vxor.u32 %v2902, 2147483648
  %v2908 = vmul.f32 %v2907, 1.442695
  %v2909 = vpow.pop %v2908
  %v2910 = vadd.f32 %v2909, 1.0
  %v2911 = vrcp.pop %v2910
  %v2912 = vmul.f32 1.0, %v2911
  %v2913 = vmul.f32 %v2912, %v2775
  %v2914 = vtanh.pop %v2902
  %2916 = vrot.lane.b32.xlu0 %v2914, 64
  %v2917 = vpop.permute.xlu0 %2916
  %v2919 = vmul.f32 %v2912, %v2917
  %2921 = vrot.lane.b32.xlu0 %v2919, 32
  %v2922 = vpop.permute.xlu0 %2921
  %v2924 = vadd.f32 %v2913, %v2922
  %v2925 = vtanh.pop %v2924
  %2927 = vrot.lane.b32.xlu0 %v2925, 64
  %v2928 = vpop.permute.xlu0 %2927
  %v2930 = vmul.f32 %v2912, %v2928
  %v2931 = vpack.c.bf16 %v2853, %v2853
  %2933 = vrot.lane.b32.xlu0 %v2931, 32
  %v2934 = vpop.permute.xlu0 %2933
  %v2936 = vsel %vm1516, %v2934, 0
  %2938 = vmatprep.subr.bf16.mxu0 0
  %2939 = vmatpush1.bf16.msra.mxu0 %v1864
  %2940 = vmatprep.subr.bf16.mxu0 0
  %2941 = vmatpush1.bf16.msra.mxu0 %v1865
  %2942 = vmatprep.subr.bf16.mxu0 0
  %2943 = vmatpush1.bf16.msra.mxu0 0
  %2944 = vmatprep.subr.bf16.mxu0 0
  %2945 = vmatpush1.bf16.msra.mxu0 0
  %2946 = vmatprep.subr.bf16.mxu0 0
  %2947 = vmatpush1.bf16.msra.mxu0 0
  %2948 = vmatprep.subr.bf16.mxu0 0
  %2949 = vmatpush1.bf16.msra.mxu0 0
  %2950 = vmatprep.subr.bf16.mxu0 0
  %2951 = vmatpush1.bf16.msra.mxu0 0
  %2952 = vmatprep.subr.bf16.mxu0 0
  %2953 = vmatpush1.bf16.msra.mxu0 0
  %2954 = vmatprep.subr.bf16.mxu0 0
  %2955 = vmatpush1.bf16.msra.mxu0 0
  %2956 = vmatprep.subr.bf16.mxu0 0
  %2957 = vmatpush1.bf16.msra.mxu0 0
  %2958 = vmatprep.subr.bf16.mxu0 0
  %2959 = vmatpush1.bf16.msra.mxu0 0
  %2960 = vmatprep.subr.bf16.mxu0 0
  %2961 = vmatpush1.bf16.msra.mxu0 0
  %2962 = vmatprep.subr.bf16.mxu0 0
  %2963 = vmatpush1.bf16.msra.mxu0 0
  %2964 = vmatprep.subr.bf16.mxu0 0
  %2965 = vmatpush1.bf16.msra.mxu0 0
  %2966 = vmatprep.subr.bf16.mxu0 0
  %2967 = vmatpush1.bf16.msra.mxu0 0
  %2968 = vmatprep.subr.bf16.mxu0 0
  %2969 = vmatpush1.bf16.msra.mxu0 0
  %2970 = vmatprep.mubr.bf16.mxu0 0
  %2971 = vmatmul.mubr.bf16.gmra.mrb[0].mxu0 %v2936
  %v2972 = vpop.f32.mrb[0].mxu0
  %v2973 = vadd.f32 0.0, %v2972
  %v2974 = vpop.f32.mrb[0].mxu0
  %v2975 = vpop.f32.mrb[0].mxu0
  %v2976 = vpop.f32.mrb[0].mxu0
  %2977 = vdwg.mxu0
  %v2978 = vadd.f32 %v1853, %v2973
  %v2979 = vxor.u32 %v2978, 2147483648
  %v2980 = vmul.f32 %v2979, 1.442695
  %v2981 = vpow.pop %v2980
  %v2982 = vadd.f32 %v2981, 1.0
  %v2983 = vrcp.pop %v2982
  %v2984 = vmul.f32 1.0, %v2983
  %v2985 = vmul.f32 %v2984, %v2847
  %v2986 = vtanh.pop %v2978
  %2988 = vrot.lane.b32.xlu0 %v2986, 64
  %v2989 = vpop.permute.xlu0 %2988
  %v2991 = vmul.f32 %v2984, %v2989
  %2993 = vrot.lane.b32.xlu0 %v2991, 32
  %v2994 = vpop.permute.xlu0 %2993
  %v2996 = vadd.f32 %v2985, %v2994
  %v2997 = vtanh.pop %v2996
  %2999 = vrot.lane.b32.xlu0 %v2997, 64
  %v3000 = vpop.permute.xlu0 %2999
  %v3002 = vmul.f32 %v2984, %v3000
  %3004 = vrot.lane.b32.xlu0 %v3002, 32
  %v3005 = vpop.permute.xlu0 %3004
  %3008 = vrot.lane.b32.xlu0 %v2930, 64
  %v3009 = vpop.permute.xlu0 %3008
  %v3011 = vsel %vm1516, %v3005, %v3009
  %v3012 = vpack.c.bf16 %v3011, %v3011
  %v3014 = vsel %vm1575, %v3012, 0
  %3016 = vmatprep.subr.bf16.mxu0 0
  %3017 = vmatpush1.bf16.msra.mxu0 %v1962
  %3018 = vmatprep.subr.bf16.mxu0 0
  %3019 = vmatpush1.bf16.msra.mxu0 %v1963
  %3020 = vmatprep.subr.bf16.mxu0 0
  %3021 = vmatpush1.bf16.msra.mxu0 %v1964
  %3022 = vmatprep.subr.bf16.mxu0 0
  %3023 = vmatpush1.bf16.msra.mxu0 %v1965
  %3024 = vmatprep.subr.bf16.mxu0 0
  %3025 = vmatpush1.bf16.msra.mxu0 0
  %3026 = vmatprep.subr.bf16.mxu0 0
  %3027 = vmatpush1.bf16.msra.mxu0 0
  %3028 = vmatprep.subr.bf16.mxu0 0
  %3029 = vmatpush1.bf16.msra.mxu0 0
  %3030 = vmatprep.subr.bf16.mxu0 0
  %3031 = vmatpush1.bf16.msra.mxu0 0
  %3032 = vmatprep.subr.bf16.mxu0 0
  %3033 = vmatpush1.bf16.msra.mxu0 0
  %3034 = vmatprep.subr.bf16.mxu0 0
  %3035 = vmatpush1.bf16.msra.mxu0 0
  %3036 = vmatprep.subr.bf16.mxu0 0
  %3037 = vmatpush1.bf16.msra.mxu0 0
  %3038 = vmatprep.subr.bf16.mxu0 0
  %3039 = vmatpush1.bf16.msra.mxu0 0
  %3040 = vmatprep.subr.bf16.mxu0 0
  %3041 = vmatpush1.bf16.msra.mxu0 0
  %3042 = vmatprep.subr.bf16.mxu0 0
  %3043 = vmatpush1.bf16.msra.mxu0 0
  %3044 = vmatprep.subr.bf16.mxu0 0
  %3045 = vmatpush1.bf16.msra.mxu0 0
  %3046 = vmatprep.subr.bf16.mxu0 0
  %3047 = vmatpush1.bf16.msra.mxu0 0
  %3048 = vmatprep.mubr.bf16.mxu0 0
  %3049 = vmatmul.mubr.bf16.gmra.mrb[0].mxu0 %v3014
  %v3050 = vpop.f32.mrb[0].mxu0
  %v3051 = vadd.f32 %v1945, %v3050
  %v3052 = vpop.f32.mrb[0].mxu0
  %v3053 = vpop.f32.mrb[0].mxu0
  %v3054 = vpop.f32.mrb[0].mxu0
  %3055 = vdwg.mxu0
  %v3056 = vxor.u32 %v3051, 2147483648
  %v3057 = vmul.f32 %v3056, 1.442695
  %v3058 = vpow.pop %v3057
  %v3059 = vadd.f32 %v3058, 1.0
  %v3060 = vrcp.pop %v3059
  %v3061 = vmul.f32 1.0, %v3060
  %v3062 = vmul.f32 %v3061, %v2924
  %v3063 = vtanh.pop %v3051
  %3065 = vrot.lane.b32.xlu0 %v3063, 64
  %v3066 = vpop.permute.xlu0 %3065
  %v3068 = vmul.f32 %v3061, %v3066
  %3070 = vrot.lane.b32.xlu0 %v3068, 32
  %v3071 = vpop.permute.xlu0 %3070
  %v3073 = vadd.f32 %v3062, %v3071
  %v3074 = vtanh.pop %v3073
  %3076 = vrot.lane.b32.xlu0 %v3074, 64
  %v3077 = vpop.permute.xlu0 %3076
  %v3079 = vmul.f32 %v3061, %v3077
  %v3080 = vpack.c.bf16 %v2185, %v2036
  %v3081 = vpack.c.bf16 %v2483, %v2334
  %v3082 = vpack.c.bf16 %v2781, %v2632
  %v3083 = vpack.c.bf16 %v3079, %v2930
  %v3084 = vld [vmem:[%s2 + $0xac] sm:$0xf]
  %v3085 = vld [vmem:[%s2 + $0xb0] sm:$0xf]
  %v3086 = vld [vmem:[%s2 + $0xb4] sm:$0xf]
  %v3087 = vld [vmem:[%s2 + $0xb8] sm:$0xf]
  %v3088 = vld [vmem:[%s3 + $0x7] sm:$0x1]
  %v3089 = vlaneseq
  %v3090 = vshrl.u32 %v3089, 7
  %v3091 = vsub.s32 0, %v3090
  %v3092 = vrot.slane %v3088, %v3091
  %3097 = vrot.lane.b32.xlu0 %v3080, 32
  %v3098 = vpop.permute.xlu0 %3097
  %3099 = vrot.lane.b32.xlu0 %v3081, 32
  %v3100 = vpop.permute.xlu0 %3099
  %3101 = vrot.lane.b32.xlu0 %v3082, 32
  %v3102 = vpop.permute.xlu0 %3101
  %3103 = vrot.lane.b32.xlu0 %v3083, 32
  %v3104 = vpop.permute.xlu0 %3103
  %v3109 = vunpack.c.l.b16 %v3084
  %v3110 = vunpack.c.l.b16 %v3085
  %v3111 = vunpack.c.l.b16 %v3086
  %v3112 = vunpack.c.l.b16 %v3087
  %v3113 = vpack.c.b16 %v3110, %v3109
  %v3114 = vpack.c.b16 %v3112, %v3111
  %v3118 = vsel %vm1516, %v3098, 0
  %v3121 = vsel %vm1516, %v3100, 0
  %v3124 = vsel %vm1516, %v3102, 0
  %v3127 = vsel %vm1516, %v3104, 0
  %3129 = vmatprep.subr.bf16.mxu0 0
  %3130 = vmatpush1.bf16.msra.mxu0 %v3113
  %3131 = vmatprep.subr.bf16.mxu0 0
  %3132 = vmatpush1.bf16.msra.mxu0 %v3114
  %3133 = vmatprep.subr.bf16.mxu0 0
  %3134 = vmatpush1.bf16.msra.mxu0 0
  %3135 = vmatprep.subr.bf16.mxu0 0
  %3136 = vmatpush1.bf16.msra.mxu0 0
  %3137 = vmatprep.subr.bf16.mxu0 0
  %3138 = vmatpush1.bf16.msra.mxu0 0
  %3139 = vmatprep.subr.bf16.mxu0 0
  %3140 = vmatpush1.bf16.msra.mxu0 0
  %3141 = vmatprep.subr.bf16.mxu0 0
  %3142 = vmatpush1.bf16.msra.mxu0 0
  %3143 = vmatprep.subr.bf16.mxu0 0
  %3144 = vmatpush1.bf16.msra.mxu0 0
  %3145 = vmatprep.subr.bf16.mxu0 0
  %3146 = vmatpush1.bf16.msra.mxu0 0
  %3147 = vmatprep.subr.bf16.mxu0 0
  %3148 = vmatpush1.bf16.msra.mxu0 0
  %3149 = vmatprep.subr.bf16.mxu0 0
  %3150 = vmatpush1.bf16.msra.mxu0 0
  %3151 = vmatprep.subr.bf16.mxu0 0
  %3152 = vmatpush1.bf16.msra.mxu0 0
  %3153 = vmatprep.subr.bf16.mxu0 0
  %3154 = vmatpush1.bf16.msra.mxu0 0
  %3155 = vmatprep.subr.bf16.mxu0 0
  %3156 = vmatpush1.bf16.msra.mxu0 0
  %3157 = vmatprep.subr.bf16.mxu0 0
  %3158 = vmatpush1.bf16.msra.mxu0 0
  %3159 = vmatprep.subr.bf16.mxu0 0
  %3160 = vmatpush1.bf16.msra.mxu0 0
  %3161 = vmatprep.mubr.bf16.mxu0 0
  %3162 = vmatmul.mubr.bf16.gmra.mrb[0].mxu0 %v3118
  %v3163 = vpop.f32.mrb[0].mxu0
  %v3164 = vadd.f32 %v3092, %v3163
  %v3165 = vpop.f32.mrb[0].mxu0
  %v3166 = vpop.f32.mrb[0].mxu0
  %v3167 = vadd.f32 %v3092, %v3166
  %v3168 = vpop.f32.mrb[0].mxu0
  %3169 = vmatprep.mubr.bf16.mxu0 0
  %3170 = vmatmul.mubr.bf16.gmra.mrb[0].mxu0 %v3121
  %v3171 = vpop.f32.mrb[0].mxu0
  %v3172 = vadd.f32 %v3092, %v3171
  %v3173 = vpop.f32.mrb[0].mxu0
  %v3174 = vpop.f32.mrb[0].mxu0
  %v3175 = vadd.f32 %v3092, %v3174
  %v3176 = vpop.f32.mrb[0].mxu0
  %3177 = vmatprep.mubr.bf16.mxu0 0
  %3178 = vmatmul.mubr.bf16.gmra.mrb[0].mxu0 %v3124
  %v3179 = vpop.f32.mrb[0].mxu0
  %v3180 = vadd.f32 %v3092, %v3179
  %v3181 = vpop.f32.mrb[0].mxu0
  %v3182 = vpop.f32.mrb[0].mxu0
  %v3183 = vadd.f32 %v3092, %v3182
  %v3184 = vpop.f32.mrb[0].mxu0
  %3185 = vmatprep.mubr.bf16.mxu0 0
  %3186 = vmatmul.mubr.bf16.gmra.mrb[0].mxu0 %v3127
  %v3187 = vpop.f32.mrb[0].mxu0
  %v3188 = vadd.f32 %v3092, %v3187
  %v3189 = vpop.f32.mrb[0].mxu0
  %v3190 = vpop.f32.mrb[0].mxu0
  %v3191 = vadd.f32 %v3092, %v3190
  %v3192 = vpop.f32.mrb[0].mxu0
  %3193 = vdwg.mxu0
  %3194 = vset.pattern.permute.xlu0 4
  %3195 = vperm.xlu0 %3194, %v21
  %v3196 = vpop.permute.xlu0 %3195
  %3198 = vset.pattern.permute.xlu0 4
  %3199 = vperm.xlu0 %3198, %v22
  %v3200 = vpop.permute.xlu0 %3199
  %3202 = vset.pattern.permute.xlu0 4
  %3203 = vperm.xlu0 %3202, %v23
  %v3204 = vpop.permute.xlu0 %3203
  %3206 = vset.pattern.permute.xlu0 4
  %3207 = vperm.xlu0 %3206, %v24
  %v3208 = vpop.permute.xlu0 %3207
  %3210 = vset.pattern.permute.xlu0 4
  %3211 = vperm.xlu0 %3210, %v25
  %v3212 = vpop.permute.xlu0 %3211
  %3214 = vset.pattern.permute.xlu0 4
  %3215 = vperm.xlu0 %3214, %v26
  %v3216 = vpop.permute.xlu0 %3215
  %3218 = vset.pattern.permute.xlu0 4
  %3219 = vperm.xlu0 %3218, %v27
  %v3220 = vpop.permute.xlu0 %3219
  %3222 = vset.pattern.permute.xlu0 4
  %3223 = vperm.xlu0 %3222, %v28
  %v3224 = vpop.permute.xlu0 %3223
  %v3226 = vmul.f32 %v3164, %v3196
  %v3227 = vmul.f32 %v3167, %v3200
  %v3228 = vmul.f32 %v3172, %v3204
  %v3229 = vmul.f32 %v3175, %v3208
  %v3230 = vmul.f32 %v3180, %v3212
  %v3231 = vmul.f32 %v3183, %v3216
  %v3232 = vmul.f32 %v3188, %v3220
  %v3233 = vmul.f32 %v3191, %v3224
  %3234 = vset.pattern.permute.xlu0 5
  %3235 = vperm.xlu0 %3234, %v21
  %v3236 = vpop.permute.xlu0 %3235
  %3238 = vset.pattern.permute.xlu0 5
  %3239 = vperm.xlu0 %3238, %v22
  %v3240 = vpop.permute.xlu0 %3239
  %3242 = vset.pattern.permute.xlu0 5
  %3243 = vperm.xlu0 %3242, %v23
  %v3244 = vpop.permute.xlu0 %3243
  %3246 = vset.pattern.permute.xlu0 5
  %3247 = vperm.xlu0 %3246, %v24
  %v3248 = vpop.permute.xlu0 %3247
  %3250 = vset.pattern.permute.xlu0 5
  %3251 = vperm.xlu0 %3250, %v25
  %v3252 = vpop.permute.xlu0 %3251
  %3254 = vset.pattern.permute.xlu0 5
  %3255 = vperm.xlu0 %3254, %v26
  %v3256 = vpop.permute.xlu0 %3255
  %3258 = vset.pattern.permute.xlu0 5
  %3259 = vperm.xlu0 %3258, %v27
  %v3260 = vpop.permute.xlu0 %3259
  %3262 = vset.pattern.permute.xlu0 5
  %3263 = vperm.xlu0 %3262, %v28
  %v3264 = vpop.permute.xlu0 %3263
  %v3266 = vadd.f32 %v3226, %v3236
  %v3267 = vadd.f32 %v3227, %v3240
  %v3268 = vadd.f32 %v3228, %v3244
  %v3269 = vadd.f32 %v3229, %v3248
  %v3270 = vadd.f32 %v3230, %v3252
  %v3271 = vadd.f32 %v3231, %v3256
  %v3272 = vadd.f32 %v3232, %v3260
  %v3273 = vadd.f32 %v3233, %v3264
  %v3274 = vmax.f32 %v3266, 0.0
  %v3275 = vmax.f32 %v3267, 0.0
  %v3276 = vmax.f32 %v3268, 0.0
  %v3277 = vmax.f32 %v3269, 0.0
  %v3278 = vmax.f32 %v3270, 0.0
  %v3279 = vmax.f32 %v3271, 0.0
  %v3280 = vmax.f32 %v3272, 0.0
  %v3281 = vmax.f32 %v3273, 0.0
  %v3282 = vpack.c.bf16 %v3275, %v3274
  %v3283 = vpack.c.bf16 %v3277, %v3276
  %v3284 = vpack.c.bf16 %v3279, %v3278
  %v3285 = vpack.c.bf16 %v3281, %v3280
  %v3286 = vld [vmem:[%s2 + $0xbc] sm:$0xf]
  %v3287 = vld [vmem:[%s2 + $0xc0] sm:$0xf]
  %v3288 = vld [vmem:[%s2 + $0xc4] sm:$0xf]
  %v3289 = vld [vmem:[%s2 + $0xc8] sm:$0xf]
  %v3290 = vld [vmem:[%s2 + $0xcc] sm:$0xf]
  %v3291 = vld [vmem:[%s2 + $0xd0] sm:$0xf]
  %v3292 = vld [vmem:[%s2 + $0xd4] sm:$0xf]
  %v3293 = vld [vmem:[%s2 + $0xd8] sm:$0xf]
  %v3294 = vld [vmem:[%s3 + $0x8] sm:$0x1]
  %v3295 = vlaneseq
  %v3296 = vshrl.u32 %v3295, 7
  %v3297 = vsub.s32 0, %v3296
  %v3298 = vrot.slane %v3294, %v3297
  %v3307 = vunpack.c.l.b16 %v3286
  %v3308 = vunpack.c.l.b16 %v3287
  %v3309 = vunpack.c.l.b16 %v3288
  %v3310 = vunpack.c.l.b16 %v3289
  %v3311 = vunpack.c.l.b16 %v3290
  %v3312 = vunpack.c.l.b16 %v3291
  %v3313 = vunpack.c.l.b16 %v3292
  %v3314 = vunpack.c.l.b16 %v3293
  %v3315 = vpack.c.b16 %v3308, %v3307
  %v3316 = vpack.c.b16 %v3310, %v3309
  %v3317 = vpack.c.b16 %v3312, %v3311
  %v3318 = vpack.c.b16 %v3314, %v3313
  %v3324 = vsel %vm1575, %v3282, 0
  %v3327 = vsel %vm1575, %v3283, 0
  %v3330 = vsel %vm1575, %v3284, 0
  %v3333 = vsel %vm1575, %v3285, 0
  %3335 = vmatprep.subr.bf16.mxu0 0
  %3336 = vmatpush1.bf16.msra.mxu0 %v3315
  %3337 = vmatprep.subr.bf16.mxu0 0
  %3338 = vmatpush1.bf16.msra.mxu0 %v3316
  %3339 = vmatprep.subr.bf16.mxu0 0
  %3340 = vmatpush1.bf16.msra.mxu0 %v3317
  %3341 = vmatprep.subr.bf16.mxu0 0
  %3342 = vmatpush1.bf16.msra.mxu0 %v3318
  %3343 = vmatprep.subr.bf16.mxu0 0
  %3344 = vmatpush1.bf16.msra.mxu0 0
  %3345 = vmatprep.subr.bf16.mxu0 0
  %3346 = vmatpush1.bf16.msra.mxu0 0
  %3347 = vmatprep.subr.bf16.mxu0 0
  %3348 = vmatpush1.bf16.msra.mxu0 0
  %3349 = vmatprep.subr.bf16.mxu0 0
  %3350 = vmatpush1.bf16.msra.mxu0 0
  %3351 = vmatprep.subr.bf16.mxu0 0
  %3352 = vmatpush1.bf16.msra.mxu0 0
  %3353 = vmatprep.subr.bf16.mxu0 0
  %3354 = vmatpush1.bf16.msra.mxu0 0
  %3355 = vmatprep.subr.bf16.mxu0 0
  %3356 = vmatpush1.bf16.msra.mxu0 0
  %3357 = vmatprep.subr.bf16.mxu0 0
  %3358 = vmatpush1.bf16.msra.mxu0 0
  %3359 = vmatprep.subr.bf16.mxu0 0
  %3360 = vmatpush1.bf16.msra.mxu0 0
  %3361 = vmatprep.subr.bf16.mxu0 0
  %3362 = vmatpush1.bf16.msra.mxu0 0
  %3363 = vmatprep.subr.bf16.mxu0 0
  %3364 = vmatpush1.bf16.msra.mxu0 0
  %3365 = vmatprep.subr.bf16.mxu0 0
  %3366 = vmatpush1.bf16.msra.mxu0 0
  %3367 = vmatprep.mubr.bf16.mxu0 0
  %3368 = vmatmul.mubr.bf16.gmra.mrb[0].mxu0 %v3324
  %v3369 = vpop.f32.mrb[0].mxu0
  %v3370 = vadd.f32 %v3298, %v3369
  %v3371 = vpop.f32.mrb[0].mxu0
  %v3372 = vpop.f32.mrb[0].mxu0
  %v3373 = vadd.f32 %v3298, %v3372
  %v3374 = vpop.f32.mrb[0].mxu0
  %3375 = vmatprep.mubr.bf16.mxu0 0
  %3376 = vmatmul.mubr.bf16.gmra.mrb[0].mxu0 %v3327
  %v3377 = vpop.f32.mrb[0].mxu0
  %v3378 = vadd.f32 %v3298, %v3377
  %v3379 = vpop.f32.mrb[0].mxu0
  %v3380 = vpop.f32.mrb[0].mxu0
  %v3381 = vadd.f32 %v3298, %v3380
  %v3382 = vpop.f32.mrb[0].mxu0
  %3383 = vmatprep.mubr.bf16.mxu0 0
  %3384 = vmatmul.mubr.bf16.gmra.mrb[0].mxu0 %v3330
  %v3385 = vpop.f32.mrb[0].mxu0
  %v3386 = vadd.f32 %v3298, %v3385
  %v3387 = vpop.f32.mrb[0].mxu0
  %v3388 = vpop.f32.mrb[0].mxu0
  %v3389 = vadd.f32 %v3298, %v3388
  %v3390 = vpop.f32.mrb[0].mxu0
  %3391 = vmatprep.mubr.bf16.mxu0 0
  %3392 = vmatmul.mubr.bf16.gmra.mrb[0].mxu0 %v3333
  %v3393 = vpop.f32.mrb[0].mxu0
  %v3394 = vadd.f32 %v3298, %v3393
  %v3395 = vpop.f32.mrb[0].mxu0
  %v3396 = vpop.f32.mrb[0].mxu0
  %v3397 = vadd.f32 %v3298, %v3396
  %v3398 = vpop.f32.mrb[0].mxu0
  %3399 = vdwg.mxu0
  %3400 = vmax.xlane.f32.xlu0 %v3370
  %v3401 = vpop.xlane.xlu0 %3400
  %3402 = vmax.xlane.f32.xlu0 %v3373
  %v3403 = vpop.xlane.xlu0 %3402
  %3404 = vmax.xlane.f32.xlu0 %v3378
  %v3405 = vpop.xlane.xlu0 %3404
  %3406 = vmax.xlane.f32.xlu0 %v3381
  %v3407 = vpop.xlane.xlu0 %3406
  %3408 = vmax.xlane.f32.xlu0 %v3386
  %v3409 = vpop.xlane.xlu0 %3408
  %3410 = vmax.xlane.f32.xlu0 %v3389
  %v3411 = vpop.xlane.xlu0 %3410
  %3412 = vmax.xlane.f32.xlu0 %v3394
  %v3413 = vpop.xlane.xlu0 %3412
  %3414 = vmax.xlane.f32.xlu0 %v3397
  %v3415 = vpop.xlane.xlu0 %3414
  %v3416 = vsub.f32 %v3370, %v3401
  %v3417 = vsub.f32 %v3373, %v3403
  %v3418 = vsub.f32 %v3378, %v3405
  %v3419 = vsub.f32 %v3381, %v3407
  %v3420 = vsub.f32 %v3386, %v3409
  %v3421 = vsub.f32 %v3389, %v3411
  %v3422 = vsub.f32 %v3394, %v3413
  %v3423 = vsub.f32 %v3397, %v3415
  %v3424 = vmul.f32 %v3416, 1.442695
  %v3425 = vpow.pop %v3424
  %v3426 = vmul.f32 %v3417, 1.442695
  %v3427 = vpow.pop %v3426
  %v3428 = vmul.f32 %v3418, 1.442695
  %v3429 = vpow.pop %v3428
  %v3430 = vmul.f32 %v3419, 1.442695
  %v3431 = vpow.pop %v3430
  %v3432 = vmul.f32 %v3420, 1.442695
  %v3433 = vpow.pop %v3432
  %v3434 = vmul.f32 %v3421, 1.442695
  %v3435 = vpow.pop %v3434
  %v3436 = vmul.f32 %v3422, 1.442695
  %v3437 = vpow.pop %v3436
  %v3438 = vmul.f32 %v3423, 1.442695
  %v3439 = vpow.pop %v3438
  %3440 = vadd.xlane.f32.xlu0 %v3425
  %v3441 = vpop.xlane.xlu0 %3440
  %3442 = vadd.xlane.f32.xlu0 %v3427
  %v3443 = vpop.xlane.xlu0 %3442
  %3444 = vadd.xlane.f32.xlu0 %v3429
  %v3445 = vpop.xlane.xlu0 %3444
  %3446 = vadd.xlane.f32.xlu0 %v3431
  %v3447 = vpop.xlane.xlu0 %3446
  %3448 = vadd.xlane.f32.xlu0 %v3433
  %v3449 = vpop.xlane.xlu0 %3448
  %3450 = vadd.xlane.f32.xlu0 %v3435
  %v3451 = vpop.xlane.xlu0 %3450
  %3452 = vadd.xlane.f32.xlu0 %v3437
  %v3453 = vpop.xlane.xlu0 %3452
  %3454 = vadd.xlane.f32.xlu0 %v3439
  %v3455 = vpop.xlane.xlu0 %3454
  %v3456 = vlog2.pop %v3441
  %v3457 = vmul.f32 %v3456, 0.6931472
  %v3458 = vlog2.pop %v3443
  %v3459 = vmul.f32 %v3458, 0.6931472
  %v3460 = vlog2.pop %v3445
  %v3461 = vmul.f32 %v3460, 0.6931472
  %v3462 = vlog2.pop %v3447
  %v3463 = vmul.f32 %v3462, 0.6931472
  %v3464 = vlog2.pop %v3449
  %v3465 = vmul.f32 %v3464, 0.6931472
  %v3466 = vlog2.pop %v3451
  %v3467 = vmul.f32 %v3466, 0.6931472
  %v3468 = vlog2.pop %v3453
  %v3469 = vmul.f32 %v3468, 0.6931472
  %v3470 = vlog2.pop %v3455
  %v3471 = vmul.f32 %v3470, 0.6931472
  %v3472 = vsub.f32 %v3416, %v3457
  %v3473 = vsub.f32 %v3417, %v3459
  %v3474 = vsub.f32 %v3418, %v3461
  %v3475 = vsub.f32 %v3419, %v3463
  %v3476 = vsub.f32 %v3420, %v3465
  %v3477 = vsub.f32 %v3421, %v3467
  %v3478 = vsub.f32 %v3422, %v3469
  %v3479 = vsub.f32 %v3423, %v3471
  %3480 = vst [vmem:[%s5] sm:$0xff] %v3472
  %3481 = vst [vmem:[%s5 + $0x8] sm:$0xff] %v3473
  %3482 = vst [vmem:[%s5 + $0x10] sm:$0xff] %v3474
  %3483 = vst [vmem:[%s5 + $0x18] sm:$0xff] %v3475
  %3484 = vst [vmem:[%s5 + $0x20] sm:$0xff] %v3476
  %3485 = vst [vmem:[%s5 + $0x28] sm:$0xff] %v3477
  %3486 = vst [vmem:[%s5 + $0x30] sm:$0xff] %v3478
  %3487 = vst [vmem:[%s5 + $0x38] sm:$0xff] %v3479
  // Predicated region
  $region22: #{forward.1} parent=0 // pred_check
    _
  $region23: #{forward.1} parent=0 // pred_check_branch
    %3489 = sbr.rel (0) target = $region25
  $region24: #{forward.1} parent=0 // pred_region
    _
  $region25: #{forward.1} parent=0 // pred_fallthru
    _
  // Predicated region
  $region26: #{forward.1} parent=0 // pred_check
    _
  $region27: #{forward.1} parent=0 // pred_check_branch
    %3491 = sbr.rel (0) target = $region29
  $region28: #{forward.1} parent=0 // pred_region
    _
  $region29: #{forward.1} parent=0 // pred_fallthru
    _

</llo_original>
